<compile_context>
chip_gen: v5e
topology: v5e:2x2
jax: 0.10.0
libtpu: 0.0.40
codegen_flags: <defaults>
</compile_context>

<pallas_src>
import functools

import jax
import jax.numpy as jnp
from jax import lax
from jax.experimental import pallas as pl
from jax.experimental.pallas import tpu as pltpu

BN_EPS = 1e-5


# --------------------------------------------------------------------------
# Kernel: everything for one batch element, resident in VMEM.
# Dense layout: a row of a slab is (t*H + h), a lane is (w*C + c).
# --------------------------------------------------------------------------
def bottleneck_kernel(x_ref, w1_ref, w2_ref, w3_ref,
                      s1_ref, b1_ref, s2_ref, b2_ref, s3_ref, b3_ref,
                      o_ref, xpad_ref, ypad_ref, *,
                      T, H, W, Cin, P, Cout, mxu_dtype):
    f32 = jnp.float32

    def mm(a, w):
        return jnp.dot(a.astype(mxu_dtype), w.astype(mxu_dtype),
                       preferred_element_type=f32)

    # ---- temporal halo scratch: ((T+2)*H, W*Cin), one H-row band of zeros
    #      above and below.  All stores/loads here are (8,128)-aligned.
    x = x_ref[...]                                   # (T*H, W*Cin) dense f32
    zrow = jnp.zeros((H, W * Cin), f32)
    xpad_ref[pl.ds(0, H), :] = zrow
    xpad_ref[pl.ds((T + 1) * H, H), :] = zrow
    xpad_ref[pl.ds(H, T * H), :] = x

    # ---- conv1 (3x1x1, pad 1, bias=False) as 3 block-diagonal matmuls:
    #      each tap contracts the full (W*Cin)=256 lane axis in one push.
    y = mm(xpad_ref[pl.ds(0, T * H), :], w1_ref[0])          # x[t-1]
    y = y + mm(x, w1_ref[1])                                 # x[t]
    y = y + mm(xpad_ref[pl.ds(2 * H, T * H), :], w1_ref[2])  # x[t+1]
    # bn1 + relu (folded, lane-tiled scale/shift)
    y = jnp.maximum(y * s1_ref[...] + b1_ref[...], 0.0)      # (T*H, W*P)

    # ---- spatial halo scratch for conv2: (T, H+2, (W+2)*P), zero frame.
    ypad_ref[...] = jnp.zeros((T, H + 2, (W + 2) * P), f32)
    ypad_ref[:, pl.ds(1, H), pl.ds(P, W * P)] = y.reshape(T, H, W * P)

    # ---- conv2 (1x3x3, pad 1, bias=False): 9 block-diagonal matmul taps,
    #      each reading a shifted window straight out of the halo scratch.
    z = None
    for kh in range(3):
        for kw in range(3):
            a = ypad_ref[:, pl.ds(kh, H), pl.ds(kw * P, W * P)]
            t = mm(a.reshape(T * H, W * P), w2_ref[kh * 3 + kw])
            z = t if z is None else z + t
    # bn2 + relu
    z = jnp.maximum(z * s2_ref[...] + b2_ref[...], 0.0)      # (T*H, W*P)

    # ---- conv3 (1x1x1, bias=False) + bn3 + identity add + relu ----
    o = mm(z, w3_ref[...])                                   # (T*H, W*Cout)
    o = o * s3_ref[...] + b3_ref[...]
    # downsample is None -> identity is the input slab (same dense layout,
    # since Cout == Cin and stride == 1).
    o_ref[...] = jnp.maximum(o + x_ref[...], 0.0).astype(o_ref.dtype)


# --------------------------------------------------------------------------
# Wrapper
# --------------------------------------------------------------------------
def bottleneck_forward(x_ncthw, w1bd, w2bd, w3bd,
                       s1d, b1d, s2d, b2d, s3d, b3d,
                       *, mxu_dtype=jnp.float32):
    """x_ncthw: (N, C, T, H, W) f32.  Weights are block-diagonal (host-prepped).

    Returns (N, C_out, T, H, W).
    """
    N, Cin, T, H, W = x_ncthw.shape
    P = w2bd.shape[1] // W
    Cout = w3bd.shape[1] // W
    assert Cout == Cin, "identity residual requires downsample=None (Cout==Cin)"

    # channels-last, then fold W into the lane axis -> lane-dense slabs.
    x = jnp.transpose(x_ncthw, (0, 2, 3, 4, 1)).reshape(N, T * H, W * Cin)

    kern = functools.partial(bottleneck_kernel, T=T, H=H, W=W,
                             Cin=Cin, P=P, Cout=Cout, mxu_dtype=mxu_dtype)

    out = pl.pallas_call(
        kern,
        out_shape=jax.ShapeDtypeStruct((N, T * H, W * Cout), x.dtype),
        grid_spec=pltpu.PrefetchScalarGridSpec(
            num_scalar_prefetch=0,
            grid=(N,),
            in_specs=[
                pl.BlockSpec((None, T * H, W * Cin), lambda n: (n, 0, 0)),
                pl.BlockSpec(w1bd.shape, lambda n: (0, 0, 0)),
                pl.BlockSpec(w2bd.shape, lambda n: (0, 0, 0)),
                pl.BlockSpec(w3bd.shape, lambda n: (0, 0)),
                pl.BlockSpec(s1d.shape, lambda n: (0, 0)),
                pl.BlockSpec(b1d.shape, lambda n: (0, 0)),
                pl.BlockSpec(s2d.shape, lambda n: (0, 0)),
                pl.BlockSpec(b2d.shape, lambda n: (0, 0)),
                pl.BlockSpec(s3d.shape, lambda n: (0, 0)),
                pl.BlockSpec(b3d.shape, lambda n: (0, 0)),
            ],
            out_specs=pl.BlockSpec((None, T * H, W * Cout),
                                   lambda n: (n, 0, 0)),
            scratch_shapes=[
                pltpu.VMEM(((T + 2) * H, W * Cin), jnp.float32),   # temporal halo
                pltpu.VMEM((T, H + 2, (W + 2) * P), jnp.float32),  # spatial halo
            ],
        ),
        compiler_params=pltpu.CompilerParams(
            dimension_semantics=("parallel",)),   # batch shards across v7x TCs
    )(x, w1bd, w2bd, w3bd, s1d, b1d, s2d, b2d, s3d, b3d)

    out = out.reshape(N, T, H, W, Cout)
    return jnp.transpose(out, (0, 4, 1, 2, 3))    # back to (N, C, T, H, W)


# --------------------------------------------------------------------------
# Host-side parameter preparation
# --------------------------------------------------------------------------
def _fold_bn(gamma, beta, mean, var):
    s = gamma / jnp.sqrt(var + BN_EPS)
    b = beta - mean * s
    return s.reshape(1, -1), b.reshape(1, -1)


def _block_diag(w, reps):
    """(Ci, Co) -> (reps*Ci, reps*Co) block-diagonal (acts per W position)."""
    return jnp.kron(jnp.eye(reps, dtype=w.dtype), w)


def prepare_params(w1_t, w2_t, w3_t, bn1, bn2, bn3, W):
    """Torch-layout conv weights + BN tuples -> kernel-ready arrays."""
    # torch layouts: w1 (P, Cin, 3, 1, 1), w2 (P, P, 1, 3, 3), w3 (4P, P, 1, 1, 1)
    w1_k = jnp.transpose(w1_t[:, :, :, 0, 0], (2, 1, 0))     # (3, Cin, P)
    w2_k = jnp.transpose(w2_t[:, :, 0, :, :], (2, 3, 1, 0))  # (kh, kw, P, P)
    w3_k = jnp.transpose(w3_t[:, :, 0, 0, 0], (1, 0))        # (P, 4P)

    w1bd = jnp.stack([_block_diag(w1_k[kt], W) for kt in range(3)])
    w2bd = jnp.stack([_block_diag(w2_k[kh, kw], W)
                      for kh in range(3) for kw in range(3)])
    w3bd = _block_diag(w3_k, W)

    s1, b1 = _fold_bn(*bn1)
    s2, b2 = _fold_bn(*bn2)
    s3, b3 = _fold_bn(*bn3)
    # tile per-channel scale/shift across the W positions folded into lanes
    s1d, b1d = jnp.tile(s1, (1, W)), jnp.tile(b1, (1, W))
    s2d, b2d = jnp.tile(s2, (1, W)), jnp.tile(b2, (1, W))
    s3d, b3d = jnp.tile(s3, (1, W)), jnp.tile(b3, (1, W))
    return w1bd, w2bd, w3bd, s1d, b1d, s2d, b2d, s3d, b3d


# --------------------------- pure-JAX reference ---------------------------
def _bn_eval(x, gamma, beta, mean, var):
    shp = (1, -1, 1, 1, 1)
    return ((x - mean.reshape(shp)) / jnp.sqrt(var.reshape(shp) + BN_EPS)
            * gamma.reshape(shp) + beta.reshape(shp))


def ref_forward(x, w1_t, w2_t, w3_t, bn1, bn2, bn3):
    dn = ('NCDHW', 'OIDHW', 'NCDHW')
    out = lax.conv_general_dilated(x, w1_t, (1, 1, 1),
                                   [(1, 1), (0, 0), (0, 0)],
                                   dimension_numbers=dn)
    out = jax.nn.relu(_bn_eval(out, *bn1))
    out = lax.conv_general_dilated(out, w2_t, (1, 1, 1),
                                   [(0, 0), (1, 1), (1, 1)],
                                   dimension_numbers=dn)
    out = jax.nn.relu(_bn_eval(out, *bn2))
    out = lax.conv_general_dilated(out, w3_t, (1, 1, 1),
                                   [(0, 0), (0, 0), (0, 0)],
                                   dimension_numbers=dn)
    out = _bn_eval(out, *bn3)
    return jax.nn.relu(out + x)


# --------------------------------------------------------------------------
if __name__ == "__main__":
    planes = 4
    expansion = 4
    inplanes = planes * expansion          # 16 (identity residual is valid)
    N, T, H, W = 2, 8, 16, 16

    key = jax.random.PRNGKey(0)
    ks = jax.random.split(key, 16)

    # PyTorch-layout weights (deterministic synthetic init)
    w1_t = 0.1 * jax.random.normal(ks[0], (planes, inplanes, 3, 1, 1), jnp.float32)
    w2_t = 0.1 * jax.random.normal(ks[1], (planes, planes, 1, 3, 3), jnp.float32)
    w3_t = 0.1 * jax.random.normal(ks[2], (planes * expansion, planes, 1, 1, 1),
                                   jnp.float32)

    def make_bn(k, c):
        k1, k2, k3, k4 = jax.random.split(k, 4)
        gamma = 1.0 + 0.1 * jax.random.normal(k1, (c,), jnp.float32)
        beta = 0.1 * jax.random.normal(k2, (c,), jnp.float32)
        mean = 0.1 * jax.random.normal(k3, (c,), jnp.float32)
        var = 0.5 + jnp.abs(jax.random.normal(k4, (c,), jnp.float32))
        return gamma, beta, mean, var

    bn1 = make_bn(ks[3], planes)
    bn2 = make_bn(ks[4], planes)
    bn3 = make_bn(ks[5], planes * expansion)

    params = prepare_params(w1_t, w2_t, w3_t, bn1, bn2, bn3, W)

    x = jax.random.normal(ks[6], (N, inplanes, T, H, W), jnp.float32)

    ref = jax.block_until_ready(ref_forward(x, w1_t, w2_t, w3_t, bn1, bn2, bn3))

    # f32 MXU path: matches the eval-mode PyTorch forward tightly.
    out = jax.block_until_ready(
        bottleneck_forward(x, *params, mxu_dtype=jnp.float32))
    assert out.shape == ref.shape, (out.shape, ref.shape)
    max_err = float(jnp.max(jnp.abs(out - ref)))
    assert jnp.allclose(out, ref, atol=1e-3, rtol=1e-3), f"f32 max_err={max_err}"

    # bf16 MXU path (recommended for v6e/v7x at production widths): looser tol.
    out_bf16 = jax.block_until_ready(
        bottleneck_forward(x, *params, mxu_dtype=jnp.bfloat16))
    max_err_bf16 = float(jnp.max(jnp.abs(out_bf16 - ref)))
    assert jnp.allclose(out_bf16, ref, atol=1e-1, rtol=1e-1), \
        f"bf16 max_err={max_err_bf16}"

    print("KERNEL_OK")
</pallas_src>

<mosaic_0001>
module attributes {stable_mosaic.version = 11 : i64} {
  func.func @bottleneck_kernel(%arg0: i32, %arg1: memref<1x128x256xf32, #tpu.memory_space<vmem>>, %arg2: memref<3x256x64xf32, #tpu.memory_space<vmem>>, %arg3: memref<9x64x64xf32, #tpu.memory_space<vmem>>, %arg4: memref<64x256xf32, #tpu.memory_space<vmem>>, %arg5: memref<1x64xf32, #tpu.memory_space<vmem>>, %arg6: memref<1x64xf32, #tpu.memory_space<vmem>>, %arg7: memref<1x64xf32, #tpu.memory_space<vmem>>, %arg8: memref<1x64xf32, #tpu.memory_space<vmem>>, %arg9: memref<1x256xf32, #tpu.memory_space<vmem>>, %arg10: memref<1x256xf32, #tpu.memory_space<vmem>>, %arg11: memref<1x128x256xf32, #tpu.memory_space<vmem>>, %arg12: memref<160x256xf32, #tpu.memory_space<vmem>>, %arg13: memref<8x18x72xf32, #tpu.memory_space<vmem>>) attributes {dimension_semantics = [#tpu.dimension_semantics<parallel>], iteration_bounds = array<i64: 2>, scalar_prefetch = 0 : i64, scratch_operands = 2 : i64, tpu.core_type = #tpu.core_type<tc>, window_params = [{transform_indices = @transform_0, window_bounds = array<i64: 1, 128, 256>}, {pipeline_mode = #tpu.pipeline_mode<synchronous>, transform_indices = @transform_1, window_bounds = array<i64: 3, 256, 64>}, {pipeline_mode = #tpu.pipeline_mode<synchronous>, transform_indices = @transform_2, window_bounds = array<i64: 9, 64, 64>}, {pipeline_mode = #tpu.pipeline_mode<synchronous>, transform_indices = @transform_3, window_bounds = array<i64: 64, 256>}, {pipeline_mode = #tpu.pipeline_mode<synchronous>, transform_indices = @transform_4, window_bounds = array<i64: 1, 64>}, {pipeline_mode = #tpu.pipeline_mode<synchronous>, transform_indices = @transform_5, window_bounds = array<i64: 1, 64>}, {pipeline_mode = #tpu.pipeline_mode<synchronous>, transform_indices = @transform_6, window_bounds = array<i64: 1, 64>}, {pipeline_mode = #tpu.pipeline_mode<synchronous>, transform_indices = @transform_7, window_bounds = array<i64: 1, 64>}, {pipeline_mode = #tpu.pipeline_mode<synchronous>, transform_indices = @transform_8, window_bounds = array<i64: 1, 256>}, {pipeline_mode = #tpu.pipeline_mode<synchronous>, transform_indices = @transform_9, window_bounds = array<i64: 1, 256>}, {transform_indices = @transform_10, window_bounds = array<i64: 1, 128, 256>}]} {
    %c0 = arith.constant 0 : index
    %c0_0 = arith.constant 0 : index
    %c0_1 = arith.constant 0 : index
    %0 = vector.load %arg1[%c0, %c0_0, %c0_1] : memref<1x128x256xf32, #tpu.memory_space<vmem>>, vector<1x128x256xf32>
    %1 = vector.shape_cast %0 : vector<1x128x256xf32> to vector<128x256xf32>
    %cst = arith.constant 0.000000e+00 : f32
    %2 = vector.broadcast %cst : f32 to vector<16x256xf32>
    %c0_2 = arith.constant 0 : index
    %c0_3 = arith.constant 0 : index
    %3 = vector.load %arg12[%c0_2, %c0_3] : memref<160x256xf32, #tpu.memory_space<vmem>>, vector<16x256xf32>
    tpu.vector_store %arg12[%c0_2, %c0_3], %2 {strides = array<i32>} : memref<160x256xf32, #tpu.memory_space<vmem>>, vector<16x256xf32>,
    %c144 = arith.constant 144 : index
    %c0_4 = arith.constant 0 : index
    %4 = vector.load %arg12[%c144, %c0_4] : memref<160x256xf32, #tpu.memory_space<vmem>>, vector<16x256xf32>
    tpu.vector_store %arg12[%c144, %c0_4], %2 {strides = array<i32>} : memref<160x256xf32, #tpu.memory_space<vmem>>, vector<16x256xf32>,
    %c16 = arith.constant 16 : index
    %c0_5 = arith.constant 0 : index
    %5 = vector.load %arg12[%c16, %c0_5] : memref<160x256xf32, #tpu.memory_space<vmem>>, vector<128x256xf32>
    tpu.vector_store %arg12[%c16, %c0_5], %1 {strides = array<i32>} : memref<160x256xf32, #tpu.memory_space<vmem>>, vector<128x256xf32>,
    %c0_6 = arith.constant 0 : index
    %c0_7 = arith.constant 0 : index
    %6 = vector.load %arg12[%c0_6, %c0_7] : memref<160x256xf32, #tpu.memory_space<vmem>>, vector<128x256xf32>
    %c0_8 = arith.constant 0 : index
    %c0_9 = arith.constant 0 : index
    %c0_10 = arith.constant 0 : index
    %7 = vector.load %arg2[%c0_8, %c0_9, %c0_10] : memref<3x256x64xf32, #tpu.memory_space<vmem>>, vector<1x256x64xf32>
    %8 = vector.shape_cast %7 : vector<1x256x64xf32> to vector<256x64xf32>
    %cst_11 = arith.constant dense<0.000000e+00> : vector<128x64xf32>
    %9 = tpu.matmul %6, %8, %cst_11 {dimension_numbers = #tpu.dot_dimension_numbers<[1], [0], [0], [1], [0, 0, 1, 1], [], []>} : vector<128x256xf32>, vector<256x64xf32>, vector<128x64xf32> -> vector<128x64xf32>
    %c1 = arith.constant 1 : index
    %c0_12 = arith.constant 0 : index
    %c0_13 = arith.constant 0 : index
    %10 = vector.load %arg2[%c1, %c0_12, %c0_13] : memref<3x256x64xf32, #tpu.memory_space<vmem>>, vector<1x256x64xf32>
    %11 = vector.shape_cast %10 : vector<1x256x64xf32> to vector<256x64xf32>
    %cst_14 = arith.constant dense<0.000000e+00> : vector<128x64xf32>
    %12 = tpu.matmul %1, %11, %cst_14 {dimension_numbers = #tpu.dot_dimension_numbers<[1], [0], [0], [1], [0, 0, 1, 1], [], []>} : vector<128x256xf32>, vector<256x64xf32>, vector<128x64xf32> -> vector<128x64xf32>
    %13 = arith.addf %9, %12 : vector<128x64xf32>
    %c32 = arith.constant 32 : index
    %c0_15 = arith.constant 0 : index
    %14 = vector.load %arg12[%c32, %c0_15] : memref<160x256xf32, #tpu.memory_space<vmem>>, vector<128x256xf32>
    %c2 = arith.constant 2 : index
    %c0_16 = arith.constant 0 : index
    %c0_17 = arith.constant 0 : index
    %15 = vector.load %arg2[%c2, %c0_16, %c0_17] : memref<3x256x64xf32, #tpu.memory_space<vmem>>, vector<1x256x64xf32>
    %16 = vector.shape_cast %15 : vector<1x256x64xf32> to vector<256x64xf32>
    %cst_18 = arith.constant dense<0.000000e+00> : vector<128x64xf32>
    %17 = tpu.matmul %14, %16, %cst_18 {dimension_numbers = #tpu.dot_dimension_numbers<[1], [0], [0], [1], [0, 0, 1, 1], [], []>} : vector<128x256xf32>, vector<256x64xf32>, vector<128x64xf32> -> vector<128x64xf32>
    %18 = arith.addf %13, %17 : vector<128x64xf32>
    %c0_19 = arith.constant 0 : index
    %c0_20 = arith.constant 0 : index
    %19 = vector.load %arg5[%c0_19, %c0_20] : memref<1x64xf32, #tpu.memory_space<vmem>>, vector<1x64xf32>
    %20 = vector.broadcast %19 : vector<1x64xf32> to vector<128x64xf32>
    %21 = arith.mulf %18, %20 : vector<128x64xf32>
    %c0_21 = arith.constant 0 : index
    %c0_22 = arith.constant 0 : index
    %22 = vector.load %arg6[%c0_21, %c0_22] : memref<1x64xf32, #tpu.memory_space<vmem>>, vector<1x64xf32>
    %23 = vector.broadcast %22 : vector<1x64xf32> to vector<128x64xf32>
    %24 = arith.addf %21, %23 : vector<128x64xf32>
    %cst_23 = arith.constant 0.000000e+00 : f32
    %25 = vector.broadcast %cst_23 : f32 to vector<128x64xf32>
    %26 = arith.maximumf %24, %25 : vector<128x64xf32>
    %cst_24 = arith.constant 0.000000e+00 : f32
    %27 = vector.broadcast %cst_24 : f32 to vector<8x18x72xf32>
    %c0_25 = arith.constant 0 : index
    %c0_26 = arith.constant 0 : index
    %c0_27 = arith.constant 0 : index
    %28 = vector.load %arg13[%c0_25, %c0_26, %c0_27] : memref<8x18x72xf32, #tpu.memory_space<vmem>>, vector<8x18x72xf32>
    tpu.vector_store %arg13[%c0_25, %c0_26, %c0_27], %27 {strides = array<i32>} : memref<8x18x72xf32, #tpu.memory_space<vmem>>, vector<8x18x72xf32>,
    %29 = vector.shape_cast %26 : vector<128x64xf32> to vector<8x16x64xf32>
    %c0_28 = arith.constant 0 : index
    %c1_29 = arith.constant 1 : index
    %c4 = arith.constant 4 : index
    %30 = vector.load %arg13[%c0_28, %c1_29, %c4] : memref<8x18x72xf32, #tpu.memory_space<vmem>>, vector<8x16x64xf32>
    tpu.vector_store %arg13[%c0_28, %c1_29, %c4], %29 {strides = array<i32>} : memref<8x18x72xf32, #tpu.memory_space<vmem>>, vector<8x16x64xf32>,
    %c0_30 = arith.constant 0 : index
    %c0_31 = arith.constant 0 : index
    %c0_32 = arith.constant 0 : index
    %31 = vector.load %arg13[%c0_30, %c0_31, %c0_32] : memref<8x18x72xf32, #tpu.memory_space<vmem>>, vector<8x16x64xf32>
    %32 = vector.shape_cast %31 : vector<8x16x64xf32> to vector<128x64xf32>
    %c0_33 = arith.constant 0 : index
    %c0_34 = arith.constant 0 : index
    %c0_35 = arith.constant 0 : index
    %33 = vector.load %arg3[%c0_33, %c0_34, %c0_35] : memref<9x64x64xf32, #tpu.memory_space<vmem>>, vector<1x64x64xf32>
    %34 = vector.shape_cast %33 : vector<1x64x64xf32> to vector<64x64xf32>
    %cst_36 = arith.constant dense<0.000000e+00> : vector<128x64xf32>
    %35 = tpu.matmul %32, %34, %cst_36 {dimension_numbers = #tpu.dot_dimension_numbers<[1], [0], [0], [1], [0, 0, 1, 1], [], []>} : vector<128x64xf32>, vector<64x64xf32>, vector<128x64xf32> -> vector<128x64xf32>
    %c0_37 = arith.constant 0 : index
    %c0_38 = arith.constant 0 : index
    %c4_39 = arith.constant 4 : index
    %36 = vector.load %arg13[%c0_37, %c0_38, %c4_39] : memref<8x18x72xf32, #tpu.memory_space<vmem>>, vector<8x16x64xf32>
    %37 = vector.shape_cast %36 : vector<8x16x64xf32> to vector<128x64xf32>
    %c1_40 = arith.constant 1 : index
    %c0_41 = arith.constant 0 : index
    %c0_42 = arith.constant 0 : index
    %38 = vector.load %arg3[%c1_40, %c0_41, %c0_42] : memref<9x64x64xf32, #tpu.memory_space<vmem>>, vector<1x64x64xf32>
    %39 = vector.shape_cast %38 : vector<1x64x64xf32> to vector<64x64xf32>
    %cst_43 = arith.constant dense<0.000000e+00> : vector<128x64xf32>
    %40 = tpu.matmul %37, %39, %cst_43 {dimension_numbers = #tpu.dot_dimension_numbers<[1], [0], [0], [1], [0, 0, 1, 1], [], []>} : vector<128x64xf32>, vector<64x64xf32>, vector<128x64xf32> -> vector<128x64xf32>
    %41 = arith.addf %35, %40 : vector<128x64xf32>
    %c0_44 = arith.constant 0 : index
    %c0_45 = arith.constant 0 : index
    %c8 = arith.constant 8 : index
    %42 = vector.load %arg13[%c0_44, %c0_45, %c8] : memref<8x18x72xf32, #tpu.memory_space<vmem>>, vector<8x16x64xf32>
    %43 = vector.shape_cast %42 : vector<8x16x64xf32> to vector<128x64xf32>
    %c2_46 = arith.constant 2 : index
    %c0_47 = arith.constant 0 : index
    %c0_48 = arith.constant 0 : index
    %44 = vector.load %arg3[%c2_46, %c0_47, %c0_48] : memref<9x64x64xf32, #tpu.memory_space<vmem>>, vector<1x64x64xf32>
    %45 = vector.shape_cast %44 : vector<1x64x64xf32> to vector<64x64xf32>
    %cst_49 = arith.constant dense<0.000000e+00> : vector<128x64xf32>
    %46 = tpu.matmul %43, %45, %cst_49 {dimension_numbers = #tpu.dot_dimension_numbers<[1], [0], [0], [1], [0, 0, 1, 1], [], []>} : vector<128x64xf32>, vector<64x64xf32>, vector<128x64xf32> -> vector<128x64xf32>
    %47 = arith.addf %41, %46 : vector<128x64xf32>
    %c0_50 = arith.constant 0 : index
    %c1_51 = arith.constant 1 : index
    %c0_52 = arith.constant 0 : index
    %48 = vector.load %arg13[%c0_50, %c1_51, %c0_52] : memref<8x18x72xf32, #tpu.memory_space<vmem>>, vector<8x16x64xf32>
    %49 = vector.shape_cast %48 : vector<8x16x64xf32> to vector<128x64xf32>
    %c3 = arith.constant 3 : index
    %c0_53 = arith.constant 0 : index
    %c0_54 = arith.constant 0 : index
    %50 = vector.load %arg3[%c3, %c0_53, %c0_54] : memref<9x64x64xf32, #tpu.memory_space<vmem>>, vector<1x64x64xf32>
    %51 = vector.shape_cast %50 : vector<1x64x64xf32> to vector<64x64xf32>
    %cst_55 = arith.constant dense<0.000000e+00> : vector<128x64xf32>
    %52 = tpu.matmul %49, %51, %cst_55 {dimension_numbers = #tpu.dot_dimension_numbers<[1], [0], [0], [1], [0, 0, 1, 1], [], []>} : vector<128x64xf32>, vector<64x64xf32>, vector<128x64xf32> -> vector<128x64xf32>
    %53 = arith.addf %47, %52 : vector<128x64xf32>
    %c0_56 = arith.constant 0 : index
    %c1_57 = arith.constant 1 : index
    %c4_58 = arith.constant 4 : index
    %54 = vector.load %arg13[%c0_56, %c1_57, %c4_58] : memref<8x18x72xf32, #tpu.memory_space<vmem>>, vector<8x16x64xf32>
    %55 = vector.shape_cast %54 : vector<8x16x64xf32> to vector<128x64xf32>
    %c4_59 = arith.constant 4 : index
    %c0_60 = arith.constant 0 : index
    %c0_61 = arith.constant 0 : index
    %56 = vector.load %arg3[%c4_59, %c0_60, %c0_61] : memref<9x64x64xf32, #tpu.memory_space<vmem>>, vector<1x64x64xf32>
    %57 = vector.shape_cast %56 : vector<1x64x64xf32> to vector<64x64xf32>
    %cst_62 = arith.constant dense<0.000000e+00> : vector<128x64xf32>
    %58 = tpu.matmul %55, %57, %cst_62 {dimension_numbers = #tpu.dot_dimension_numbers<[1], [0], [0], [1], [0, 0, 1, 1], [], []>} : vector<128x64xf32>, vector<64x64xf32>, vector<128x64xf32> -> vector<128x64xf32>
    %59 = arith.addf %53, %58 : vector<128x64xf32>
    %c0_63 = arith.constant 0 : index
    %c1_64 = arith.constant 1 : index
    %c8_65 = arith.constant 8 : index
    %60 = vector.load %arg13[%c0_63, %c1_64, %c8_65] : memref<8x18x72xf32, #tpu.memory_space<vmem>>, vector<8x16x64xf32>
    %61 = vector.shape_cast %60 : vector<8x16x64xf32> to vector<128x64xf32>
    %c5 = arith.constant 5 : index
    %c0_66 = arith.constant 0 : index
    %c0_67 = arith.constant 0 : index
    %62 = vector.load %arg3[%c5, %c0_66, %c0_67] : memref<9x64x64xf32, #tpu.memory_space<vmem>>, vector<1x64x64xf32>
    %63 = vector.shape_cast %62 : vector<1x64x64xf32> to vector<64x64xf32>
    %cst_68 = arith.constant dense<0.000000e+00> : vector<128x64xf32>
    %64 = tpu.matmul %61, %63, %cst_68 {dimension_numbers = #tpu.dot_dimension_numbers<[1], [0], [0], [1], [0, 0, 1, 1], [], []>} : vector<128x64xf32>, vector<64x64xf32>, vector<128x64xf32> -> vector<128x64xf32>
    %65 = arith.addf %59, %64 : vector<128x64xf32>
    %c0_69 = arith.constant 0 : index
    %c2_70 = arith.constant 2 : index
    %c0_71 = arith.constant 0 : index
    %66 = vector.load %arg13[%c0_69, %c2_70, %c0_71] : memref<8x18x72xf32, #tpu.memory_space<vmem>>, vector<8x16x64xf32>
    %67 = vector.shape_cast %66 : vector<8x16x64xf32> to vector<128x64xf32>
    %c6 = arith.constant 6 : index
    %c0_72 = arith.constant 0 : index
    %c0_73 = arith.constant 0 : index
    %68 = vector.load %arg3[%c6, %c0_72, %c0_73] : memref<9x64x64xf32, #tpu.memory_space<vmem>>, vector<1x64x64xf32>
    %69 = vector.shape_cast %68 : vector<1x64x64xf32> to vector<64x64xf32>
    %cst_74 = arith.constant dense<0.000000e+00> : vector<128x64xf32>
    %70 = tpu.matmul %67, %69, %cst_74 {dimension_numbers = #tpu.dot_dimension_numbers<[1], [0], [0], [1], [0, 0, 1, 1], [], []>} : vector<128x64xf32>, vector<64x64xf32>, vector<128x64xf32> -> vector<128x64xf32>
    %71 = arith.addf %65, %70 : vector<128x64xf32>
    %c0_75 = arith.constant 0 : index
    %c2_76 = arith.constant 2 : index
    %c4_77 = arith.constant 4 : index
    %72 = vector.load %arg13[%c0_75, %c2_76, %c4_77] : memref<8x18x72xf32, #tpu.memory_space<vmem>>, vector<8x16x64xf32>
    %73 = vector.shape_cast %72 : vector<8x16x64xf32> to vector<128x64xf32>
    %c7 = arith.constant 7 : index
    %c0_78 = arith.constant 0 : index
    %c0_79 = arith.constant 0 : index
    %74 = vector.load %arg3[%c7, %c0_78, %c0_79] : memref<9x64x64xf32, #tpu.memory_space<vmem>>, vector<1x64x64xf32>
    %75 = vector.shape_cast %74 : vector<1x64x64xf32> to vector<64x64xf32>
    %cst_80 = arith.constant dense<0.000000e+00> : vector<128x64xf32>
    %76 = tpu.matmul %73, %75, %cst_80 {dimension_numbers = #tpu.dot_dimension_numbers<[1], [0], [0], [1], [0, 0, 1, 1], [], []>} : vector<128x64xf32>, vector<64x64xf32>, vector<128x64xf32> -> vector<128x64xf32>
    %77 = arith.addf %71, %76 : vector<128x64xf32>
    %c0_81 = arith.constant 0 : index
    %c2_82 = arith.constant 2 : index
    %c8_83 = arith.constant 8 : index
    %78 = vector.load %arg13[%c0_81, %c2_82, %c8_83] : memref<8x18x72xf32, #tpu.memory_space<vmem>>, vector<8x16x64xf32>
    %79 = vector.shape_cast %78 : vector<8x16x64xf32> to vector<128x64xf32>
    %c8_84 = arith.constant 8 : index
    %c0_85 = arith.constant 0 : index
    %c0_86 = arith.constant 0 : index
    %80 = vector.load %arg3[%c8_84, %c0_85, %c0_86] : memref<9x64x64xf32, #tpu.memory_space<vmem>>, vector<1x64x64xf32>
    %81 = vector.shape_cast %80 : vector<1x64x64xf32> to vector<64x64xf32>
    %cst_87 = arith.constant dense<0.000000e+00> : vector<128x64xf32>
    %82 = tpu.matmul %79, %81, %cst_87 {dimension_numbers = #tpu.dot_dimension_numbers<[1], [0], [0], [1], [0, 0, 1, 1], [], []>} : vector<128x64xf32>, vector<64x64xf32>, vector<128x64xf32> -> vector<128x64xf32>
    %83 = arith.addf %77, %82 : vector<128x64xf32>
    %c0_88 = arith.constant 0 : index
    %c0_89 = arith.constant 0 : index
    %84 = vector.load %arg7[%c0_88, %c0_89] : memref<1x64xf32, #tpu.memory_space<vmem>>, vector<1x64xf32>
    %85 = vector.broadcast %84 : vector<1x64xf32> to vector<128x64xf32>
    %86 = arith.mulf %83, %85 : vector<128x64xf32>
    %c0_90 = arith.constant 0 : index
    %c0_91 = arith.constant 0 : index
    %87 = vector.load %arg8[%c0_90, %c0_91] : memref<1x64xf32, #tpu.memory_space<vmem>>, vector<1x64xf32>
    %88 = vector.broadcast %87 : vector<1x64xf32> to vector<128x64xf32>
    %89 = arith.addf %86, %88 : vector<128x64xf32>
    %cst_92 = arith.constant 0.000000e+00 : f32
    %90 = vector.broadcast %cst_92 : f32 to vector<128x64xf32>
    %91 = arith.maximumf %89, %90 : vector<128x64xf32>
    %c0_93 = arith.constant 0 : index
    %c0_94 = arith.constant 0 : index
    %92 = vector.load %arg4[%c0_93, %c0_94] : memref<64x256xf32, #tpu.memory_space<vmem>>, vector<64x256xf32>
    %cst_95 = arith.constant dense<0.000000e+00> : vector<128x256xf32>
    %93 = tpu.matmul %91, %92, %cst_95 {dimension_numbers = #tpu.dot_dimension_numbers<[1], [0], [0], [1], [0, 0, 1, 1], [], []>} : vector<128x64xf32>, vector<64x256xf32>, vector<128x256xf32> -> vector<128x256xf32>
    %c0_96 = arith.constant 0 : index
    %c0_97 = arith.constant 0 : index
    %94 = vector.load %arg9[%c0_96, %c0_97] : memref<1x256xf32, #tpu.memory_space<vmem>>, vector<1x256xf32>
    %95 = vector.broadcast %94 : vector<1x256xf32> to vector<128x256xf32>
    %96 = arith.mulf %93, %95 : vector<128x256xf32>
    %c0_98 = arith.constant 0 : index
    %c0_99 = arith.constant 0 : index
    %97 = vector.load %arg10[%c0_98, %c0_99] : memref<1x256xf32, #tpu.memory_space<vmem>>, vector<1x256xf32>
    %98 = vector.broadcast %97 : vector<1x256xf32> to vector<128x256xf32>
    %99 = arith.addf %96, %98 : vector<128x256xf32>
    %c0_100 = arith.constant 0 : index
    %c0_101 = arith.constant 0 : index
    %c0_102 = arith.constant 0 : index
    %100 = vector.load %arg1[%c0_100, %c0_101, %c0_102] : memref<1x128x256xf32, #tpu.memory_space<vmem>>, vector<1x128x256xf32>
    %101 = vector.shape_cast %100 : vector<1x128x256xf32> to vector<128x256xf32>
    %102 = arith.addf %99, %101 : vector<128x256xf32>
    %cst_103 = arith.constant 0.000000e+00 : f32
    %103 = vector.broadcast %cst_103 : f32 to vector<128x256xf32>
    %104 = arith.maximumf %102, %103 : vector<128x256xf32>
    %c0_104 = arith.constant 0 : index
    %c0_105 = arith.constant 0 : index
    %c0_106 = arith.constant 0 : index
    %105 = vector.load %arg11[%c0_104, %c0_105, %c0_106] : memref<1x128x256xf32, #tpu.memory_space<vmem>>, vector<1x128x256xf32>
    %106 = vector.shape_cast %105 : vector<1x128x256xf32> to vector<128x256xf32>
    %107 = vector.shape_cast %104 : vector<128x256xf32> to vector<1x128x256xf32>
    tpu.vector_store %arg11[%c0_104, %c0_105, %c0_106], %107 {strides = array<i32>} : memref<1x128x256xf32, #tpu.memory_space<vmem>>, vector<1x128x256xf32>,
    return
  }
  func.func @transform_0(%arg0: i32) -> (i32, i32, i32) {
    %c0_i32 = arith.constant 0 : i32
    %c0_i32_0 = arith.constant 0 : i32
    %c0_i32_1 = arith.constant 0 : i32
    return %arg0, %c0_i32, %c0_i32_0 : i32, i32, i32
  }
  func.func @transform_1(%arg0: i32) -> (i32, i32, i32) {
    %c0_i32 = arith.constant 0 : i32
    %c0_i32_0 = arith.constant 0 : i32
    %c0_i32_1 = arith.constant 0 : i32
    %c0_i32_2 = arith.constant 0 : i32
    return %c0_i32, %c0_i32_0, %c0_i32_1 : i32, i32, i32
  }
  func.func @transform_2(%arg0: i32) -> (i32, i32, i32) {
    %c0_i32 = arith.constant 0 : i32
    %c0_i32_0 = arith.constant 0 : i32
    %c0_i32_1 = arith.constant 0 : i32
    %c0_i32_2 = arith.constant 0 : i32
    return %c0_i32, %c0_i32_0, %c0_i32_1 : i32, i32, i32
  }
  func.func @transform_3(%arg0: i32) -> (i32, i32) {
    %c0_i32 = arith.constant 0 : i32
    %c0_i32_0 = arith.constant 0 : i32
    %c0_i32_1 = arith.constant 0 : i32
    return %c0_i32, %c0_i32_0 : i32, i32
  }
  func.func @transform_4(%arg0: i32) -> (i32, i32) {
    %c0_i32 = arith.constant 0 : i32
    %c0_i32_0 = arith.constant 0 : i32
    %c0_i32_1 = arith.constant 0 : i32
    return %c0_i32, %c0_i32_0 : i32, i32
  }
  func.func @transform_5(%arg0: i32) -> (i32, i32) {
    %c0_i32 = arith.constant 0 : i32
    %c0_i32_0 = arith.constant 0 : i32
    %c0_i32_1 = arith.constant 0 : i32
    return %c0_i32, %c0_i32_0 : i32, i32
  }
  func.func @transform_6(%arg0: i32) -> (i32, i32) {
    %c0_i32 = arith.constant 0 : i32
    %c0_i32_0 = arith.constant 0 : i32
    %c0_i32_1 = arith.constant 0 : i32
    return %c0_i32, %c0_i32_0 : i32, i32
  }
  func.func @transform_7(%arg0: i32) -> (i32, i32) {
    %c0_i32 = arith.constant 0 : i32
    %c0_i32_0 = arith.constant 0 : i32
    %c0_i32_1 = arith.constant 0 : i32
    return %c0_i32, %c0_i32_0 : i32, i32
  }
  func.func @transform_8(%arg0: i32) -> (i32, i32) {
    %c0_i32 = arith.constant 0 : i32
    %c0_i32_0 = arith.constant 0 : i32
    %c0_i32_1 = arith.constant 0 : i32
    return %c0_i32, %c0_i32_0 : i32, i32
  }
  func.func @transform_9(%arg0: i32) -> (i32, i32) {
    %c0_i32 = arith.constant 0 : i32
    %c0_i32_0 = arith.constant 0 : i32
    %c0_i32_1 = arith.constant 0 : i32
    return %c0_i32, %c0_i32_0 : i32, i32
  }
  func.func @transform_10(%arg0: i32) -> (i32, i32, i32) {
    %c0_i32 = arith.constant 0 : i32
    %c0_i32_0 = arith.constant 0 : i32
    %c0_i32_1 = arith.constant 0 : i32
    return %arg0, %c0_i32, %c0_i32_0 : i32, i32, i32
  }
}

</mosaic_0001>

<llo_original>
// kernel: tpu_custom_call.1
$region0: #{tpu_custom_call.1}
  #allocation0 [shape = 'u32[]', space=smem, size = 0x4, offset = 0x4, fixed_abs, tag = 'smem constant byte address 0x4 - core index']
  #allocation1 [shape = 'u32[72,128]{1,0:T(1,128)}', space=vmem, size = 0x9000, scoped, tag = 'internal scratch']
  #allocation2 [shape = 'f32[160,256]{1,0:T(8,128)}', space=vmem, size = 0x28000, scoped, tag = 'scratch operand']
  #allocation3 [shape = 'f32[8,18,72]{2,1,0:T(8,128)}', space=vmem, size = 0x18000, scoped, tag = 'scratch operand']
  %s0 = inlined_call_operand.vmem [shape: f32[2,128,256], index: 0, kind: input, shape index: {}]
  %s1 = inlined_call_operand.vmem [shape: f32[3,256,64], index: 1, kind: input, shape index: {}]
  %s2 = inlined_call_operand.vmem [shape: f32[9,64,64], index: 2, kind: input, shape index: {}]
  %s3 = inlined_call_operand.hbm [shape: f32[64,256], index: 3, kind: input, shape index: {}]
  %s4 = inlined_call_operand.vmem [shape: f32[1,64], index: 4, kind: input, shape index: {}]
  %s5 = inlined_call_operand.vmem [shape: f32[1,64], index: 5, kind: input, shape index: {}]
  %s6 = inlined_call_operand.vmem [shape: f32[1,64], index: 6, kind: input, shape index: {}]
  %s7 = inlined_call_operand.vmem [shape: f32[1,64], index: 7, kind: input, shape index: {}]
  %s8 = inlined_call_operand.vmem [shape: f32[1,256], index: 8, kind: input, shape index: {}]
  %s9 = inlined_call_operand.vmem [shape: f32[1,256], index: 9, kind: input, shape index: {}]
  %s10 = inlined_call_operand.hbm [shape: f32[2,128,256], index: 10, kind: output, shape index: {}]
  %s11 = sld [smem:[#allocation0]]
  $region77: #{tpu_custom_call.1} parent=0
    _
  %s13 = ssub.s32 1, %s11
  %s14 = scalar_select 0, %s13, %s11
  $region1: #{tpu_custom_call.1} parent=0
    #allocation4 [shape = 'u8[65536]{0}', space=vmem, size = 0x10000, scoped, tag = 'input window, operand 3, single buffered']
    #allocation5 [shape = 's32[2]{0}', space=sflag, size = 0x8, scoped, tag = 'scoped memory for tpu_custom_call.1']
    #allocation6 [shape = 's32[2]{0}', space=sflag, size = 0x8, scoped, tag = 'scoped memory for tpu_custom_call.1']
    #allocation7 [shape = 'u8[262144]{0}', space=vmem, size = 0x40000, scoped, tag = 'output window, operand 0']
    %15 = vsyncpa [#allocation5], 0
    %16 = vsyncpa [#allocation6], 0
    %s17 = scalar_lea.sflag [#allocation6], 1
    %18 = vsyncpa %s17, 0
    loop: start=0, step=1, limit=4
    $region2: #{tpu_custom_call.1} parent=1 // loop_pre_header
      _
    $region3: #{tpu_custom_call.1} parent=1 // loop_header
      %s20 = sphi 0, %s24
      %p21 = scmp.ge.s32.totalorder %s20, 4
      %s30 = sphi 0, %s32
      %s33 = sphi 0, %s30
      %s34 = sphi 0, %s33
      %s50 = sphi 0, %s34
      %s54 = sphi 0, %s54
      %s56 = sphi 0, %s54
      %s57 = sphi 0, %s56
      %s71 = sphi 0, %s57
      %s75 = sphi 0, %s75
      %s77 = sphi 0, %s75
      %s78 = sphi 0, %s77
      %s92 = sphi 0, %s78
      %s96 = sphi 0, %s96
      %s98 = sphi 0, %s96
      %s99 = sphi 0, %s98
      %s113 = sphi 0, %s99
      %s117 = sphi 0, %s117
      %s119 = sphi 0, %s117
      %s120 = sphi 0, %s119
      %s134 = sphi 0, %s120
      %s138 = sphi 0, %s138
      %s140 = sphi 0, %s138
      %s141 = sphi 0, %s140
      %s155 = sphi 0, %s141
      %s159 = sphi 0, %s159
      %s161 = sphi 0, %s159
      %s162 = sphi 0, %s161
      %s176 = sphi 0, %s162
      %s180 = sphi 0, %s180
      %s182 = sphi 0, %s180
      %s183 = sphi 0, %s182
      %s197 = sphi 0, %s183
      %s201 = sphi 0, %s201
      %s203 = sphi 0, %s201
      %s204 = sphi 0, %s203
      %s218 = sphi 0, %s204
      %s222 = sphi 0, %s222
      %s224 = sphi 0, %s222
      %s225 = sphi 0, %s224
      %s239 = sphi 0, %s225
      %s245 = sphi 0, %s247
      %s248 = sphi 0, %s245
      %s249 = sphi 0, %s248
      %s265 = sphi 0, %s249
    $region4: #{tpu_custom_call.1} parent=1 // loop_header_branch
      %23 = sbr.rel (%p21) target = $region8
    $region5: #{tpu_custom_call.1} parent=1 // loop_body
      %s25 = ssub.s32 %s20, 1
      %s26 = ssub.s32 %s20, 2
      %s27 = sadd.s32 %s20, 1
      %s28 = ssub.s32 %s20, %s27
      %p29 = scmp.eq.s32.totalorder %s28, 0
      %s31 = sadd.s32 %s30, 1
      %s32 = scalar_select %p29, %s30, %s31
      %p35 = pneg %p29
      %p36 = scmp.eq.s32.totalorder %s20, 1
      %p37 = por %p35, %p36
      %p38 = scmp.ne.s32.totalorder %s30, %s33
      %p39 = scmp.eq.s32.totalorder %s20, 0
      %p40 = por %p38, %p39
      %p41 = scmp.ne.s32.totalorder %s30, %s33
      %p42 = scmp.eq.s32.totalorder %s25, 1
      %p43 = por %p41, %p42
      %p44 = scmp.ne.s32.totalorder %s33, %s34
      %p45 = scmp.eq.s32.totalorder %s25, 0
      %p46 = por %p44, %p45
      %p47 = scmp.ne.s32.totalorder %s33, %s34
      %p48 = scmp.eq.s32.totalorder %s26, 1
      %p49 = por %p47, %p48
      %p51 = scmp.ne.s32.totalorder %s34, %s50
      %p52 = scmp.eq.s32.totalorder %s26, 0
      %p53 = por %p51, %p52
      %s55 = sadd.s32 %s54, 1
      %p58 = scmp.eq.s32.totalorder %s20, 1
      %p59 = scmp.ne.s32.totalorder %s54, %s56
      %p60 = scmp.eq.s32.totalorder %s20, 0
      %p61 = por %p59, %p60
      %p62 = scmp.ne.s32.totalorder %s54, %s56
      %p63 = scmp.eq.s32.totalorder %s25, 1
      %p64 = por %p62, %p63
      %p65 = scmp.ne.s32.totalorder %s56, %s57
      %p66 = scmp.eq.s32.totalorder %s25, 0
      %p67 = por %p65, %p66
      %p68 = scmp.ne.s32.totalorder %s56, %s57
      %p69 = scmp.eq.s32.totalorder %s26, 1
      %p70 = por %p68, %p69
      %p72 = scmp.ne.s32.totalorder %s57, %s71
      %p73 = scmp.eq.s32.totalorder %s26, 0
      %p74 = por %p72, %p73
      %s76 = sadd.s32 %s75, 1
      %p79 = scmp.eq.s32.totalorder %s20, 1
      %p80 = scmp.ne.s32.totalorder %s75, %s77
      %p81 = scmp.eq.s32.totalorder %s20, 0
      %p82 = por %p80, %p81
      %p83 = scmp.ne.s32.totalorder %s75, %s77
      %p84 = scmp.eq.s32.totalorder %s25, 1
      %p85 = por %p83, %p84
      %p86 = scmp.ne.s32.totalorder %s77, %s78
      %p87 = scmp.eq.s32.totalorder %s25, 0
      %p88 = por %p86, %p87
      %p89 = scmp.ne.s32.totalorder %s77, %s78
      %p90 = scmp.eq.s32.totalorder %s26, 1
      %p91 = por %p89, %p90
      %p93 = scmp.ne.s32.totalorder %s78, %s92
      %p94 = scmp.eq.s32.totalorder %s26, 0
      %p95 = por %p93, %p94
      %s97 = sadd.s32 %s96, 1
      %p100 = scmp.eq.s32.totalorder %s20, 1
      %p101 = scmp.ne.s32.totalorder %s96, %s98
      %p102 = scmp.eq.s32.totalorder %s20, 0
      %p103 = por %p101, %p102
      %p104 = scmp.ne.s32.totalorder %s96, %s98
      %p105 = scmp.eq.s32.totalorder %s25, 1
      %p106 = por %p104, %p105
      %p107 = scmp.ne.s32.totalorder %s98, %s99
      %p108 = scmp.eq.s32.totalorder %s25, 0
      %p109 = por %p107, %p108
      %p110 = scmp.ne.s32.totalorder %s98, %s99
      %p111 = scmp.eq.s32.totalorder %s26, 1
      %p112 = por %p110, %p111
      %p114 = scmp.ne.s32.totalorder %s99, %s113
      %p115 = scmp.eq.s32.totalorder %s26, 0
      %p116 = por %p114, %p115
      %s118 = sadd.s32 %s117, 1
      %p121 = scmp.eq.s32.totalorder %s20, 1
      %p122 = scmp.ne.s32.totalorder %s117, %s119
      %p123 = scmp.eq.s32.totalorder %s20, 0
      %p124 = por %p122, %p123
      %p125 = scmp.ne.s32.totalorder %s117, %s119
      %p126 = scmp.eq.s32.totalorder %s25, 1
      %p127 = por %p125, %p126
      %p128 = scmp.ne.s32.totalorder %s119, %s120
      %p129 = scmp.eq.s32.totalorder %s25, 0
      %p130 = por %p128, %p129
      %p131 = scmp.ne.s32.totalorder %s119, %s120
      %p132 = scmp.eq.s32.totalorder %s26, 1
      %p133 = por %p131, %p132
      %p135 = scmp.ne.s32.totalorder %s120, %s134
      %p136 = scmp.eq.s32.totalorder %s26, 0
      %p137 = por %p135, %p136
      %s139 = sadd.s32 %s138, 1
      %p142 = scmp.eq.s32.totalorder %s20, 1
      %p143 = scmp.ne.s32.totalorder %s138, %s140
      %p144 = scmp.eq.s32.totalorder %s20, 0
      %p145 = por %p143, %p144
      %p146 = scmp.ne.s32.totalorder %s138, %s140
      %p147 = scmp.eq.s32.totalorder %s25, 1
      %p148 = por %p146, %p147
      %p149 = scmp.ne.s32.totalorder %s140, %s141
      %p150 = scmp.eq.s32.totalorder %s25, 0
      %p151 = por %p149, %p150
      %p152 = scmp.ne.s32.totalorder %s140, %s141
      %p153 = scmp.eq.s32.totalorder %s26, 1
      %p154 = por %p152, %p153
      %p156 = scmp.ne.s32.totalorder %s141, %s155
      %p157 = scmp.eq.s32.totalorder %s26, 0
      %p158 = por %p156, %p157
      %s160 = sadd.s32 %s159, 1
      %p163 = scmp.eq.s32.totalorder %s20, 1
      %p164 = scmp.ne.s32.totalorder %s159, %s161
      %p165 = scmp.eq.s32.totalorder %s20, 0
      %p166 = por %p164, %p165
      %p167 = scmp.ne.s32.totalorder %s159, %s161
      %p168 = scmp.eq.s32.totalorder %s25, 1
      %p169 = por %p167, %p168
      %p170 = scmp.ne.s32.totalorder %s161, %s162
      %p171 = scmp.eq.s32.totalorder %s25, 0
      %p172 = por %p170, %p171
      %p173 = scmp.ne.s32.totalorder %s161, %s162
      %p174 = scmp.eq.s32.totalorder %s26, 1
      %p175 = por %p173, %p174
      %p177 = scmp.ne.s32.totalorder %s162, %s176
      %p178 = scmp.eq.s32.totalorder %s26, 0
      %p179 = por %p177, %p178
      %s181 = sadd.s32 %s180, 1
      %p184 = scmp.eq.s32.totalorder %s20, 1
      %p185 = scmp.ne.s32.totalorder %s180, %s182
      %p186 = scmp.eq.s32.totalorder %s20, 0
      %p187 = por %p185, %p186
      %p188 = scmp.ne.s32.totalorder %s180, %s182
      %p189 = scmp.eq.s32.totalorder %s25, 1
      %p190 = por %p188, %p189
      %p191 = scmp.ne.s32.totalorder %s182, %s183
      %p192 = scmp.eq.s32.totalorder %s25, 0
      %p193 = por %p191, %p192
      %p194 = scmp.ne.s32.totalorder %s182, %s183
      %p195 = scmp.eq.s32.totalorder %s26, 1
      %p196 = por %p194, %p195
      %p198 = scmp.ne.s32.totalorder %s183, %s197
      %p199 = scmp.eq.s32.totalorder %s26, 0
      %p200 = por %p198, %p199
      %s202 = sadd.s32 %s201, 1
      %p205 = scmp.eq.s32.totalorder %s20, 1
      %p206 = scmp.ne.s32.totalorder %s201, %s203
      %p207 = scmp.eq.s32.totalorder %s20, 0
      %p208 = por %p206, %p207
      %p209 = scmp.ne.s32.totalorder %s201, %s203
      %p210 = scmp.eq.s32.totalorder %s25, 1
      %p211 = por %p209, %p210
      %p212 = scmp.ne.s32.totalorder %s203, %s204
      %p213 = scmp.eq.s32.totalorder %s25, 0
      %p214 = por %p212, %p213
      %p215 = scmp.ne.s32.totalorder %s203, %s204
      %p216 = scmp.eq.s32.totalorder %s26, 1
      %p217 = por %p215, %p216
      %p219 = scmp.ne.s32.totalorder %s204, %s218
      %p220 = scmp.eq.s32.totalorder %s26, 0
      %p221 = por %p219, %p220
      %s223 = sadd.s32 %s222, 1
      %p226 = scmp.eq.s32.totalorder %s20, 1
      %p227 = scmp.ne.s32.totalorder %s222, %s224
      %p228 = scmp.eq.s32.totalorder %s20, 0
      %p229 = por %p227, %p228
      %p230 = scmp.ne.s32.totalorder %s222, %s224
      %p231 = scmp.eq.s32.totalorder %s25, 1
      %p232 = por %p230, %p231
      %p233 = scmp.ne.s32.totalorder %s224, %s225
      %p234 = scmp.eq.s32.totalorder %s25, 0
      %p235 = por %p233, %p234
      %p236 = scmp.ne.s32.totalorder %s224, %s225
      %p237 = scmp.eq.s32.totalorder %s26, 1
      %p238 = por %p236, %p237
      %p240 = scmp.ne.s32.totalorder %s225, %s239
      %p241 = scmp.eq.s32.totalorder %s26, 0
      %p242 = por %p240, %p241
      %s243 = ssub.s32 %s20, %s27
      %p244 = scmp.eq.s32.totalorder %s243, 0
      %s246 = sadd.s32 %s245, 1
      %s247 = scalar_select %p244, %s245, %s246
      %p250 = pneg %p244
      %p251 = scmp.eq.s32.totalorder %s20, 1
      %p252 = por %p250, %p251
      %p253 = scmp.ne.s32.totalorder %s245, %s248
      %p254 = scmp.eq.s32.totalorder %s20, 0
      %p255 = por %p253, %p254
      %p256 = scmp.ne.s32.totalorder %s245, %s248
      %p257 = scmp.eq.s32.totalorder %s25, 1
      %p258 = por %p256, %p257
      %p259 = scmp.ne.s32.totalorder %s248, %s249
      %p260 = scmp.eq.s32.totalorder %s25, 0
      %p261 = por %p259, %p260
      %p262 = scmp.ne.s32.totalorder %s248, %s249
      %p263 = scmp.eq.s32.totalorder %s26, 1
      %p264 = por %p262, %p263
      %p266 = scmp.ne.s32.totalorder %s249, %s265
      %p267 = scmp.eq.s32.totalorder %s26, 0
      %p268 = por %p266, %p267
      %p269 = scmp.le.s32.totalorder 1, %s20
      %p270 = scmp.lt.s32.totalorder %s20, 3
      %p271 = pnand %p269, %p270
      %p272 = pneg %p271
      // Predicated region
      $region9: #{tpu_custom_call.1} parent=5 // pred_check
        _
      $region10: #{tpu_custom_call.1} parent=5 // pred_check_branch
        %274 = sbr.rel (%p271) target = $region12
      $region11: #{tpu_custom_call.1} parent=5 // pred_region
        %s275 = ssub.s32 %s20, 1
        // Predicated region
        $region13: #{tpu_custom_call.1} parent=11 // pred_check
          %p276 = pneg %p67
        $region14: #{tpu_custom_call.1} parent=11 // pred_check_branch
          %278 = sbr.rel (%p276) target = $region16
        $region15: #{tpu_custom_call.1} parent=11 // pred_region
          _
        $region16: #{tpu_custom_call.1} parent=11 // pred_fallthru
          _
        // Predicated region
        $region17: #{tpu_custom_call.1} parent=11 // pred_check
          %p279 = pneg %p88
        $region18: #{tpu_custom_call.1} parent=11 // pred_check_branch
          %281 = sbr.rel (%p279) target = $region20
        $region19: #{tpu_custom_call.1} parent=11 // pred_region
          _
        $region20: #{tpu_custom_call.1} parent=11 // pred_fallthru
          _
        // Predicated region
        $region21: #{tpu_custom_call.1} parent=11 // pred_check
          %p282 = pneg %p109
        $region22: #{tpu_custom_call.1} parent=11 // pred_check_branch
          %284 = sbr.rel (%p282) target = $region24
        $region23: #{tpu_custom_call.1} parent=11 // pred_region
          %286 = vsyncadd [#allocation5], 0
          %s287 = sshll.u32 %s3, 4
          %s288 = int_to_ptr.hbm [resolvable:$true] %s287
          %s289 = sshll.u32 [#allocation4], 4
          %s290 = int_to_ptr.vmem [resolvable:$true] %s289
          %295 = dma.hbm_to_vmem [thread:$0]  %s288, 2048, %s290, [#allocation5], 256, 256, 16
        $region24: #{tpu_custom_call.1} parent=11 // pred_fallthru
          _
        // Predicated region
        $region25: #{tpu_custom_call.1} parent=11 // pred_check
          %p296 = pneg %p130
        $region26: #{tpu_custom_call.1} parent=11 // pred_check_branch
          %298 = sbr.rel (%p296) target = $region28
        $region27: #{tpu_custom_call.1} parent=11 // pred_region
          _
        $region28: #{tpu_custom_call.1} parent=11 // pred_fallthru
          _
        // Predicated region
        $region29: #{tpu_custom_call.1} parent=11 // pred_check
          %p299 = pneg %p151
        $region30: #{tpu_custom_call.1} parent=11 // pred_check_branch
          %301 = sbr.rel (%p299) target = $region32
        $region31: #{tpu_custom_call.1} parent=11 // pred_region
          _
        $region32: #{tpu_custom_call.1} parent=11 // pred_fallthru
          _
        // Predicated region
        $region33: #{tpu_custom_call.1} parent=11 // pred_check
          %p302 = pneg %p172
        $region34: #{tpu_custom_call.1} parent=11 // pred_check_branch
          %304 = sbr.rel (%p302) target = $region36
        $region35: #{tpu_custom_call.1} parent=11 // pred_region
          _
        $region36: #{tpu_custom_call.1} parent=11 // pred_fallthru
          _
        // Predicated region
        $region37: #{tpu_custom_call.1} parent=11 // pred_check
          %p305 = pneg %p193
        $region38: #{tpu_custom_call.1} parent=11 // pred_check_branch
          %307 = sbr.rel (%p305) target = $region40
        $region39: #{tpu_custom_call.1} parent=11 // pred_region
          _
        $region40: #{tpu_custom_call.1} parent=11 // pred_fallthru
          _
        // Predicated region
        $region41: #{tpu_custom_call.1} parent=11 // pred_check
          %p308 = pneg %p214
        $region42: #{tpu_custom_call.1} parent=11 // pred_check_branch
          %310 = sbr.rel (%p308) target = $region44
        $region43: #{tpu_custom_call.1} parent=11 // pred_region
          _
        $region44: #{tpu_custom_call.1} parent=11 // pred_fallthru
          _
        // Predicated region
        $region45: #{tpu_custom_call.1} parent=11 // pred_check
          %p311 = pneg %p235
        $region46: #{tpu_custom_call.1} parent=11 // pred_check_branch
          %313 = sbr.rel (%p311) target = $region48
        $region47: #{tpu_custom_call.1} parent=11 // pred_region
          _
        $region48: #{tpu_custom_call.1} parent=11 // pred_fallthru
          _
      $region12: #{tpu_custom_call.1} parent=5 // pred_fallthru
        _
      %p314 = scmp.lt.s32.totalorder %s20, 2
      // Predicated region
      $region49: #{tpu_custom_call.1} parent=5 // pred_check
        %p315 = pneg %p314
      $region50: #{tpu_custom_call.1} parent=5 // pred_check_branch
        %317 = sbr.rel (%p315) target = $region52
      $region51: #{tpu_custom_call.1} parent=5 // pred_region
        // Predicated region
        $region53: #{tpu_custom_call.1} parent=51 // pred_check
          %p318 = pneg %p40
        $region54: #{tpu_custom_call.1} parent=51 // pred_check_branch
          %320 = sbr.rel (%p318) target = $region56
        $region55: #{tpu_custom_call.1} parent=51 // pred_region
          %p321 = scmp.lt.s32.totalorder %s20, 1
          %s322 = scalar_select %p321, %s20, 1
          %s323 = smul.addr %s322, 32
          %s324 = smul.addr %s323, 8
          %s325 = scalar_lea.vmem %s0, %s324
        $region56: #{tpu_custom_call.1} parent=51 // pred_fallthru
          _
      $region52: #{tpu_custom_call.1} parent=5 // pred_fallthru
        _
      %p326 = scmp.le.s32.totalorder 1, %s20
      %p327 = scmp.lt.s32.totalorder %s20, 3
      %p328 = pnand %p326, %p327
      %p329 = pneg %p328
      // Predicated region
      $region57: #{tpu_custom_call.1} parent=5 // pred_check
        _
      $region58: #{tpu_custom_call.1} parent=5 // pred_check_branch
        %331 = sbr.rel (%p328) target = $region60
      $region59: #{tpu_custom_call.1} parent=5 // pred_region
        %s332 = ssub.s32 %s20, 1
        // Predicated region
        $region61: #{tpu_custom_call.1} parent=59 // pred_check
          %p333 = pneg %p109
        $region62: #{tpu_custom_call.1} parent=59 // pred_check_branch
          %335 = sbr.rel (%p333) target = $region64
        $region63: #{tpu_custom_call.1} parent=59 // pred_region
          %337 = dma.done [#allocation5], 2048
        $region64: #{tpu_custom_call.1} parent=59 // pred_fallthru
          _
        %p338 = scmp.lt.s32.totalorder %s25, 1
        %s339 = scalar_select %p338, %s25, 1
        %s340 = smul.addr %s339, 32
        %s341 = smul.addr %s340, 8
        %s342 = scalar_lea.vmem %s0, %s341
        %p343 = pneg %p46
        %p344 = pneg %p43
        %p345 = pneg %p67
        %p346 = pneg %p64
        %p347 = pneg %p88
        %p348 = pneg %p85
        %p349 = pneg %p109
        %p350 = pneg %p106
        %p351 = pneg %p130
        %p352 = pneg %p127
        %p353 = pneg %p151
        %p354 = pneg %p148
        %p355 = pneg %p172
        %p356 = pneg %p169
        %p357 = pneg %p193
        %p358 = pneg %p190
        %p359 = pneg %p214
        %p360 = pneg %p211
        %p361 = pneg %p235
        %p362 = pneg %p232
        %p363 = pneg %p261
        %p364 = pneg %p258
        %s365 = sand.u32 %s248, 1
        %s366 = scalar_lea.sflag [#allocation6], %s365
        %s367 = sand.u32 %s248, 1
        %s368 = smul.addr %s367, 256
        %s369 = scalar_lea.vmem [#allocation7], %s368
        %p370 = scmp.lt.s32.totalorder %s25, 1
        %s371 = scalar_select %p370, %s25, 1
        %s372 = smul.addr %s371, 32
        %s373 = smul.addr %s372, 8
        %s374 = scalar_lea.vmem %s0, %s373
        %v375 = vld [vmem:[%s374] sm:$0xff]
        %v376 = vld [vmem:[%s374 + $0x8] sm:$0xff]
        %v377 = vld [vmem:[%s374 + $0x10] sm:$0xff]
        %v378 = vld [vmem:[%s374 + $0x18] sm:$0xff]
        %v379 = vld [vmem:[%s374 + $0x20] sm:$0xff]
        %v380 = vld [vmem:[%s374 + $0x28] sm:$0xff]
        %v381 = vld [vmem:[%s374 + $0x30] sm:$0xff]
        %v382 = vld [vmem:[%s374 + $0x38] sm:$0xff]
        %v383 = vld [vmem:[%s374 + $0x40] sm:$0xff]
        %v384 = vld [vmem:[%s374 + $0x48] sm:$0xff]
        %v385 = vld [vmem:[%s374 + $0x50] sm:$0xff]
        %v386 = vld [vmem:[%s374 + $0x58] sm:$0xff]
        %v387 = vld [vmem:[%s374 + $0x60] sm:$0xff]
        %v388 = vld [vmem:[%s374 + $0x68] sm:$0xff]
        %v389 = vld [vmem:[%s374 + $0x70] sm:$0xff]
        %v390 = vld [vmem:[%s374 + $0x78] sm:$0xff]
        %v391 = vld [vmem:[%s374 + $0x80] sm:$0xff]
        %v392 = vld [vmem:[%s374 + $0x88] sm:$0xff]
        %v393 = vld [vmem:[%s374 + $0x90] sm:$0xff]
        %v394 = vld [vmem:[%s374 + $0x98] sm:$0xff]
        %v395 = vld [vmem:[%s374 + $0xa0] sm:$0xff]
        %v396 = vld [vmem:[%s374 + $0xa8] sm:$0xff]
        %v397 = vld [vmem:[%s374 + $0xb0] sm:$0xff]
        %v398 = vld [vmem:[%s374 + $0xb8] sm:$0xff]
        %v399 = vld [vmem:[%s374 + $0xc0] sm:$0xff]
        %v400 = vld [vmem:[%s374 + $0xc8] sm:$0xff]
        %v401 = vld [vmem:[%s374 + $0xd0] sm:$0xff]
        %v402 = vld [vmem:[%s374 + $0xd8] sm:$0xff]
        %v403 = vld [vmem:[%s374 + $0xe0] sm:$0xff]
        %v404 = vld [vmem:[%s374 + $0xe8] sm:$0xff]
        %v405 = vld [vmem:[%s374 + $0xf0] sm:$0xff]
        %v406 = vld [vmem:[%s374 + $0xf8] sm:$0xff]
        %407 = vst [vmem:[#allocation2] sm:$0xff] 0.0
        %408 = vst [vmem:[#allocation2 + $0x8] sm:$0xff] 0.0
        %409 = vst [vmem:[#allocation2 + $0x10] sm:$0xff] 0.0
        %410 = vst [vmem:[#allocation2 + $0x18] sm:$0xff] 0.0
        %411 = vst [vmem:[#allocation2 + $0x120] sm:$0xff] 0.0
        %412 = vst [vmem:[#allocation2 + $0x128] sm:$0xff] 0.0
        %413 = vst [vmem:[#allocation2 + $0x130] sm:$0xff] 0.0
        %414 = vst [vmem:[#allocation2 + $0x138] sm:$0xff] 0.0
        %415 = vst [vmem:[#allocation2 + $0x20] sm:$0xff] %v375
        %416 = vst [vmem:[#allocation2 + $0x28] sm:$0xff] %v376
        %417 = vst [vmem:[#allocation2 + $0x30] sm:$0xff] %v377
        %418 = vst [vmem:[#allocation2 + $0x38] sm:$0xff] %v378
        %419 = vst [vmem:[#allocation2 + $0x40] sm:$0xff] %v379
        %420 = vst [vmem:[#allocation2 + $0x48] sm:$0xff] %v380
        %421 = vst [vmem:[#allocation2 + $0x50] sm:$0xff] %v381
        %422 = vst [vmem:[#allocation2 + $0x58] sm:$0xff] %v382
        %423 = vst [vmem:[#allocation2 + $0x60] sm:$0xff] %v383
        %424 = vst [vmem:[#allocation2 + $0x68] sm:$0xff] %v384
        %425 = vst [vmem:[#allocation2 + $0x70] sm:$0xff] %v385
        %426 = vst [vmem:[#allocation2 + $0x78] sm:$0xff] %v386
        %427 = vst [vmem:[#allocation2 + $0x80] sm:$0xff] %v387
        %428 = vst [vmem:[#allocation2 + $0x88] sm:$0xff] %v388
        %429 = vst [vmem:[#allocation2 + $0x90] sm:$0xff] %v389
        %430 = vst [vmem:[#allocation2 + $0x98] sm:$0xff] %v390
        %431 = vst [vmem:[#allocation2 + $0xa0] sm:$0xff] %v391
        %432 = vst [vmem:[#allocation2 + $0xa8] sm:$0xff] %v392
        %433 = vst [vmem:[#allocation2 + $0xb0] sm:$0xff] %v393
        %434 = vst [vmem:[#allocation2 + $0xb8] sm:$0xff] %v394
        %435 = vst [vmem:[#allocation2 + $0xc0] sm:$0xff] %v395
        %436 = vst [vmem:[#allocation2 + $0xc8] sm:$0xff] %v396
        %437 = vst [vmem:[#allocation2 + $0xd0] sm:$0xff] %v397
        %438 = vst [vmem:[#allocation2 + $0xd8] sm:$0xff] %v398
        %439 = vst [vmem:[#allocation2 + $0xe0] sm:$0xff] %v399
        %440 = vst [vmem:[#allocation2 + $0xe8] sm:$0xff] %v400
        %441 = vst [vmem:[#allocation2 + $0xf0] sm:$0xff] %v401
        %442 = vst [vmem:[#allocation2 + $0xf8] sm:$0xff] %v402
        %443 = vst [vmem:[#allocation2 + $0x100] sm:$0xff] %v403
        %444 = vst [vmem:[#allocation2 + $0x108] sm:$0xff] %v404
        %445 = vst [vmem:[#allocation2 + $0x110] sm:$0xff] %v405
        %446 = vst [vmem:[#allocation2 + $0x118] sm:$0xff] %v406
        %v447 = vld [vmem:[#allocation2] sm:$0xff]
        %v448 = vld [vmem:[#allocation2 + $0x8] sm:$0xff]
        %v449 = vld [vmem:[#allocation2 + $0x10] sm:$0xff]
        %v450 = vld [vmem:[#allocation2 + $0x18] sm:$0xff]
        %v451 = vld [vmem:[#allocation2 + $0x20] sm:$0xff]
        %v452 = vld [vmem:[#allocation2 + $0x28] sm:$0xff]
        %v453 = vld [vmem:[#allocation2 + $0x30] sm:$0xff]
        %v454 = vld [vmem:[#allocation2 + $0x38] sm:$0xff]
        %v455 = vld [vmem:[#allocation2 + $0x40] sm:$0xff]
        %v456 = vld [vmem:[#allocation2 + $0x48] sm:$0xff]
        %v457 = vld [vmem:[#allocation2 + $0x50] sm:$0xff]
        %v458 = vld [vmem:[#allocation2 + $0x58] sm:$0xff]
        %v459 = vld [vmem:[#allocation2 + $0x60] sm:$0xff]
        %v460 = vld [vmem:[#allocation2 + $0x68] sm:$0xff]
        %v461 = vld [vmem:[#allocation2 + $0x70] sm:$0xff]
        %v462 = vld [vmem:[#allocation2 + $0x78] sm:$0xff]
        %v463 = vld [vmem:[#allocation2 + $0x80] sm:$0xff]
        %v464 = vld [vmem:[#allocation2 + $0x88] sm:$0xff]
        %v465 = vld [vmem:[#allocation2 + $0x90] sm:$0xff]
        %v466 = vld [vmem:[#allocation2 + $0x98] sm:$0xff]
        %v467 = vld [vmem:[#allocation2 + $0xa0] sm:$0xff]
        %v468 = vld [vmem:[#allocation2 + $0xa8] sm:$0xff]
        %v469 = vld [vmem:[#allocation2 + $0xb0] sm:$0xff]
        %v470 = vld [vmem:[#allocation2 + $0xb8] sm:$0xff]
        %v471 = vld [vmem:[#allocation2 + $0xc0] sm:$0xff]
        %v472 = vld [vmem:[#allocation2 + $0xc8] sm:$0xff]
        %v473 = vld [vmem:[#allocation2 + $0xd0] sm:$0xff]
        %v474 = vld [vmem:[#allocation2 + $0xd8] sm:$0xff]
        %v475 = vld [vmem:[#allocation2 + $0xe0] sm:$0xff]
        %v476 = vld [vmem:[#allocation2 + $0xe8] sm:$0xff]
        %v477 = vld [vmem:[#allocation2 + $0xf0] sm:$0xff]
        %v478 = vld [vmem:[#allocation2 + $0xf8] sm:$0xff]
        %v479 = vld [vmem:[%s1] sm:$0xff]
        %v480 = vld [vmem:[%s1 + $0x8] sm:$0xff]
        %v481 = vld [vmem:[%s1 + $0x10] sm:$0xff]
        %v482 = vld [vmem:[%s1 + $0x18] sm:$0xff]
        %v483 = vld [vmem:[%s1 + $0x20] sm:$0xff]
        %v484 = vld [vmem:[%s1 + $0x28] sm:$0xff]
        %v485 = vld [vmem:[%s1 + $0x30] sm:$0xff]
        %v486 = vld [vmem:[%s1 + $0x38] sm:$0xff]
        %v487 = vld [vmem:[%s1 + $0x40] sm:$0xff]
        %v488 = vld [vmem:[%s1 + $0x48] sm:$0xff]
        %v489 = vld [vmem:[%s1 + $0x50] sm:$0xff]
        %v490 = vld [vmem:[%s1 + $0x58] sm:$0xff]
        %v491 = vld [vmem:[%s1 + $0x60] sm:$0xff]
        %v492 = vld [vmem:[%s1 + $0x68] sm:$0xff]
        %v493 = vld [vmem:[%s1 + $0x70] sm:$0xff]
        %v494 = vld [vmem:[%s1 + $0x78] sm:$0xff]
        %v495 = vld [vmem:[%s1 + $0x80] sm:$0xff]
        %v496 = vld [vmem:[%s1 + $0x88] sm:$0xff]
        %v497 = vld [vmem:[%s1 + $0x90] sm:$0xff]
        %v498 = vld [vmem:[%s1 + $0x98] sm:$0xff]
        %v499 = vld [vmem:[%s1 + $0xa0] sm:$0xff]
        %v500 = vld [vmem:[%s1 + $0xa8] sm:$0xff]
        %v501 = vld [vmem:[%s1 + $0xb0] sm:$0xff]
        %v502 = vld [vmem:[%s1 + $0xb8] sm:$0xff]
        %v503 = vld [vmem:[%s1 + $0xc0] sm:$0xff]
        %v504 = vld [vmem:[%s1 + $0xc8] sm:$0xff]
        %v505 = vld [vmem:[%s1 + $0xd0] sm:$0xff]
        %v506 = vld [vmem:[%s1 + $0xd8] sm:$0xff]
        %v507 = vld [vmem:[%s1 + $0xe0] sm:$0xff]
        %v508 = vld [vmem:[%s1 + $0xe8] sm:$0xff]
        %v509 = vld [vmem:[%s1 + $0xf0] sm:$0xff]
        %v510 = vld [vmem:[%s1 + $0xf8] sm:$0xff]
        %s511 = scalar_lea.vmem %s1, 256
        %v512 = vld [vmem:[%s511] sm:$0xff]
        %v513 = vld [vmem:[%s511 + $0x8] sm:$0xff]
        %v514 = vld [vmem:[%s511 + $0x10] sm:$0xff]
        %v515 = vld [vmem:[%s511 + $0x18] sm:$0xff]
        %v516 = vld [vmem:[%s511 + $0x20] sm:$0xff]
        %v517 = vld [vmem:[%s511 + $0x28] sm:$0xff]
        %v518 = vld [vmem:[%s511 + $0x30] sm:$0xff]
        %v519 = vld [vmem:[%s511 + $0x38] sm:$0xff]
        %v520 = vld [vmem:[%s511 + $0x40] sm:$0xff]
        %v521 = vld [vmem:[%s511 + $0x48] sm:$0xff]
        %v522 = vld [vmem:[%s511 + $0x50] sm:$0xff]
        %v523 = vld [vmem:[%s511 + $0x58] sm:$0xff]
        %v524 = vld [vmem:[%s511 + $0x60] sm:$0xff]
        %v525 = vld [vmem:[%s511 + $0x68] sm:$0xff]
        %v526 = vld [vmem:[%s511 + $0x70] sm:$0xff]
        %v527 = vld [vmem:[%s511 + $0x78] sm:$0xff]
        %v528 = vld [vmem:[%s511 + $0x80] sm:$0xff]
        %v529 = vld [vmem:[%s511 + $0x88] sm:$0xff]
        %v530 = vld [vmem:[%s511 + $0x90] sm:$0xff]
        %v531 = vld [vmem:[%s511 + $0x98] sm:$0xff]
        %v532 = vld [vmem:[%s511 + $0xa0] sm:$0xff]
        %v533 = vld [vmem:[%s511 + $0xa8] sm:$0xff]
        %v534 = vld [vmem:[%s511 + $0xb0] sm:$0xff]
        %v535 = vld [vmem:[%s511 + $0xb8] sm:$0xff]
        %v536 = vld [vmem:[%s511 + $0xc0] sm:$0xff]
        %v537 = vld [vmem:[%s511 + $0xc8] sm:$0xff]
        %v538 = vld [vmem:[%s511 + $0xd0] sm:$0xff]
        %v539 = vld [vmem:[%s511 + $0xd8] sm:$0xff]
        %v540 = vld [vmem:[%s511 + $0xe0] sm:$0xff]
        %v541 = vld [vmem:[%s511 + $0xe8] sm:$0xff]
        %v542 = vld [vmem:[%s511 + $0xf0] sm:$0xff]
        %v543 = vld [vmem:[%s511 + $0xf8] sm:$0xff]
        %544 = vmatpush.msra.mxu0 %v527
        %545 = vmatpush.msra.mxu0 %v526
        %546 = vmatpush.msra.mxu0 %v525
        %547 = vmatpush.msra.mxu0 %v524
        %548 = vmatpush.msra.mxu0 %v523
        %549 = vmatpush.msra.mxu0 %v522
        %550 = vmatpush.msra.mxu0 %v521
        %551 = vmatpush.msra.mxu0 %v520
        %552 = vmatpush.msra.mxu0 %v519
        %553 = vmatpush.msra.mxu0 %v518
        %554 = vmatpush.msra.mxu0 %v517
        %555 = vmatpush.msra.mxu0 %v516
        %556 = vmatpush.msra.mxu0 %v515
        %557 = vmatpush.msra.mxu0 %v514
        %558 = vmatpush.msra.mxu0 %v513
        %559 = vmatpush.msra.mxu0 %v512
        %560 = vmatmul.f32.gmra.mxu0 %v375
        %v561 = vpop.f32.mrf.mxu0
        %v562 = vadd.f32 0.0, %v561
        %563 = vmatmul.f32.gmra.mxu0 %v377
        %v564 = vpop.f32.mrf.mxu0
        %v565 = vadd.f32 0.0, %v564
        %566 = vmatmul.f32.gmra.mxu0 %v379
        %v567 = vpop.f32.mrf.mxu0
        %v568 = vadd.f32 0.0, %v567
        %569 = vmatmul.f32.gmra.mxu0 %v381
        %v570 = vpop.f32.mrf.mxu0
        %v571 = vadd.f32 0.0, %v570
        %572 = vmatmul.f32.gmra.mxu0 %v383
        %v573 = vpop.f32.mrf.mxu0
        %v574 = vadd.f32 0.0, %v573
        %575 = vmatmul.f32.gmra.mxu0 %v385
        %v576 = vpop.f32.mrf.mxu0
        %v577 = vadd.f32 0.0, %v576
        %578 = vmatmul.f32.gmra.mxu0 %v387
        %v579 = vpop.f32.mrf.mxu0
        %v580 = vadd.f32 0.0, %v579
        %581 = vmatmul.f32.gmra.mxu0 %v389
        %v582 = vpop.f32.mrf.mxu0
        %v583 = vadd.f32 0.0, %v582
        %584 = vmatmul.f32.gmra.mxu0 %v391
        %v585 = vpop.f32.mrf.mxu0
        %v586 = vadd.f32 0.0, %v585
        %587 = vmatmul.f32.gmra.mxu0 %v393
        %v588 = vpop.f32.mrf.mxu0
        %v589 = vadd.f32 0.0, %v588
        %590 = vmatmul.f32.gmra.mxu0 %v395
        %v591 = vpop.f32.mrf.mxu0
        %v592 = vadd.f32 0.0, %v591
        %593 = vmatmul.f32.gmra.mxu0 %v397
        %v594 = vpop.f32.mrf.mxu0
        %v595 = vadd.f32 0.0, %v594
        %596 = vmatmul.f32.gmra.mxu0 %v399
        %v597 = vpop.f32.mrf.mxu0
        %v598 = vadd.f32 0.0, %v597
        %599 = vmatmul.f32.gmra.mxu0 %v401
        %v600 = vpop.f32.mrf.mxu0
        %v601 = vadd.f32 0.0, %v600
        %602 = vmatmul.f32.gmra.mxu0 %v403
        %v603 = vpop.f32.mrf.mxu0
        %v604 = vadd.f32 0.0, %v603
        %605 = vmatmul.f32.gmra.mxu0 %v405
        %v606 = vpop.f32.mrf.mxu0
        %v607 = vadd.f32 0.0, %v606
        %608 = vdwg.mxu0
        %609 = vmatpush.msra.mxu0 %v543
        %610 = vmatpush.msra.mxu0 %v542
        %611 = vmatpush.msra.mxu0 %v541
        %612 = vmatpush.msra.mxu0 %v540
        %613 = vmatpush.msra.mxu0 %v539
        %614 = vmatpush.msra.mxu0 %v538
        %615 = vmatpush.msra.mxu0 %v537
        %616 = vmatpush.msra.mxu0 %v536
        %617 = vmatpush.msra.mxu0 %v535
        %618 = vmatpush.msra.mxu0 %v534
        %619 = vmatpush.msra.mxu0 %v533
        %620 = vmatpush.msra.mxu0 %v532
        %621 = vmatpush.msra.mxu0 %v531
        %622 = vmatpush.msra.mxu0 %v530
        %623 = vmatpush.msra.mxu0 %v529
        %624 = vmatpush.msra.mxu0 %v528
        %625 = vmatmul.f32.gmra.mxu0 %v376
        %v626 = vpop.f32.mrf.mxu0
        %v627 = vadd.f32 %v562, %v626
        %628 = vmatmul.f32.gmra.mxu0 %v378
        %v629 = vpop.f32.mrf.mxu0
        %v630 = vadd.f32 %v565, %v629
        %631 = vmatmul.f32.gmra.mxu0 %v380
        %v632 = vpop.f32.mrf.mxu0
        %v633 = vadd.f32 %v568, %v632
        %634 = vmatmul.f32.gmra.mxu0 %v382
        %v635 = vpop.f32.mrf.mxu0
        %v636 = vadd.f32 %v571, %v635
        %637 = vmatmul.f32.gmra.mxu0 %v384
        %v638 = vpop.f32.mrf.mxu0
        %v639 = vadd.f32 %v574, %v638
        %640 = vmatmul.f32.gmra.mxu0 %v386
        %v641 = vpop.f32.mrf.mxu0
        %v642 = vadd.f32 %v577, %v641
        %643 = vmatmul.f32.gmra.mxu0 %v388
        %v644 = vpop.f32.mrf.mxu0
        %v645 = vadd.f32 %v580, %v644
        %646 = vmatmul.f32.gmra.mxu0 %v390
        %v647 = vpop.f32.mrf.mxu0
        %v648 = vadd.f32 %v583, %v647
        %649 = vmatmul.f32.gmra.mxu0 %v392
        %v650 = vpop.f32.mrf.mxu0
        %v651 = vadd.f32 %v586, %v650
        %652 = vmatmul.f32.gmra.mxu0 %v394
        %v653 = vpop.f32.mrf.mxu0
        %v654 = vadd.f32 %v589, %v653
        %655 = vmatmul.f32.gmra.mxu0 %v396
        %v656 = vpop.f32.mrf.mxu0
        %v657 = vadd.f32 %v592, %v656
        %658 = vmatmul.f32.gmra.mxu0 %v398
        %v659 = vpop.f32.mrf.mxu0
        %v660 = vadd.f32 %v595, %v659
        %661 = vmatmul.f32.gmra.mxu0 %v400
        %v662 = vpop.f32.mrf.mxu0
        %v663 = vadd.f32 %v598, %v662
        %664 = vmatmul.f32.gmra.mxu0 %v402
        %v665 = vpop.f32.mrf.mxu0
        %v666 = vadd.f32 %v601, %v665
        %667 = vmatmul.f32.gmra.mxu0 %v404
        %v668 = vpop.f32.mrf.mxu0
        %v669 = vadd.f32 %v604, %v668
        %670 = vmatmul.f32.gmra.mxu0 %v406
        %v671 = vpop.f32.mrf.mxu0
        %v672 = vadd.f32 %v607, %v671
        %673 = vdwg.mxu0
        %674 = vmatpush.msra.mxu0 %v494
        %675 = vmatpush.msra.mxu0 %v493
        %676 = vmatpush.msra.mxu0 %v492
        %677 = vmatpush.msra.mxu0 %v491
        %678 = vmatpush.msra.mxu0 %v490
        %679 = vmatpush.msra.mxu0 %v489
        %680 = vmatpush.msra.mxu0 %v488
        %681 = vmatpush.msra.mxu0 %v487
        %682 = vmatpush.msra.mxu0 %v486
        %683 = vmatpush.msra.mxu0 %v485
        %684 = vmatpush.msra.mxu0 %v484
        %685 = vmatpush.msra.mxu0 %v483
        %686 = vmatpush.msra.mxu0 %v482
        %687 = vmatpush.msra.mxu0 %v481
        %688 = vmatpush.msra.mxu0 %v480
        %689 = vmatpush.msra.mxu0 %v479
        %690 = vmatmul.f32.gmra.mxu0 %v447
        %v691 = vpop.f32.mrf.mxu0
        %v692 = vadd.f32 %v627, %v691
        %693 = vmatmul.f32.gmra.mxu0 %v449
        %v694 = vpop.f32.mrf.mxu0
        %v695 = vadd.f32 %v630, %v694
        %696 = vmatmul.f32.gmra.mxu0 %v451
        %v697 = vpop.f32.mrf.mxu0
        %v698 = vadd.f32 %v633, %v697
        %699 = vmatmul.f32.gmra.mxu0 %v453
        %v700 = vpop.f32.mrf.mxu0
        %v701 = vadd.f32 %v636, %v700
        %702 = vmatmul.f32.gmra.mxu0 %v455
        %v703 = vpop.f32.mrf.mxu0
        %v704 = vadd.f32 %v639, %v703
        %705 = vmatmul.f32.gmra.mxu0 %v457
        %v706 = vpop.f32.mrf.mxu0
        %v707 = vadd.f32 %v642, %v706
        %708 = vmatmul.f32.gmra.mxu0 %v459
        %v709 = vpop.f32.mrf.mxu0
        %v710 = vadd.f32 %v645, %v709
        %711 = vmatmul.f32.gmra.mxu0 %v461
        %v712 = vpop.f32.mrf.mxu0
        %v713 = vadd.f32 %v648, %v712
        %714 = vmatmul.f32.gmra.mxu0 %v463
        %v715 = vpop.f32.mrf.mxu0
        %v716 = vadd.f32 %v651, %v715
        %717 = vmatmul.f32.gmra.mxu0 %v465
        %v718 = vpop.f32.mrf.mxu0
        %v719 = vadd.f32 %v654, %v718
        %720 = vmatmul.f32.gmra.mxu0 %v467
        %v721 = vpop.f32.mrf.mxu0
        %v722 = vadd.f32 %v657, %v721
        %723 = vmatmul.f32.gmra.mxu0 %v469
        %v724 = vpop.f32.mrf.mxu0
        %v725 = vadd.f32 %v660, %v724
        %726 = vmatmul.f32.gmra.mxu0 %v471
        %v727 = vpop.f32.mrf.mxu0
        %v728 = vadd.f32 %v663, %v727
        %729 = vmatmul.f32.gmra.mxu0 %v473
        %v730 = vpop.f32.mrf.mxu0
        %v731 = vadd.f32 %v666, %v730
        %732 = vmatmul.f32.gmra.mxu0 %v475
        %v733 = vpop.f32.mrf.mxu0
        %v734 = vadd.f32 %v669, %v733
        %735 = vmatmul.f32.gmra.mxu0 %v477
        %v736 = vpop.f32.mrf.mxu0
        %v737 = vadd.f32 %v672, %v736
        %738 = vdwg.mxu0
        %739 = vmatpush.msra.mxu0 %v510
        %740 = vmatpush.msra.mxu0 %v509
        %741 = vmatpush.msra.mxu0 %v508
        %742 = vmatpush.msra.mxu0 %v507
        %743 = vmatpush.msra.mxu0 %v506
        %744 = vmatpush.msra.mxu0 %v505
        %745 = vmatpush.msra.mxu0 %v504
        %746 = vmatpush.msra.mxu0 %v503
        %747 = vmatpush.msra.mxu0 %v502
        %748 = vmatpush.msra.mxu0 %v501
        %749 = vmatpush.msra.mxu0 %v500
        %750 = vmatpush.msra.mxu0 %v499
        %751 = vmatpush.msra.mxu0 %v498
        %752 = vmatpush.msra.mxu0 %v497
        %753 = vmatpush.msra.mxu0 %v496
        %754 = vmatpush.msra.mxu0 %v495
        %755 = vmatmul.f32.gmra.mxu0 %v448
        %v756 = vpop.f32.mrf.mxu0
        %v757 = vadd.f32 %v692, %v756
        %758 = vmatmul.f32.gmra.mxu0 %v450
        %v759 = vpop.f32.mrf.mxu0
        %v760 = vadd.f32 %v695, %v759
        %761 = vmatmul.f32.gmra.mxu0 %v452
        %v762 = vpop.f32.mrf.mxu0
        %v763 = vadd.f32 %v698, %v762
        %764 = vmatmul.f32.gmra.mxu0 %v454
        %v765 = vpop.f32.mrf.mxu0
        %v766 = vadd.f32 %v701, %v765
        %767 = vmatmul.f32.gmra.mxu0 %v456
        %v768 = vpop.f32.mrf.mxu0
        %v769 = vadd.f32 %v704, %v768
        %770 = vmatmul.f32.gmra.mxu0 %v458
        %v771 = vpop.f32.mrf.mxu0
        %v772 = vadd.f32 %v707, %v771
        %773 = vmatmul.f32.gmra.mxu0 %v460
        %v774 = vpop.f32.mrf.mxu0
        %v775 = vadd.f32 %v710, %v774
        %776 = vmatmul.f32.gmra.mxu0 %v462
        %v777 = vpop.f32.mrf.mxu0
        %v778 = vadd.f32 %v713, %v777
        %779 = vmatmul.f32.gmra.mxu0 %v464
        %v780 = vpop.f32.mrf.mxu0
        %v781 = vadd.f32 %v716, %v780
        %782 = vmatmul.f32.gmra.mxu0 %v466
        %v783 = vpop.f32.mrf.mxu0
        %v784 = vadd.f32 %v719, %v783
        %785 = vmatmul.f32.gmra.mxu0 %v468
        %v786 = vpop.f32.mrf.mxu0
        %v787 = vadd.f32 %v722, %v786
        %788 = vmatmul.f32.gmra.mxu0 %v470
        %v789 = vpop.f32.mrf.mxu0
        %v790 = vadd.f32 %v725, %v789
        %791 = vmatmul.f32.gmra.mxu0 %v472
        %v792 = vpop.f32.mrf.mxu0
        %v793 = vadd.f32 %v728, %v792
        %794 = vmatmul.f32.gmra.mxu0 %v474
        %v795 = vpop.f32.mrf.mxu0
        %v796 = vadd.f32 %v731, %v795
        %797 = vmatmul.f32.gmra.mxu0 %v476
        %v798 = vpop.f32.mrf.mxu0
        %v799 = vadd.f32 %v734, %v798
        %800 = vmatmul.f32.gmra.mxu0 %v478
        %v801 = vpop.f32.mrf.mxu0
        %v802 = vadd.f32 %v737, %v801
        %803 = vdwg.mxu0
        %v804 = vld [vmem:[#allocation2 + $0x40] sm:$0xff]
        %v805 = vld [vmem:[#allocation2 + $0x48] sm:$0xff]
        %v806 = vld [vmem:[#allocation2 + $0x50] sm:$0xff]
        %v807 = vld [vmem:[#allocation2 + $0x58] sm:$0xff]
        %v808 = vld [vmem:[#allocation2 + $0x60] sm:$0xff]
        %v809 = vld [vmem:[#allocation2 + $0x68] sm:$0xff]
        %v810 = vld [vmem:[#allocation2 + $0x70] sm:$0xff]
        %v811 = vld [vmem:[#allocation2 + $0x78] sm:$0xff]
        %v812 = vld [vmem:[#allocation2 + $0x80] sm:$0xff]
        %v813 = vld [vmem:[#allocation2 + $0x88] sm:$0xff]
        %v814 = vld [vmem:[#allocation2 + $0x90] sm:$0xff]
        %v815 = vld [vmem:[#allocation2 + $0x98] sm:$0xff]
        %v816 = vld [vmem:[#allocation2 + $0xa0] sm:$0xff]
        %v817 = vld [vmem:[#allocation2 + $0xa8] sm:$0xff]
        %v818 = vld [vmem:[#allocation2 + $0xb0] sm:$0xff]
        %v819 = vld [vmem:[#allocation2 + $0xb8] sm:$0xff]
        %v820 = vld [vmem:[#allocation2 + $0xc0] sm:$0xff]
        %v821 = vld [vmem:[#allocation2 + $0xc8] sm:$0xff]
        %v822 = vld [vmem:[#allocation2 + $0xd0] sm:$0xff]
        %v823 = vld [vmem:[#allocation2 + $0xd8] sm:$0xff]
        %v824 = vld [vmem:[#allocation2 + $0xe0] sm:$0xff]
        %v825 = vld [vmem:[#allocation2 + $0xe8] sm:$0xff]
        %v826 = vld [vmem:[#allocation2 + $0xf0] sm:$0xff]
        %v827 = vld [vmem:[#allocation2 + $0xf8] sm:$0xff]
        %v828 = vld [vmem:[#allocation2 + $0x100] sm:$0xff]
        %v829 = vld [vmem:[#allocation2 + $0x108] sm:$0xff]
        %v830 = vld [vmem:[#allocation2 + $0x110] sm:$0xff]
        %v831 = vld [vmem:[#allocation2 + $0x118] sm:$0xff]
        %v832 = vld [vmem:[#allocation2 + $0x120] sm:$0xff]
        %v833 = vld [vmem:[#allocation2 + $0x128] sm:$0xff]
        %v834 = vld [vmem:[#allocation2 + $0x130] sm:$0xff]
        %v835 = vld [vmem:[#allocation2 + $0x138] sm:$0xff]
        %s836 = scalar_lea.vmem %s1, 512
        %v837 = vld [vmem:[%s836] sm:$0xff]
        %v838 = vld [vmem:[%s836 + $0x8] sm:$0xff]
        %v839 = vld [vmem:[%s836 + $0x10] sm:$0xff]
        %v840 = vld [vmem:[%s836 + $0x18] sm:$0xff]
        %v841 = vld [vmem:[%s836 + $0x20] sm:$0xff]
        %v842 = vld [vmem:[%s836 + $0x28] sm:$0xff]
        %v843 = vld [vmem:[%s836 + $0x30] sm:$0xff]
        %v844 = vld [vmem:[%s836 + $0x38] sm:$0xff]
        %v845 = vld [vmem:[%s836 + $0x40] sm:$0xff]
        %v846 = vld [vmem:[%s836 + $0x48] sm:$0xff]
        %v847 = vld [vmem:[%s836 + $0x50] sm:$0xff]
        %v848 = vld [vmem:[%s836 + $0x58] sm:$0xff]
        %v849 = vld [vmem:[%s836 + $0x60] sm:$0xff]
        %v850 = vld [vmem:[%s836 + $0x68] sm:$0xff]
        %v851 = vld [vmem:[%s836 + $0x70] sm:$0xff]
        %v852 = vld [vmem:[%s836 + $0x78] sm:$0xff]
        %v853 = vld [vmem:[%s836 + $0x80] sm:$0xff]
        %v854 = vld [vmem:[%s836 + $0x88] sm:$0xff]
        %v855 = vld [vmem:[%s836 + $0x90] sm:$0xff]
        %v856 = vld [vmem:[%s836 + $0x98] sm:$0xff]
        %v857 = vld [vmem:[%s836 + $0xa0] sm:$0xff]
        %v858 = vld [vmem:[%s836 + $0xa8] sm:$0xff]
        %v859 = vld [vmem:[%s836 + $0xb0] sm:$0xff]
        %v860 = vld [vmem:[%s836 + $0xb8] sm:$0xff]
        %v861 = vld [vmem:[%s836 + $0xc0] sm:$0xff]
        %v862 = vld [vmem:[%s836 + $0xc8] sm:$0xff]
        %v863 = vld [vmem:[%s836 + $0xd0] sm:$0xff]
        %v864 = vld [vmem:[%s836 + $0xd8] sm:$0xff]
        %v865 = vld [vmem:[%s836 + $0xe0] sm:$0xff]
        %v866 = vld [vmem:[%s836 + $0xe8] sm:$0xff]
        %v867 = vld [vmem:[%s836 + $0xf0] sm:$0xff]
        %v868 = vld [vmem:[%s836 + $0xf8] sm:$0xff]
        %869 = vmatpush.msra.mxu0 %v852
        %870 = vmatpush.msra.mxu0 %v851
        %871 = vmatpush.msra.mxu0 %v850
        %872 = vmatpush.msra.mxu0 %v849
        %873 = vmatpush.msra.mxu0 %v848
        %874 = vmatpush.msra.mxu0 %v847
        %875 = vmatpush.msra.mxu0 %v846
        %876 = vmatpush.msra.mxu0 %v845
        %877 = vmatpush.msra.mxu0 %v844
        %878 = vmatpush.msra.mxu0 %v843
        %879 = vmatpush.msra.mxu0 %v842
        %880 = vmatpush.msra.mxu0 %v841
        %881 = vmatpush.msra.mxu0 %v840
        %882 = vmatpush.msra.mxu0 %v839
        %883 = vmatpush.msra.mxu0 %v838
        %884 = vmatpush.msra.mxu0 %v837
        %885 = vmatmul.f32.gmra.mxu0 %v804
        %v886 = vpop.f32.mrf.mxu0
        %v887 = vadd.f32 0.0, %v886
        %888 = vmatmul.f32.gmra.mxu0 %v806
        %v889 = vpop.f32.mrf.mxu0
        %v890 = vadd.f32 0.0, %v889
        %891 = vmatmul.f32.gmra.mxu0 %v808
        %v892 = vpop.f32.mrf.mxu0
        %v893 = vadd.f32 0.0, %v892
        %894 = vmatmul.f32.gmra.mxu0 %v810
        %v895 = vpop.f32.mrf.mxu0
        %v896 = vadd.f32 0.0, %v895
        %897 = vmatmul.f32.gmra.mxu0 %v812
        %v898 = vpop.f32.mrf.mxu0
        %v899 = vadd.f32 0.0, %v898
        %900 = vmatmul.f32.gmra.mxu0 %v814
        %v901 = vpop.f32.mrf.mxu0
        %v902 = vadd.f32 0.0, %v901
        %903 = vmatmul.f32.gmra.mxu0 %v816
        %v904 = vpop.f32.mrf.mxu0
        %v905 = vadd.f32 0.0, %v904
        %906 = vmatmul.f32.gmra.mxu0 %v818
        %v907 = vpop.f32.mrf.mxu0
        %v908 = vadd.f32 0.0, %v907
        %909 = vmatmul.f32.gmra.mxu0 %v820
        %v910 = vpop.f32.mrf.mxu0
        %v911 = vadd.f32 0.0, %v910
        %912 = vmatmul.f32.gmra.mxu0 %v822
        %v913 = vpop.f32.mrf.mxu0
        %v914 = vadd.f32 0.0, %v913
        %915 = vmatmul.f32.gmra.mxu0 %v824
        %v916 = vpop.f32.mrf.mxu0
        %v917 = vadd.f32 0.0, %v916
        %918 = vmatmul.f32.gmra.mxu0 %v826
        %v919 = vpop.f32.mrf.mxu0
        %v920 = vadd.f32 0.0, %v919
        %921 = vmatmul.f32.gmra.mxu0 %v828
        %v922 = vpop.f32.mrf.mxu0
        %v923 = vadd.f32 0.0, %v922
        %924 = vmatmul.f32.gmra.mxu0 %v830
        %v925 = vpop.f32.mrf.mxu0
        %v926 = vadd.f32 0.0, %v925
        %927 = vmatmul.f32.gmra.mxu0 %v832
        %v928 = vpop.f32.mrf.mxu0
        %v929 = vadd.f32 0.0, %v928
        %930 = vmatmul.f32.gmra.mxu0 %v834
        %v931 = vpop.f32.mrf.mxu0
        %v932 = vadd.f32 0.0, %v931
        %933 = vdwg.mxu0
        %934 = vmatpush.msra.mxu0 %v868
        %935 = vmatpush.msra.mxu0 %v867
        %936 = vmatpush.msra.mxu0 %v866
        %937 = vmatpush.msra.mxu0 %v865
        %938 = vmatpush.msra.mxu0 %v864
        %939 = vmatpush.msra.mxu0 %v863
        %940 = vmatpush.msra.mxu0 %v862
        %941 = vmatpush.msra.mxu0 %v861
        %942 = vmatpush.msra.mxu0 %v860
        %943 = vmatpush.msra.mxu0 %v859
        %944 = vmatpush.msra.mxu0 %v858
        %945 = vmatpush.msra.mxu0 %v857
        %946 = vmatpush.msra.mxu0 %v856
        %947 = vmatpush.msra.mxu0 %v855
        %948 = vmatpush.msra.mxu0 %v854
        %949 = vmatpush.msra.mxu0 %v853
        %950 = vmatmul.f32.gmra.mxu0 %v805
        %v951 = vpop.f32.mrf.mxu0
        %v952 = vadd.f32 %v887, %v951
        %953 = vmatmul.f32.gmra.mxu0 %v807
        %v954 = vpop.f32.mrf.mxu0
        %v955 = vadd.f32 %v890, %v954
        %956 = vmatmul.f32.gmra.mxu0 %v809
        %v957 = vpop.f32.mrf.mxu0
        %v958 = vadd.f32 %v893, %v957
        %959 = vmatmul.f32.gmra.mxu0 %v811
        %v960 = vpop.f32.mrf.mxu0
        %v961 = vadd.f32 %v896, %v960
        %962 = vmatmul.f32.gmra.mxu0 %v813
        %v963 = vpop.f32.mrf.mxu0
        %v964 = vadd.f32 %v899, %v963
        %965 = vmatmul.f32.gmra.mxu0 %v815
        %v966 = vpop.f32.mrf.mxu0
        %v967 = vadd.f32 %v902, %v966
        %968 = vmatmul.f32.gmra.mxu0 %v817
        %v969 = vpop.f32.mrf.mxu0
        %v970 = vadd.f32 %v905, %v969
        %971 = vmatmul.f32.gmra.mxu0 %v819
        %v972 = vpop.f32.mrf.mxu0
        %v973 = vadd.f32 %v908, %v972
        %974 = vmatmul.f32.gmra.mxu0 %v821
        %v975 = vpop.f32.mrf.mxu0
        %v976 = vadd.f32 %v911, %v975
        %977 = vmatmul.f32.gmra.mxu0 %v823
        %v978 = vpop.f32.mrf.mxu0
        %v979 = vadd.f32 %v914, %v978
        %980 = vmatmul.f32.gmra.mxu0 %v825
        %v981 = vpop.f32.mrf.mxu0
        %v982 = vadd.f32 %v917, %v981
        %983 = vmatmul.f32.gmra.mxu0 %v827
        %v984 = vpop.f32.mrf.mxu0
        %v985 = vadd.f32 %v920, %v984
        %986 = vmatmul.f32.gmra.mxu0 %v829
        %v987 = vpop.f32.mrf.mxu0
        %v988 = vadd.f32 %v923, %v987
        %989 = vmatmul.f32.gmra.mxu0 %v831
        %v990 = vpop.f32.mrf.mxu0
        %v991 = vadd.f32 %v926, %v990
        %992 = vmatmul.f32.gmra.mxu0 %v833
        %v993 = vpop.f32.mrf.mxu0
        %v994 = vadd.f32 %v929, %v993
        %995 = vmatmul.f32.gmra.mxu0 %v835
        %v996 = vpop.f32.mrf.mxu0
        %v997 = vadd.f32 %v932, %v996
        %998 = vdwg.mxu0
        %v999 = vadd.f32 %v757, %v952
        %v1000 = vadd.f32 %v760, %v955
        %v1001 = vadd.f32 %v763, %v958
        %v1002 = vadd.f32 %v766, %v961
        %v1003 = vadd.f32 %v769, %v964
        %v1004 = vadd.f32 %v772, %v967
        %v1005 = vadd.f32 %v775, %v970
        %v1006 = vadd.f32 %v778, %v973
        %v1007 = vadd.f32 %v781, %v976
        %v1008 = vadd.f32 %v784, %v979
        %v1009 = vadd.f32 %v787, %v982
        %v1010 = vadd.f32 %v790, %v985
        %v1011 = vadd.f32 %v793, %v988
        %v1012 = vadd.f32 %v796, %v991
        %v1013 = vadd.f32 %v799, %v994
        %v1014 = vadd.f32 %v802, %v997
        %v1015 = vld [vmem:[%s4] sm:$0x1]
        %v1017 = vperm.slane %v1015, 0
        %v1019 = vmul.f32 %v999, %v1017
        %v1020 = vmul.f32 %v1000, %v1017
        %v1021 = vmul.f32 %v1001, %v1017
        %v1022 = vmul.f32 %v1002, %v1017
        %v1023 = vmul.f32 %v1003, %v1017
        %v1024 = vmul.f32 %v1004, %v1017
        %v1025 = vmul.f32 %v1005, %v1017
        %v1026 = vmul.f32 %v1006, %v1017
        %v1027 = vmul.f32 %v1007, %v1017
        %v1028 = vmul.f32 %v1008, %v1017
        %v1029 = vmul.f32 %v1009, %v1017
        %v1030 = vmul.f32 %v1010, %v1017
        %v1031 = vmul.f32 %v1011, %v1017
        %v1032 = vmul.f32 %v1012, %v1017
        %v1033 = vmul.f32 %v1013, %v1017
        %v1034 = vmul.f32 %v1014, %v1017
        %v1035 = vld [vmem:[%s5] sm:$0x1]
        %v1037 = vperm.slane %v1035, 0
        %v1039 = vadd.f32 %v1019, %v1037
        %v1040 = vadd.f32 %v1020, %v1037
        %v1041 = vadd.f32 %v1021, %v1037
        %v1042 = vadd.f32 %v1022, %v1037
        %v1043 = vadd.f32 %v1023, %v1037
        %v1044 = vadd.f32 %v1024, %v1037
        %v1045 = vadd.f32 %v1025, %v1037
        %v1046 = vadd.f32 %v1026, %v1037
        %v1047 = vadd.f32 %v1027, %v1037
        %v1048 = vadd.f32 %v1028, %v1037
        %v1049 = vadd.f32 %v1029, %v1037
        %v1050 = vadd.f32 %v1030, %v1037
        %v1051 = vadd.f32 %v1031, %v1037
        %v1052 = vadd.f32 %v1032, %v1037
        %v1053 = vadd.f32 %v1033, %v1037
        %v1054 = vadd.f32 %v1034, %v1037
        %v1055 = vmax.f32 %v1039, 0.0
        %v1056 = vmax.f32 %v1040, 0.0
        %v1057 = vmax.f32 %v1041, 0.0
        %v1058 = vmax.f32 %v1042, 0.0
        %v1059 = vmax.f32 %v1043, 0.0
        %v1060 = vmax.f32 %v1044, 0.0
        %v1061 = vmax.f32 %v1045, 0.0
        %v1062 = vmax.f32 %v1046, 0.0
        %v1063 = vmax.f32 %v1047, 0.0
        %v1064 = vmax.f32 %v1048, 0.0
        %v1065 = vmax.f32 %v1049, 0.0
        %v1066 = vmax.f32 %v1050, 0.0
        %v1067 = vmax.f32 %v1051, 0.0
        %v1068 = vmax.f32 %v1052, 0.0
        %v1069 = vmax.f32 %v1053, 0.0
        %v1070 = vmax.f32 %v1054, 0.0
        %vm1071 = vcmask 588800
        %1072 = vst.msk [vmem:[#allocation3] sm:$0xff] %vm1071, 0.0
        %1073 = vst.msk [vmem:[#allocation3 + $0x8] sm:$0xff] %vm1071, 0.0
        %vm1074 = vcmask 582656
        %1075 = vst.msk [vmem:[#allocation3 + $0x10] sm:$0x3] %vm1074, 0.0
        %1076 = vst.msk [vmem:[#allocation3 + $0x18] sm:$0xff] %vm1071, 0.0
        %1077 = vst.msk [vmem:[#allocation3 + $0x20] sm:$0xff] %vm1071, 0.0
        %1078 = vst.msk [vmem:[#allocation3 + $0x28] sm:$0x3] %vm1074, 0.0
        %1079 = vst.msk [vmem:[#allocation3 + $0x30] sm:$0xff] %vm1071, 0.0
        %1080 = vst.msk [vmem:[#allocation3 + $0x38] sm:$0xff] %vm1071, 0.0
        %1081 = vst.msk [vmem:[#allocation3 + $0x40] sm:$0x3] %vm1074, 0.0
        %1082 = vst.msk [vmem:[#allocation3 + $0x48] sm:$0xff] %vm1071, 0.0
        %1083 = vst.msk [vmem:[#allocation3 + $0x50] sm:$0xff] %vm1071, 0.0
        %1084 = vst.msk [vmem:[#allocation3 + $0x58] sm:$0x3] %vm1074, 0.0
        %1085 = vst.msk [vmem:[#allocation3 + $0x60] sm:$0xff] %vm1071, 0.0
        %1086 = vst.msk [vmem:[#allocation3 + $0x68] sm:$0xff] %vm1071, 0.0
        %1087 = vst.msk [vmem:[#allocation3 + $0x70] sm:$0x3] %vm1074, 0.0
        %1088 = vst.msk [vmem:[#allocation3 + $0x78] sm:$0xff] %vm1071, 0.0
        %1089 = vst.msk [vmem:[#allocation3 + $0x80] sm:$0xff] %vm1071, 0.0
        %1090 = vst.msk [vmem:[#allocation3 + $0x88] sm:$0x3] %vm1074, 0.0
        %1091 = vst.msk [vmem:[#allocation3 + $0x90] sm:$0xff] %vm1071, 0.0
        %1092 = vst.msk [vmem:[#allocation3 + $0x98] sm:$0xff] %vm1071, 0.0
        %1093 = vst.msk [vmem:[#allocation3 + $0xa0] sm:$0x3] %vm1074, 0.0
        %1094 = vst.msk [vmem:[#allocation3 + $0xa8] sm:$0xff] %vm1071, 0.0
        %1095 = vst.msk [vmem:[#allocation3 + $0xb0] sm:$0xff] %vm1071, 0.0
        %1096 = vst.msk [vmem:[#allocation3 + $0xb8] sm:$0x3] %vm1074, 0.0
        %1113 = vrot.lane.b32.xlu0 %v1055, 4
        %v1114 = vpop.permute.xlu0 %1113
        %1115 = vrot.lane.b32.xlu0 %v1056, 4
        %v1116 = vpop.permute.xlu0 %1115
        %1117 = vrot.lane.b32.xlu0 %v1057, 4
        %v1118 = vpop.permute.xlu0 %1117
        %1119 = vrot.lane.b32.xlu0 %v1058, 4
        %v1120 = vpop.permute.xlu0 %1119
        %1121 = vrot.lane.b32.xlu0 %v1059, 4
        %v1122 = vpop.permute.xlu0 %1121
        %1123 = vrot.lane.b32.xlu0 %v1060, 4
        %v1124 = vpop.permute.xlu0 %1123
        %1125 = vrot.lane.b32.xlu0 %v1061, 4
        %v1126 = vpop.permute.xlu0 %1125
        %1127 = vrot.lane.b32.xlu0 %v1062, 4
        %v1128 = vpop.permute.xlu0 %1127
        %1129 = vrot.lane.b32.xlu0 %v1063, 4
        %v1130 = vpop.permute.xlu0 %1129
        %1131 = vrot.lane.b32.xlu0 %v1064, 4
        %v1132 = vpop.permute.xlu0 %1131
        %1133 = vrot.lane.b32.xlu0 %v1065, 4
        %v1134 = vpop.permute.xlu0 %1133
        %1135 = vrot.lane.b32.xlu0 %v1066, 4
        %v1136 = vpop.permute.xlu0 %1135
        %1137 = vrot.lane.b32.xlu0 %v1067, 4
        %v1138 = vpop.permute.xlu0 %1137
        %1139 = vrot.lane.b32.xlu0 %v1068, 4
        %v1140 = vpop.permute.xlu0 %1139
        %1141 = vrot.lane.b32.xlu0 %v1069, 4
        %v1142 = vpop.permute.xlu0 %1141
        %1143 = vrot.lane.b32.xlu0 %v1070, 4
        %v1144 = vpop.permute.xlu0 %1143
        %vm1161 = vcmask 556064
        %1162 = vst.msk [vmem:[#allocation3 + $0x1] sm:$0xff] %vm1161, %v1114
        %1163 = vst.msk [vmem:[#allocation3 + $0x9] sm:$0xff] %vm1161, %v1116
        %1164 = vst.msk [vmem:[#allocation3 + $0x19] sm:$0xff] %vm1161, %v1118
        %1165 = vst.msk [vmem:[#allocation3 + $0x21] sm:$0xff] %vm1161, %v1120
        %1166 = vst.msk [vmem:[#allocation3 + $0x31] sm:$0xff] %vm1161, %v1122
        %1167 = vst.msk [vmem:[#allocation3 + $0x39] sm:$0xff] %vm1161, %v1124
        %1168 = vst.msk [vmem:[#allocation3 + $0x49] sm:$0xff] %vm1161, %v1126
        %1169 = vst.msk [vmem:[#allocation3 + $0x51] sm:$0xff] %vm1161, %v1128
        %1170 = vst.msk [vmem:[#allocation3 + $0x61] sm:$0xff] %vm1161, %v1130
        %1171 = vst.msk [vmem:[#allocation3 + $0x69] sm:$0xff] %vm1161, %v1132
        %1172 = vst.msk [vmem:[#allocation3 + $0x79] sm:$0xff] %vm1161, %v1134
        %1173 = vst.msk [vmem:[#allocation3 + $0x81] sm:$0xff] %vm1161, %v1136
        %1174 = vst.msk [vmem:[#allocation3 + $0x91] sm:$0xff] %vm1161, %v1138
        %1175 = vst.msk [vmem:[#allocation3 + $0x99] sm:$0xff] %vm1161, %v1140
        %1176 = vst.msk [vmem:[#allocation3 + $0xa9] sm:$0xff] %vm1161, %v1142
        %1177 = vst.msk [vmem:[#allocation3 + $0xb1] sm:$0xff] %vm1161, %v1144
        %v1178 = vld [vmem:[#allocation3] sm:$0xff]
        %v1179 = vld [vmem:[#allocation3 + $0x8] sm:$0xff]
        %v1180 = vld [vmem:[#allocation3 + $0x18] sm:$0xff]
        %v1181 = vld [vmem:[#allocation3 + $0x20] sm:$0xff]
        %v1182 = vld [vmem:[#allocation3 + $0x30] sm:$0xff]
        %v1183 = vld [vmem:[#allocation3 + $0x38] sm:$0xff]
        %v1184 = vld [vmem:[#allocation3 + $0x48] sm:$0xff]
        %v1185 = vld [vmem:[#allocation3 + $0x50] sm:$0xff]
        %v1186 = vld [vmem:[#allocation3 + $0x60] sm:$0xff]
        %v1187 = vld [vmem:[#allocation3 + $0x68] sm:$0xff]
        %v1188 = vld [vmem:[#allocation3 + $0x78] sm:$0xff]
        %v1189 = vld [vmem:[#allocation3 + $0x80] sm:$0xff]
        %v1190 = vld [vmem:[#allocation3 + $0x90] sm:$0xff]
        %v1191 = vld [vmem:[#allocation3 + $0x98] sm:$0xff]
        %v1192 = vld [vmem:[#allocation3 + $0xa8] sm:$0xff]
        %v1193 = vld [vmem:[#allocation3 + $0xb0] sm:$0xff]
        %v1194 = vld [vmem:[%s2] sm:$0xff]
        %v1195 = vld [vmem:[%s2 + $0x8] sm:$0xff]
        %v1196 = vld [vmem:[%s2 + $0x10] sm:$0xff]
        %v1197 = vld [vmem:[%s2 + $0x18] sm:$0xff]
        %v1198 = vld [vmem:[%s2 + $0x20] sm:$0xff]
        %v1199 = vld [vmem:[%s2 + $0x28] sm:$0xff]
        %v1200 = vld [vmem:[%s2 + $0x30] sm:$0xff]
        %v1201 = vld [vmem:[%s2 + $0x38] sm:$0xff]
        %s1202 = scalar_lea.vmem %s2, 64
        %v1203 = vld [vmem:[%s1202] sm:$0xff]
        %v1204 = vld [vmem:[%s1202 + $0x8] sm:$0xff]
        %v1205 = vld [vmem:[%s1202 + $0x10] sm:$0xff]
        %v1206 = vld [vmem:[%s1202 + $0x18] sm:$0xff]
        %v1207 = vld [vmem:[%s1202 + $0x20] sm:$0xff]
        %v1208 = vld [vmem:[%s1202 + $0x28] sm:$0xff]
        %v1209 = vld [vmem:[%s1202 + $0x30] sm:$0xff]
        %v1210 = vld [vmem:[%s1202 + $0x38] sm:$0xff]
        %1227 = vrot.lane.b32.xlu0 %v1178, 124
        %v1228 = vpop.permute.xlu0 %1227
        %1229 = vrot.lane.b32.xlu0 %v1179, 124
        %v1230 = vpop.permute.xlu0 %1229
        %1231 = vrot.lane.b32.xlu0 %v1180, 124
        %v1232 = vpop.permute.xlu0 %1231
        %1233 = vrot.lane.b32.xlu0 %v1181, 124
        %v1234 = vpop.permute.xlu0 %1233
        %1235 = vrot.lane.b32.xlu0 %v1182, 124
        %v1236 = vpop.permute.xlu0 %1235
        %1237 = vrot.lane.b32.xlu0 %v1183, 124
        %v1238 = vpop.permute.xlu0 %1237
        %1239 = vrot.lane.b32.xlu0 %v1184, 124
        %v1240 = vpop.permute.xlu0 %1239
        %1241 = vrot.lane.b32.xlu0 %v1185, 124
        %v1242 = vpop.permute.xlu0 %1241
        %1243 = vrot.lane.b32.xlu0 %v1186, 124
        %v1244 = vpop.permute.xlu0 %1243
        %1245 = vrot.lane.b32.xlu0 %v1187, 124
        %v1246 = vpop.permute.xlu0 %1245
        %1247 = vrot.lane.b32.xlu0 %v1188, 124
        %v1248 = vpop.permute.xlu0 %1247
        %1249 = vrot.lane.b32.xlu0 %v1189, 124
        %v1250 = vpop.permute.xlu0 %1249
        %1251 = vrot.lane.b32.xlu0 %v1190, 124
        %v1252 = vpop.permute.xlu0 %1251
        %1253 = vrot.lane.b32.xlu0 %v1191, 124
        %v1254 = vpop.permute.xlu0 %1253
        %1255 = vrot.lane.b32.xlu0 %v1192, 124
        %v1256 = vpop.permute.xlu0 %1255
        %1257 = vrot.lane.b32.xlu0 %v1193, 124
        %v1258 = vpop.permute.xlu0 %1257
        %vm1259 = vcmask 523264
        %v1260 = vsel %vm1259, %v1228, 0
        %v1262 = vsel %vm1259, %v1230, 0
        %v1264 = vsel %vm1259, %v1232, 0
        %v1266 = vsel %vm1259, %v1234, 0
        %v1268 = vsel %vm1259, %v1236, 0
        %v1270 = vsel %vm1259, %v1238, 0
        %v1272 = vsel %vm1259, %v1240, 0
        %v1274 = vsel %vm1259, %v1242, 0
        %v1276 = vsel %vm1259, %v1244, 0
        %v1278 = vsel %vm1259, %v1246, 0
        %v1280 = vsel %vm1259, %v1248, 0
        %v1282 = vsel %vm1259, %v1250, 0
        %v1284 = vsel %vm1259, %v1252, 0
        %v1286 = vsel %vm1259, %v1254, 0
        %v1288 = vsel %vm1259, %v1256, 0
        %v1290 = vsel %vm1259, %v1258, 0
        %1292 = vmatpush.msra.mxu0 0.0
        %1293 = vmatpush.msra.mxu0 0.0
        %1294 = vmatpush.msra.mxu0 0.0
        %1295 = vmatpush.msra.mxu0 0.0
        %1296 = vmatpush.msra.mxu0 0.0
        %1297 = vmatpush.msra.mxu0 0.0
        %1298 = vmatpush.msra.mxu0 0.0
        %1299 = vmatpush.msra.mxu0 0.0
        %1300 = vmatpush.msra.mxu0 %v1210
        %1301 = vmatpush.msra.mxu0 %v1209
        %1302 = vmatpush.msra.mxu0 %v1208
        %1303 = vmatpush.msra.mxu0 %v1207
        %1304 = vmatpush.msra.mxu0 %v1206
        %1305 = vmatpush.msra.mxu0 %v1205
        %1306 = vmatpush.msra.mxu0 %v1204
        %1307 = vmatpush.msra.mxu0 %v1203
        %1308 = vmatmul.f32.gmra.mxu0 %v1260
        %v1309 = vpop.f32.mrf.mxu0
        %v1310 = vadd.f32 0.0, %v1309
        %1311 = vmatmul.f32.gmra.mxu0 %v1262
        %v1312 = vpop.f32.mrf.mxu0
        %v1313 = vadd.f32 0.0, %v1312
        %1314 = vmatmul.f32.gmra.mxu0 %v1264
        %v1315 = vpop.f32.mrf.mxu0
        %v1316 = vadd.f32 0.0, %v1315
        %1317 = vmatmul.f32.gmra.mxu0 %v1266
        %v1318 = vpop.f32.mrf.mxu0
        %v1319 = vadd.f32 0.0, %v1318
        %1320 = vmatmul.f32.gmra.mxu0 %v1268
        %v1321 = vpop.f32.mrf.mxu0
        %v1322 = vadd.f32 0.0, %v1321
        %1323 = vmatmul.f32.gmra.mxu0 %v1270
        %v1324 = vpop.f32.mrf.mxu0
        %v1325 = vadd.f32 0.0, %v1324
        %1326 = vmatmul.f32.gmra.mxu0 %v1272
        %v1327 = vpop.f32.mrf.mxu0
        %v1328 = vadd.f32 0.0, %v1327
        %1329 = vmatmul.f32.gmra.mxu0 %v1274
        %v1330 = vpop.f32.mrf.mxu0
        %v1331 = vadd.f32 0.0, %v1330
        %1332 = vmatmul.f32.gmra.mxu0 %v1276
        %v1333 = vpop.f32.mrf.mxu0
        %v1334 = vadd.f32 0.0, %v1333
        %1335 = vmatmul.f32.gmra.mxu0 %v1278
        %v1336 = vpop.f32.mrf.mxu0
        %v1337 = vadd.f32 0.0, %v1336
        %1338 = vmatmul.f32.gmra.mxu0 %v1280
        %v1339 = vpop.f32.mrf.mxu0
        %v1340 = vadd.f32 0.0, %v1339
        %1341 = vmatmul.f32.gmra.mxu0 %v1282
        %v1342 = vpop.f32.mrf.mxu0
        %v1343 = vadd.f32 0.0, %v1342
        %1344 = vmatmul.f32.gmra.mxu0 %v1284
        %v1345 = vpop.f32.mrf.mxu0
        %v1346 = vadd.f32 0.0, %v1345
        %1347 = vmatmul.f32.gmra.mxu0 %v1286
        %v1348 = vpop.f32.mrf.mxu0
        %v1349 = vadd.f32 0.0, %v1348
        %1350 = vmatmul.f32.gmra.mxu0 %v1288
        %v1351 = vpop.f32.mrf.mxu0
        %v1352 = vadd.f32 0.0, %v1351
        %1353 = vmatmul.f32.gmra.mxu0 %v1290
        %v1354 = vpop.f32.mrf.mxu0
        %v1355 = vadd.f32 0.0, %v1354
        %1356 = vdwg.mxu0
        %v1357 = vsel %vm1259, %v1178, 0
        %v1359 = vsel %vm1259, %v1179, 0
        %v1361 = vsel %vm1259, %v1180, 0
        %v1363 = vsel %vm1259, %v1181, 0
        %v1365 = vsel %vm1259, %v1182, 0
        %v1367 = vsel %vm1259, %v1183, 0
        %v1369 = vsel %vm1259, %v1184, 0
        %v1371 = vsel %vm1259, %v1185, 0
        %v1373 = vsel %vm1259, %v1186, 0
        %v1375 = vsel %vm1259, %v1187, 0
        %v1377 = vsel %vm1259, %v1188, 0
        %v1379 = vsel %vm1259, %v1189, 0
        %v1381 = vsel %vm1259, %v1190, 0
        %v1383 = vsel %vm1259, %v1191, 0
        %v1385 = vsel %vm1259, %v1192, 0
        %v1387 = vsel %vm1259, %v1193, 0
        %1389 = vmatpush.msra.mxu0 0.0
        %1390 = vmatpush.msra.mxu0 0.0
        %1391 = vmatpush.msra.mxu0 0.0
        %1392 = vmatpush.msra.mxu0 0.0
        %1393 = vmatpush.msra.mxu0 0.0
        %1394 = vmatpush.msra.mxu0 0.0
        %1395 = vmatpush.msra.mxu0 0.0
        %1396 = vmatpush.msra.mxu0 0.0
        %1397 = vmatpush.msra.mxu0 %v1201
        %1398 = vmatpush.msra.mxu0 %v1200
        %1399 = vmatpush.msra.mxu0 %v1199
        %1400 = vmatpush.msra.mxu0 %v1198
        %1401 = vmatpush.msra.mxu0 %v1197
        %1402 = vmatpush.msra.mxu0 %v1196
        %1403 = vmatpush.msra.mxu0 %v1195
        %1404 = vmatpush.msra.mxu0 %v1194
        %1405 = vmatmul.f32.gmra.mxu0 %v1357
        %v1406 = vpop.f32.mrf.mxu0
        %v1407 = vadd.f32 %v1310, %v1406
        %1408 = vmatmul.f32.gmra.mxu0 %v1359
        %v1409 = vpop.f32.mrf.mxu0
        %v1410 = vadd.f32 %v1313, %v1409
        %1411 = vmatmul.f32.gmra.mxu0 %v1361
        %v1412 = vpop.f32.mrf.mxu0
        %v1413 = vadd.f32 %v1316, %v1412
        %1414 = vmatmul.f32.gmra.mxu0 %v1363
        %v1415 = vpop.f32.mrf.mxu0
        %v1416 = vadd.f32 %v1319, %v1415
        %1417 = vmatmul.f32.gmra.mxu0 %v1365
        %v1418 = vpop.f32.mrf.mxu0
        %v1419 = vadd.f32 %v1322, %v1418
        %1420 = vmatmul.f32.gmra.mxu0 %v1367
        %v1421 = vpop.f32.mrf.mxu0
        %v1422 = vadd.f32 %v1325, %v1421
        %1423 = vmatmul.f32.gmra.mxu0 %v1369
        %v1424 = vpop.f32.mrf.mxu0
        %v1425 = vadd.f32 %v1328, %v1424
        %1426 = vmatmul.f32.gmra.mxu0 %v1371
        %v1427 = vpop.f32.mrf.mxu0
        %v1428 = vadd.f32 %v1331, %v1427
        %1429 = vmatmul.f32.gmra.mxu0 %v1373
        %v1430 = vpop.f32.mrf.mxu0
        %v1431 = vadd.f32 %v1334, %v1430
        %1432 = vmatmul.f32.gmra.mxu0 %v1375
        %v1433 = vpop.f32.mrf.mxu0
        %v1434 = vadd.f32 %v1337, %v1433
        %1435 = vmatmul.f32.gmra.mxu0 %v1377
        %v1436 = vpop.f32.mrf.mxu0
        %v1437 = vadd.f32 %v1340, %v1436
        %1438 = vmatmul.f32.gmra.mxu0 %v1379
        %v1439 = vpop.f32.mrf.mxu0
        %v1440 = vadd.f32 %v1343, %v1439
        %1441 = vmatmul.f32.gmra.mxu0 %v1381
        %v1442 = vpop.f32.mrf.mxu0
        %v1443 = vadd.f32 %v1346, %v1442
        %1444 = vmatmul.f32.gmra.mxu0 %v1383
        %v1445 = vpop.f32.mrf.mxu0
        %v1446 = vadd.f32 %v1349, %v1445
        %1447 = vmatmul.f32.gmra.mxu0 %v1385
        %v1448 = vpop.f32.mrf.mxu0
        %v1449 = vadd.f32 %v1352, %v1448
        %1450 = vmatmul.f32.gmra.mxu0 %v1387
        %v1451 = vpop.f32.mrf.mxu0
        %v1452 = vadd.f32 %v1355, %v1451
        %1453 = vdwg.mxu0
        %s1454 = scalar_lea.vmem %s2, 128
        %v1455 = vld [vmem:[%s1454] sm:$0xff]
        %v1456 = vld [vmem:[%s1454 + $0x8] sm:$0xff]
        %v1457 = vld [vmem:[%s1454 + $0x10] sm:$0xff]
        %v1458 = vld [vmem:[%s1454 + $0x18] sm:$0xff]
        %v1459 = vld [vmem:[%s1454 + $0x20] sm:$0xff]
        %v1460 = vld [vmem:[%s1454 + $0x28] sm:$0xff]
        %v1461 = vld [vmem:[%s1454 + $0x30] sm:$0xff]
        %v1462 = vld [vmem:[%s1454 + $0x38] sm:$0xff]
        %1463 = vrot.lane.b32.xlu0 %v1178, 120
        %v1464 = vpop.permute.xlu0 %1463
        %1465 = vrot.lane.b32.xlu0 %v1179, 120
        %v1466 = vpop.permute.xlu0 %1465
        %1467 = vrot.lane.b32.xlu0 %v1180, 120
        %v1468 = vpop.permute.xlu0 %1467
        %1469 = vrot.lane.b32.xlu0 %v1181, 120
        %v1470 = vpop.permute.xlu0 %1469
        %1471 = vrot.lane.b32.xlu0 %v1182, 120
        %v1472 = vpop.permute.xlu0 %1471
        %1473 = vrot.lane.b32.xlu0 %v1183, 120
        %v1474 = vpop.permute.xlu0 %1473
        %1475 = vrot.lane.b32.xlu0 %v1184, 120
        %v1476 = vpop.permute.xlu0 %1475
        %1477 = vrot.lane.b32.xlu0 %v1185, 120
        %v1478 = vpop.permute.xlu0 %1477
        %1479 = vrot.lane.b32.xlu0 %v1186, 120
        %v1480 = vpop.permute.xlu0 %1479
        %1481 = vrot.lane.b32.xlu0 %v1187, 120
        %v1482 = vpop.permute.xlu0 %1481
        %1483 = vrot.lane.b32.xlu0 %v1188, 120
        %v1484 = vpop.permute.xlu0 %1483
        %1485 = vrot.lane.b32.xlu0 %v1189, 120
        %v1486 = vpop.permute.xlu0 %1485
        %1487 = vrot.lane.b32.xlu0 %v1190, 120
        %v1488 = vpop.permute.xlu0 %1487
        %1489 = vrot.lane.b32.xlu0 %v1191, 120
        %v1490 = vpop.permute.xlu0 %1489
        %1491 = vrot.lane.b32.xlu0 %v1192, 120
        %v1492 = vpop.permute.xlu0 %1491
        %1493 = vrot.lane.b32.xlu0 %v1193, 120
        %v1494 = vpop.permute.xlu0 %1493
        %v1495 = vsel %vm1259, %v1464, 0
        %v1497 = vsel %vm1259, %v1466, 0
        %v1499 = vsel %vm1259, %v1468, 0
        %v1501 = vsel %vm1259, %v1470, 0
        %v1503 = vsel %vm1259, %v1472, 0
        %v1505 = vsel %vm1259, %v1474, 0
        %v1507 = vsel %vm1259, %v1476, 0
        %v1509 = vsel %vm1259, %v1478, 0
        %v1511 = vsel %vm1259, %v1480, 0
        %v1513 = vsel %vm1259, %v1482, 0
        %v1515 = vsel %vm1259, %v1484, 0
        %v1517 = vsel %vm1259, %v1486, 0
        %v1519 = vsel %vm1259, %v1488, 0
        %v1521 = vsel %vm1259, %v1490, 0
        %v1523 = vsel %vm1259, %v1492, 0
        %v1525 = vsel %vm1259, %v1494, 0
        %1527 = vmatpush.msra.mxu0 0.0
        %1528 = vmatpush.msra.mxu0 0.0
        %1529 = vmatpush.msra.mxu0 0.0
        %1530 = vmatpush.msra.mxu0 0.0
        %1531 = vmatpush.msra.mxu0 0.0
        %1532 = vmatpush.msra.mxu0 0.0
        %1533 = vmatpush.msra.mxu0 0.0
        %1534 = vmatpush.msra.mxu0 0.0
        %1535 = vmatpush.msra.mxu0 %v1462
        %1536 = vmatpush.msra.mxu0 %v1461
        %1537 = vmatpush.msra.mxu0 %v1460
        %1538 = vmatpush.msra.mxu0 %v1459
        %1539 = vmatpush.msra.mxu0 %v1458
        %1540 = vmatpush.msra.mxu0 %v1457
        %1541 = vmatpush.msra.mxu0 %v1456
        %1542 = vmatpush.msra.mxu0 %v1455
        %1543 = vmatmul.f32.gmra.mxu0 %v1495
        %v1544 = vpop.f32.mrf.mxu0
        %v1545 = vadd.f32 0.0, %v1544
        %1546 = vmatmul.f32.gmra.mxu0 %v1497
        %v1547 = vpop.f32.mrf.mxu0
        %v1548 = vadd.f32 0.0, %v1547
        %1549 = vmatmul.f32.gmra.mxu0 %v1499
        %v1550 = vpop.f32.mrf.mxu0
        %v1551 = vadd.f32 0.0, %v1550
        %1552 = vmatmul.f32.gmra.mxu0 %v1501
        %v1553 = vpop.f32.mrf.mxu0
        %v1554 = vadd.f32 0.0, %v1553
        %1555 = vmatmul.f32.gmra.mxu0 %v1503
        %v1556 = vpop.f32.mrf.mxu0
        %v1557 = vadd.f32 0.0, %v1556
        %1558 = vmatmul.f32.gmra.mxu0 %v1505
        %v1559 = vpop.f32.mrf.mxu0
        %v1560 = vadd.f32 0.0, %v1559
        %1561 = vmatmul.f32.gmra.mxu0 %v1507
        %v1562 = vpop.f32.mrf.mxu0
        %v1563 = vadd.f32 0.0, %v1562
        %1564 = vmatmul.f32.gmra.mxu0 %v1509
        %v1565 = vpop.f32.mrf.mxu0
        %v1566 = vadd.f32 0.0, %v1565
        %1567 = vmatmul.f32.gmra.mxu0 %v1511
        %v1568 = vpop.f32.mrf.mxu0
        %v1569 = vadd.f32 0.0, %v1568
        %1570 = vmatmul.f32.gmra.mxu0 %v1513
        %v1571 = vpop.f32.mrf.mxu0
        %v1572 = vadd.f32 0.0, %v1571
        %1573 = vmatmul.f32.gmra.mxu0 %v1515
        %v1574 = vpop.f32.mrf.mxu0
        %v1575 = vadd.f32 0.0, %v1574
        %1576 = vmatmul.f32.gmra.mxu0 %v1517
        %v1577 = vpop.f32.mrf.mxu0
        %v1578 = vadd.f32 0.0, %v1577
        %1579 = vmatmul.f32.gmra.mxu0 %v1519
        %v1580 = vpop.f32.mrf.mxu0
        %v1581 = vadd.f32 0.0, %v1580
        %1582 = vmatmul.f32.gmra.mxu0 %v1521
        %v1583 = vpop.f32.mrf.mxu0
        %v1584 = vadd.f32 0.0, %v1583
        %1585 = vmatmul.f32.gmra.mxu0 %v1523
        %v1586 = vpop.f32.mrf.mxu0
        %v1587 = vadd.f32 0.0, %v1586
        %1588 = vmatmul.f32.gmra.mxu0 %v1525
        %v1589 = vpop.f32.mrf.mxu0
        %v1590 = vadd.f32 0.0, %v1589
        %1591 = vdwg.mxu0
        %v1592 = vadd.f32 %v1407, %v1545
        %v1593 = vadd.f32 %v1410, %v1548
        %v1594 = vadd.f32 %v1413, %v1551
        %v1595 = vadd.f32 %v1416, %v1554
        %v1596 = vadd.f32 %v1419, %v1557
        %v1597 = vadd.f32 %v1422, %v1560
        %v1598 = vadd.f32 %v1425, %v1563
        %v1599 = vadd.f32 %v1428, %v1566
        %v1600 = vadd.f32 %v1431, %v1569
        %v1601 = vadd.f32 %v1434, %v1572
        %v1602 = vadd.f32 %v1437, %v1575
        %v1603 = vadd.f32 %v1440, %v1578
        %v1604 = vadd.f32 %v1443, %v1581
        %v1605 = vadd.f32 %v1446, %v1584
        %v1606 = vadd.f32 %v1449, %v1587
        %v1607 = vadd.f32 %v1452, %v1590
        %v1608 = vld [vmem:[#allocation3 + $0x1] sm:$0xff]
        %v1609 = vld [vmem:[#allocation3 + $0x9] sm:$0xff]
        %v1610 = vld [vmem:[#allocation3 + $0x19] sm:$0xff]
        %v1611 = vld [vmem:[#allocation3 + $0x21] sm:$0xff]
        %v1612 = vld [vmem:[#allocation3 + $0x31] sm:$0xff]
        %v1613 = vld [vmem:[#allocation3 + $0x39] sm:$0xff]
        %v1614 = vld [vmem:[#allocation3 + $0x49] sm:$0xff]
        %v1615 = vld [vmem:[#allocation3 + $0x51] sm:$0xff]
        %v1616 = vld [vmem:[#allocation3 + $0x61] sm:$0xff]
        %v1617 = vld [vmem:[#allocation3 + $0x69] sm:$0xff]
        %v1618 = vld [vmem:[#allocation3 + $0x79] sm:$0xff]
        %v1619 = vld [vmem:[#allocation3 + $0x81] sm:$0xff]
        %v1620 = vld [vmem:[#allocation3 + $0x91] sm:$0xff]
        %v1621 = vld [vmem:[#allocation3 + $0x99] sm:$0xff]
        %v1622 = vld [vmem:[#allocation3 + $0xa9] sm:$0xff]
        %v1623 = vld [vmem:[#allocation3 + $0xb1] sm:$0xff]
        %s1624 = scalar_lea.vmem %s2, 192
        %v1625 = vld [vmem:[%s1624] sm:$0xff]
        %v1626 = vld [vmem:[%s1624 + $0x8] sm:$0xff]
        %v1627 = vld [vmem:[%s1624 + $0x10] sm:$0xff]
        %v1628 = vld [vmem:[%s1624 + $0x18] sm:$0xff]
        %v1629 = vld [vmem:[%s1624 + $0x20] sm:$0xff]
        %v1630 = vld [vmem:[%s1624 + $0x28] sm:$0xff]
        %v1631 = vld [vmem:[%s1624 + $0x30] sm:$0xff]
        %v1632 = vld [vmem:[%s1624 + $0x38] sm:$0xff]
        %v1634 = vsel %vm1259, %v1608, 0
        %v1637 = vsel %vm1259, %v1609, 0
        %v1640 = vsel %vm1259, %v1610, 0
        %v1643 = vsel %vm1259, %v1611, 0
        %v1646 = vsel %vm1259, %v1612, 0
        %v1649 = vsel %vm1259, %v1613, 0
        %v1652 = vsel %vm1259, %v1614, 0
        %v1655 = vsel %vm1259, %v1615, 0
        %v1658 = vsel %vm1259, %v1616, 0
        %v1661 = vsel %vm1259, %v1617, 0
        %v1664 = vsel %vm1259, %v1618, 0
        %v1667 = vsel %vm1259, %v1619, 0
        %v1670 = vsel %vm1259, %v1620, 0
        %v1673 = vsel %vm1259, %v1621, 0
        %v1676 = vsel %vm1259, %v1622, 0
        %v1679 = vsel %vm1259, %v1623, 0
        %1681 = vmatpush.msra.mxu0 0.0
        %1682 = vmatpush.msra.mxu0 0.0
        %1683 = vmatpush.msra.mxu0 0.0
        %1684 = vmatpush.msra.mxu0 0.0
        %1685 = vmatpush.msra.mxu0 0.0
        %1686 = vmatpush.msra.mxu0 0.0
        %1687 = vmatpush.msra.mxu0 0.0
        %1688 = vmatpush.msra.mxu0 0.0
        %1689 = vmatpush.msra.mxu0 %v1632
        %1690 = vmatpush.msra.mxu0 %v1631
        %1691 = vmatpush.msra.mxu0 %v1630
        %1692 = vmatpush.msra.mxu0 %v1629
        %1693 = vmatpush.msra.mxu0 %v1628
        %1694 = vmatpush.msra.mxu0 %v1627
        %1695 = vmatpush.msra.mxu0 %v1626
        %1696 = vmatpush.msra.mxu0 %v1625
        %1697 = vmatmul.f32.gmra.mxu0 %v1634
        %v1698 = vpop.f32.mrf.mxu0
        %v1699 = vadd.f32 0.0, %v1698
        %1700 = vmatmul.f32.gmra.mxu0 %v1637
        %v1701 = vpop.f32.mrf.mxu0
        %v1702 = vadd.f32 0.0, %v1701
        %1703 = vmatmul.f32.gmra.mxu0 %v1640
        %v1704 = vpop.f32.mrf.mxu0
        %v1705 = vadd.f32 0.0, %v1704
        %1706 = vmatmul.f32.gmra.mxu0 %v1643
        %v1707 = vpop.f32.mrf.mxu0
        %v1708 = vadd.f32 0.0, %v1707
        %1709 = vmatmul.f32.gmra.mxu0 %v1646
        %v1710 = vpop.f32.mrf.mxu0
        %v1711 = vadd.f32 0.0, %v1710
        %1712 = vmatmul.f32.gmra.mxu0 %v1649
        %v1713 = vpop.f32.mrf.mxu0
        %v1714 = vadd.f32 0.0, %v1713
        %1715 = vmatmul.f32.gmra.mxu0 %v1652
        %v1716 = vpop.f32.mrf.mxu0
        %v1717 = vadd.f32 0.0, %v1716
        %1718 = vmatmul.f32.gmra.mxu0 %v1655
        %v1719 = vpop.f32.mrf.mxu0
        %v1720 = vadd.f32 0.0, %v1719
        %1721 = vmatmul.f32.gmra.mxu0 %v1658
        %v1722 = vpop.f32.mrf.mxu0
        %v1723 = vadd.f32 0.0, %v1722
        %1724 = vmatmul.f32.gmra.mxu0 %v1661
        %v1725 = vpop.f32.mrf.mxu0
        %v1726 = vadd.f32 0.0, %v1725
        %1727 = vmatmul.f32.gmra.mxu0 %v1664
        %v1728 = vpop.f32.mrf.mxu0
        %v1729 = vadd.f32 0.0, %v1728
        %1730 = vmatmul.f32.gmra.mxu0 %v1667
        %v1731 = vpop.f32.mrf.mxu0
        %v1732 = vadd.f32 0.0, %v1731
        %1733 = vmatmul.f32.gmra.mxu0 %v1670
        %v1734 = vpop.f32.mrf.mxu0
        %v1735 = vadd.f32 0.0, %v1734
        %1736 = vmatmul.f32.gmra.mxu0 %v1673
        %v1737 = vpop.f32.mrf.mxu0
        %v1738 = vadd.f32 0.0, %v1737
        %1739 = vmatmul.f32.gmra.mxu0 %v1676
        %v1740 = vpop.f32.mrf.mxu0
        %v1741 = vadd.f32 0.0, %v1740
        %1742 = vmatmul.f32.gmra.mxu0 %v1679
        %v1743 = vpop.f32.mrf.mxu0
        %v1744 = vadd.f32 0.0, %v1743
        %1745 = vdwg.mxu0
        %v1746 = vadd.f32 %v1592, %v1699
        %v1747 = vadd.f32 %v1593, %v1702
        %v1748 = vadd.f32 %v1594, %v1705
        %v1749 = vadd.f32 %v1595, %v1708
        %v1750 = vadd.f32 %v1596, %v1711
        %v1751 = vadd.f32 %v1597, %v1714
        %v1752 = vadd.f32 %v1598, %v1717
        %v1753 = vadd.f32 %v1599, %v1720
        %v1754 = vadd.f32 %v1600, %v1723
        %v1755 = vadd.f32 %v1601, %v1726
        %v1756 = vadd.f32 %v1602, %v1729
        %v1757 = vadd.f32 %v1603, %v1732
        %v1758 = vadd.f32 %v1604, %v1735
        %v1759 = vadd.f32 %v1605, %v1738
        %v1760 = vadd.f32 %v1606, %v1741
        %v1761 = vadd.f32 %v1607, %v1744
        %s1762 = scalar_lea.vmem %s2, 256
        %v1763 = vld [vmem:[%s1762] sm:$0xff]
        %v1764 = vld [vmem:[%s1762 + $0x8] sm:$0xff]
        %v1765 = vld [vmem:[%s1762 + $0x10] sm:$0xff]
        %v1766 = vld [vmem:[%s1762 + $0x18] sm:$0xff]
        %v1767 = vld [vmem:[%s1762 + $0x20] sm:$0xff]
        %v1768 = vld [vmem:[%s1762 + $0x28] sm:$0xff]
        %v1769 = vld [vmem:[%s1762 + $0x30] sm:$0xff]
        %v1770 = vld [vmem:[%s1762 + $0x38] sm:$0xff]
        %1771 = vrot.lane.b32.xlu0 %v1608, 124
        %v1772 = vpop.permute.xlu0 %1771
        %1773 = vrot.lane.b32.xlu0 %v1609, 124
        %v1774 = vpop.permute.xlu0 %1773
        %1775 = vrot.lane.b32.xlu0 %v1610, 124
        %v1776 = vpop.permute.xlu0 %1775
        %1777 = vrot.lane.b32.xlu0 %v1611, 124
        %v1778 = vpop.permute.xlu0 %1777
        %1779 = vrot.lane.b32.xlu0 %v1612, 124
        %v1780 = vpop.permute.xlu0 %1779
        %1781 = vrot.lane.b32.xlu0 %v1613, 124
        %v1782 = vpop.permute.xlu0 %1781
        %1783 = vrot.lane.b32.xlu0 %v1614, 124
        %v1784 = vpop.permute.xlu0 %1783
        %1785 = vrot.lane.b32.xlu0 %v1615, 124
        %v1786 = vpop.permute.xlu0 %1785
        %1787 = vrot.lane.b32.xlu0 %v1616, 124
        %v1788 = vpop.permute.xlu0 %1787
        %1789 = vrot.lane.b32.xlu0 %v1617, 124
        %v1790 = vpop.permute.xlu0 %1789
        %1791 = vrot.lane.b32.xlu0 %v1618, 124
        %v1792 = vpop.permute.xlu0 %1791
        %1793 = vrot.lane.b32.xlu0 %v1619, 124
        %v1794 = vpop.permute.xlu0 %1793
        %1795 = vrot.lane.b32.xlu0 %v1620, 124
        %v1796 = vpop.permute.xlu0 %1795
        %1797 = vrot.lane.b32.xlu0 %v1621, 124
        %v1798 = vpop.permute.xlu0 %1797
        %1799 = vrot.lane.b32.xlu0 %v1622, 124
        %v1800 = vpop.permute.xlu0 %1799
        %1801 = vrot.lane.b32.xlu0 %v1623, 124
        %v1802 = vpop.permute.xlu0 %1801
        %v1803 = vsel %vm1259, %v1772, 0
        %v1805 = vsel %vm1259, %v1774, 0
        %v1807 = vsel %vm1259, %v1776, 0
        %v1809 = vsel %vm1259, %v1778, 0
        %v1811 = vsel %vm1259, %v1780, 0
        %v1813 = vsel %vm1259, %v1782, 0
        %v1815 = vsel %vm1259, %v1784, 0
        %v1817 = vsel %vm1259, %v1786, 0
        %v1819 = vsel %vm1259, %v1788, 0
        %v1821 = vsel %vm1259, %v1790, 0
        %v1823 = vsel %vm1259, %v1792, 0
        %v1825 = vsel %vm1259, %v1794, 0
        %v1827 = vsel %vm1259, %v1796, 0
        %v1829 = vsel %vm1259, %v1798, 0
        %v1831 = vsel %vm1259, %v1800, 0
        %v1833 = vsel %vm1259, %v1802, 0
        %1835 = vmatpush.msra.mxu0 0.0
        %1836 = vmatpush.msra.mxu0 0.0
        %1837 = vmatpush.msra.mxu0 0.0
        %1838 = vmatpush.msra.mxu0 0.0
        %1839 = vmatpush.msra.mxu0 0.0
        %1840 = vmatpush.msra.mxu0 0.0
        %1841 = vmatpush.msra.mxu0 0.0
        %1842 = vmatpush.msra.mxu0 0.0
        %1843 = vmatpush.msra.mxu0 %v1770
        %1844 = vmatpush.msra.mxu0 %v1769
        %1845 = vmatpush.msra.mxu0 %v1768
        %1846 = vmatpush.msra.mxu0 %v1767
        %1847 = vmatpush.msra.mxu0 %v1766
        %1848 = vmatpush.msra.mxu0 %v1765
        %1849 = vmatpush.msra.mxu0 %v1764
        %1850 = vmatpush.msra.mxu0 %v1763
        %1851 = vmatmul.f32.gmra.mxu0 %v1803
        %v1852 = vpop.f32.mrf.mxu0
        %v1853 = vadd.f32 0.0, %v1852
        %1854 = vmatmul.f32.gmra.mxu0 %v1805
        %v1855 = vpop.f32.mrf.mxu0
        %v1856 = vadd.f32 0.0, %v1855
        %1857 = vmatmul.f32.gmra.mxu0 %v1807
        %v1858 = vpop.f32.mrf.mxu0
        %v1859 = vadd.f32 0.0, %v1858
        %1860 = vmatmul.f32.gmra.mxu0 %v1809
        %v1861 = vpop.f32.mrf.mxu0
        %v1862 = vadd.f32 0.0, %v1861
        %1863 = vmatmul.f32.gmra.mxu0 %v1811
        %v1864 = vpop.f32.mrf.mxu0
        %v1865 = vadd.f32 0.0, %v1864
        %1866 = vmatmul.f32.gmra.mxu0 %v1813
        %v1867 = vpop.f32.mrf.mxu0
        %v1868 = vadd.f32 0.0, %v1867
        %1869 = vmatmul.f32.gmra.mxu0 %v1815
        %v1870 = vpop.f32.mrf.mxu0
        %v1871 = vadd.f32 0.0, %v1870
        %1872 = vmatmul.f32.gmra.mxu0 %v1817
        %v1873 = vpop.f32.mrf.mxu0
        %v1874 = vadd.f32 0.0, %v1873
        %1875 = vmatmul.f32.gmra.mxu0 %v1819
        %v1876 = vpop.f32.mrf.mxu0
        %v1877 = vadd.f32 0.0, %v1876
        %1878 = vmatmul.f32.gmra.mxu0 %v1821
        %v1879 = vpop.f32.mrf.mxu0
        %v1880 = vadd.f32 0.0, %v1879
        %1881 = vmatmul.f32.gmra.mxu0 %v1823
        %v1882 = vpop.f32.mrf.mxu0
        %v1883 = vadd.f32 0.0, %v1882
        %1884 = vmatmul.f32.gmra.mxu0 %v1825
        %v1885 = vpop.f32.mrf.mxu0
        %v1886 = vadd.f32 0.0, %v1885
        %1887 = vmatmul.f32.gmra.mxu0 %v1827
        %v1888 = vpop.f32.mrf.mxu0
        %v1889 = vadd.f32 0.0, %v1888
        %1890 = vmatmul.f32.gmra.mxu0 %v1829
        %v1891 = vpop.f32.mrf.mxu0
        %v1892 = vadd.f32 0.0, %v1891
        %1893 = vmatmul.f32.gmra.mxu0 %v1831
        %v1894 = vpop.f32.mrf.mxu0
        %v1895 = vadd.f32 0.0, %v1894
        %1896 = vmatmul.f32.gmra.mxu0 %v1833
        %v1897 = vpop.f32.mrf.mxu0
        %v1898 = vadd.f32 0.0, %v1897
        %1899 = vdwg.mxu0
        %v1900 = vadd.f32 %v1746, %v1853
        %v1901 = vadd.f32 %v1747, %v1856
        %v1902 = vadd.f32 %v1748, %v1859
        %v1903 = vadd.f32 %v1749, %v1862
        %v1904 = vadd.f32 %v1750, %v1865
        %v1905 = vadd.f32 %v1751, %v1868
        %v1906 = vadd.f32 %v1752, %v1871
        %v1907 = vadd.f32 %v1753, %v1874
        %v1908 = vadd.f32 %v1754, %v1877
        %v1909 = vadd.f32 %v1755, %v1880
        %v1910 = vadd.f32 %v1756, %v1883
        %v1911 = vadd.f32 %v1757, %v1886
        %v1912 = vadd.f32 %v1758, %v1889
        %v1913 = vadd.f32 %v1759, %v1892
        %v1914 = vadd.f32 %v1760, %v1895
        %v1915 = vadd.f32 %v1761, %v1898
        %s1916 = scalar_lea.vmem %s2, 320
        %v1917 = vld [vmem:[%s1916] sm:$0xff]
        %v1918 = vld [vmem:[%s1916 + $0x8] sm:$0xff]
        %v1919 = vld [vmem:[%s1916 + $0x10] sm:$0xff]
        %v1920 = vld [vmem:[%s1916 + $0x18] sm:$0xff]
        %v1921 = vld [vmem:[%s1916 + $0x20] sm:$0xff]
        %v1922 = vld [vmem:[%s1916 + $0x28] sm:$0xff]
        %v1923 = vld [vmem:[%s1916 + $0x30] sm:$0xff]
        %v1924 = vld [vmem:[%s1916 + $0x38] sm:$0xff]
        %1925 = vrot.lane.b32.xlu0 %v1608, 120
        %v1926 = vpop.permute.xlu0 %1925
        %1927 = vrot.lane.b32.xlu0 %v1609, 120
        %v1928 = vpop.permute.xlu0 %1927
        %1929 = vrot.lane.b32.xlu0 %v1610, 120
        %v1930 = vpop.permute.xlu0 %1929
        %1931 = vrot.lane.b32.xlu0 %v1611, 120
        %v1932 = vpop.permute.xlu0 %1931
        %1933 = vrot.lane.b32.xlu0 %v1612, 120
        %v1934 = vpop.permute.xlu0 %1933
        %1935 = vrot.lane.b32.xlu0 %v1613, 120
        %v1936 = vpop.permute.xlu0 %1935
        %1937 = vrot.lane.b32.xlu0 %v1614, 120
        %v1938 = vpop.permute.xlu0 %1937
        %1939 = vrot.lane.b32.xlu0 %v1615, 120
        %v1940 = vpop.permute.xlu0 %1939
        %1941 = vrot.lane.b32.xlu0 %v1616, 120
        %v1942 = vpop.permute.xlu0 %1941
        %1943 = vrot.lane.b32.xlu0 %v1617, 120
        %v1944 = vpop.permute.xlu0 %1943
        %1945 = vrot.lane.b32.xlu0 %v1618, 120
        %v1946 = vpop.permute.xlu0 %1945
        %1947 = vrot.lane.b32.xlu0 %v1619, 120
        %v1948 = vpop.permute.xlu0 %1947
        %1949 = vrot.lane.b32.xlu0 %v1620, 120
        %v1950 = vpop.permute.xlu0 %1949
        %1951 = vrot.lane.b32.xlu0 %v1621, 120
        %v1952 = vpop.permute.xlu0 %1951
        %1953 = vrot.lane.b32.xlu0 %v1622, 120
        %v1954 = vpop.permute.xlu0 %1953
        %1955 = vrot.lane.b32.xlu0 %v1623, 120
        %v1956 = vpop.permute.xlu0 %1955
        %v1957 = vsel %vm1259, %v1926, 0
        %v1959 = vsel %vm1259, %v1928, 0
        %v1961 = vsel %vm1259, %v1930, 0
        %v1963 = vsel %vm1259, %v1932, 0
        %v1965 = vsel %vm1259, %v1934, 0
        %v1967 = vsel %vm1259, %v1936, 0
        %v1969 = vsel %vm1259, %v1938, 0
        %v1971 = vsel %vm1259, %v1940, 0
        %v1973 = vsel %vm1259, %v1942, 0
        %v1975 = vsel %vm1259, %v1944, 0
        %v1977 = vsel %vm1259, %v1946, 0
        %v1979 = vsel %vm1259, %v1948, 0
        %v1981 = vsel %vm1259, %v1950, 0
        %v1983 = vsel %vm1259, %v1952, 0
        %v1985 = vsel %vm1259, %v1954, 0
        %v1987 = vsel %vm1259, %v1956, 0
        %1989 = vmatpush.msra.mxu0 0.0
        %1990 = vmatpush.msra.mxu0 0.0
        %1991 = vmatpush.msra.mxu0 0.0
        %1992 = vmatpush.msra.mxu0 0.0
        %1993 = vmatpush.msra.mxu0 0.0
        %1994 = vmatpush.msra.mxu0 0.0
        %1995 = vmatpush.msra.mxu0 0.0
        %1996 = vmatpush.msra.mxu0 0.0
        %1997 = vmatpush.msra.mxu0 %v1924
        %1998 = vmatpush.msra.mxu0 %v1923
        %1999 = vmatpush.msra.mxu0 %v1922
        %2000 = vmatpush.msra.mxu0 %v1921
        %2001 = vmatpush.msra.mxu0 %v1920
        %2002 = vmatpush.msra.mxu0 %v1919
        %2003 = vmatpush.msra.mxu0 %v1918
        %2004 = vmatpush.msra.mxu0 %v1917
        %2005 = vmatmul.f32.gmra.mxu0 %v1957
        %v2006 = vpop.f32.mrf.mxu0
        %v2007 = vadd.f32 0.0, %v2006
        %2008 = vmatmul.f32.gmra.mxu0 %v1959
        %v2009 = vpop.f32.mrf.mxu0
        %v2010 = vadd.f32 0.0, %v2009
        %2011 = vmatmul.f32.gmra.mxu0 %v1961
        %v2012 = vpop.f32.mrf.mxu0
        %v2013 = vadd.f32 0.0, %v2012
        %2014 = vmatmul.f32.gmra.mxu0 %v1963
        %v2015 = vpop.f32.mrf.mxu0
        %v2016 = vadd.f32 0.0, %v2015
        %2017 = vmatmul.f32.gmra.mxu0 %v1965
        %v2018 = vpop.f32.mrf.mxu0
        %v2019 = vadd.f32 0.0, %v2018
        %2020 = vmatmul.f32.gmra.mxu0 %v1967
        %v2021 = vpop.f32.mrf.mxu0
        %v2022 = vadd.f32 0.0, %v2021
        %2023 = vmatmul.f32.gmra.mxu0 %v1969
        %v2024 = vpop.f32.mrf.mxu0
        %v2025 = vadd.f32 0.0, %v2024
        %2026 = vmatmul.f32.gmra.mxu0 %v1971
        %v2027 = vpop.f32.mrf.mxu0
        %v2028 = vadd.f32 0.0, %v2027
        %2029 = vmatmul.f32.gmra.mxu0 %v1973
        %v2030 = vpop.f32.mrf.mxu0
        %v2031 = vadd.f32 0.0, %v2030
        %2032 = vmatmul.f32.gmra.mxu0 %v1975
        %v2033 = vpop.f32.mrf.mxu0
        %v2034 = vadd.f32 0.0, %v2033
        %2035 = vmatmul.f32.gmra.mxu0 %v1977
        %v2036 = vpop.f32.mrf.mxu0
        %v2037 = vadd.f32 0.0, %v2036
        %2038 = vmatmul.f32.gmra.mxu0 %v1979
        %v2039 = vpop.f32.mrf.mxu0
        %v2040 = vadd.f32 0.0, %v2039
        %2041 = vmatmul.f32.gmra.mxu0 %v1981
        %v2042 = vpop.f32.mrf.mxu0
        %v2043 = vadd.f32 0.0, %v2042
        %2044 = vmatmul.f32.gmra.mxu0 %v1983
        %v2045 = vpop.f32.mrf.mxu0
        %v2046 = vadd.f32 0.0, %v2045
        %2047 = vmatmul.f32.gmra.mxu0 %v1985
        %v2048 = vpop.f32.mrf.mxu0
        %v2049 = vadd.f32 0.0, %v2048
        %2050 = vmatmul.f32.gmra.mxu0 %v1987
        %v2051 = vpop.f32.mrf.mxu0
        %v2052 = vadd.f32 0.0, %v2051
        %2053 = vdwg.mxu0
        %v2054 = vadd.f32 %v1900, %v2007
        %v2055 = vadd.f32 %v1901, %v2010
        %v2056 = vadd.f32 %v1902, %v2013
        %v2057 = vadd.f32 %v1903, %v2016
        %v2058 = vadd.f32 %v1904, %v2019
        %v2059 = vadd.f32 %v1905, %v2022
        %v2060 = vadd.f32 %v1906, %v2025
        %v2061 = vadd.f32 %v1907, %v2028
        %v2062 = vadd.f32 %v1908, %v2031
        %v2063 = vadd.f32 %v1909, %v2034
        %v2064 = vadd.f32 %v1910, %v2037
        %v2065 = vadd.f32 %v1911, %v2040
        %v2066 = vadd.f32 %v1912, %v2043
        %v2067 = vadd.f32 %v1913, %v2046
        %v2068 = vadd.f32 %v1914, %v2049
        %v2069 = vadd.f32 %v1915, %v2052
        %v2070 = vld [vmem:[#allocation3 + $0x2] sm:$0xff]
        %v2071 = vld [vmem:[#allocation3 + $0xa] sm:$0xff]
        %v2072 = vld [vmem:[#allocation3 + $0x1a] sm:$0xff]
        %v2073 = vld [vmem:[#allocation3 + $0x22] sm:$0xff]
        %v2074 = vld [vmem:[#allocation3 + $0x32] sm:$0xff]
        %v2075 = vld [vmem:[#allocation3 + $0x3a] sm:$0xff]
        %v2076 = vld [vmem:[#allocation3 + $0x4a] sm:$0xff]
        %v2077 = vld [vmem:[#allocation3 + $0x52] sm:$0xff]
        %v2078 = vld [vmem:[#allocation3 + $0x62] sm:$0xff]
        %v2079 = vld [vmem:[#allocation3 + $0x6a] sm:$0xff]
        %v2080 = vld [vmem:[#allocation3 + $0x7a] sm:$0xff]
        %v2081 = vld [vmem:[#allocation3 + $0x82] sm:$0xff]
        %v2082 = vld [vmem:[#allocation3 + $0x92] sm:$0xff]
        %v2083 = vld [vmem:[#allocation3 + $0x9a] sm:$0xff]
        %v2084 = vld [vmem:[#allocation3 + $0xaa] sm:$0xff]
        %v2085 = vld [vmem:[#allocation3 + $0xb2] sm:$0xff]
        %s2086 = scalar_lea.vmem %s2, 384
        %v2087 = vld [vmem:[%s2086] sm:$0xff]
        %v2088 = vld [vmem:[%s2086 + $0x8] sm:$0xff]
        %v2089 = vld [vmem:[%s2086 + $0x10] sm:$0xff]
        %v2090 = vld [vmem:[%s2086 + $0x18] sm:$0xff]
        %v2091 = vld [vmem:[%s2086 + $0x20] sm:$0xff]
        %v2092 = vld [vmem:[%s2086 + $0x28] sm:$0xff]
        %v2093 = vld [vmem:[%s2086 + $0x30] sm:$0xff]
        %v2094 = vld [vmem:[%s2086 + $0x38] sm:$0xff]
        %v2096 = vsel %vm1259, %v2070, 0
        %v2099 = vsel %vm1259, %v2071, 0
        %v2102 = vsel %vm1259, %v2072, 0
        %v2105 = vsel %vm1259, %v2073, 0
        %v2108 = vsel %vm1259, %v2074, 0
        %v2111 = vsel %vm1259, %v2075, 0
        %v2114 = vsel %vm1259, %v2076, 0
        %v2117 = vsel %vm1259, %v2077, 0
        %v2120 = vsel %vm1259, %v2078, 0
        %v2123 = vsel %vm1259, %v2079, 0
        %v2126 = vsel %vm1259, %v2080, 0
        %v2129 = vsel %vm1259, %v2081, 0
        %v2132 = vsel %vm1259, %v2082, 0
        %v2135 = vsel %vm1259, %v2083, 0
        %v2138 = vsel %vm1259, %v2084, 0
        %v2141 = vsel %vm1259, %v2085, 0
        %2143 = vmatpush.msra.mxu0 0.0
        %2144 = vmatpush.msra.mxu0 0.0
        %2145 = vmatpush.msra.mxu0 0.0
        %2146 = vmatpush.msra.mxu0 0.0
        %2147 = vmatpush.msra.mxu0 0.0
        %2148 = vmatpush.msra.mxu0 0.0
        %2149 = vmatpush.msra.mxu0 0.0
        %2150 = vmatpush.msra.mxu0 0.0
        %2151 = vmatpush.msra.mxu0 %v2094
        %2152 = vmatpush.msra.mxu0 %v2093
        %2153 = vmatpush.msra.mxu0 %v2092
        %2154 = vmatpush.msra.mxu0 %v2091
        %2155 = vmatpush.msra.mxu0 %v2090
        %2156 = vmatpush.msra.mxu0 %v2089
        %2157 = vmatpush.msra.mxu0 %v2088
        %2158 = vmatpush.msra.mxu0 %v2087
        %2159 = vmatmul.f32.gmra.mxu0 %v2096
        %v2160 = vpop.f32.mrf.mxu0
        %v2161 = vadd.f32 0.0, %v2160
        %2162 = vmatmul.f32.gmra.mxu0 %v2099
        %v2163 = vpop.f32.mrf.mxu0
        %v2164 = vadd.f32 0.0, %v2163
        %2165 = vmatmul.f32.gmra.mxu0 %v2102
        %v2166 = vpop.f32.mrf.mxu0
        %v2167 = vadd.f32 0.0, %v2166
        %2168 = vmatmul.f32.gmra.mxu0 %v2105
        %v2169 = vpop.f32.mrf.mxu0
        %v2170 = vadd.f32 0.0, %v2169
        %2171 = vmatmul.f32.gmra.mxu0 %v2108
        %v2172 = vpop.f32.mrf.mxu0
        %v2173 = vadd.f32 0.0, %v2172
        %2174 = vmatmul.f32.gmra.mxu0 %v2111
        %v2175 = vpop.f32.mrf.mxu0
        %v2176 = vadd.f32 0.0, %v2175
        %2177 = vmatmul.f32.gmra.mxu0 %v2114
        %v2178 = vpop.f32.mrf.mxu0
        %v2179 = vadd.f32 0.0, %v2178
        %2180 = vmatmul.f32.gmra.mxu0 %v2117
        %v2181 = vpop.f32.mrf.mxu0
        %v2182 = vadd.f32 0.0, %v2181
        %2183 = vmatmul.f32.gmra.mxu0 %v2120
        %v2184 = vpop.f32.mrf.mxu0
        %v2185 = vadd.f32 0.0, %v2184
        %2186 = vmatmul.f32.gmra.mxu0 %v2123
        %v2187 = vpop.f32.mrf.mxu0
        %v2188 = vadd.f32 0.0, %v2187
        %2189 = vmatmul.f32.gmra.mxu0 %v2126
        %v2190 = vpop.f32.mrf.mxu0
        %v2191 = vadd.f32 0.0, %v2190
        %2192 = vmatmul.f32.gmra.mxu0 %v2129
        %v2193 = vpop.f32.mrf.mxu0
        %v2194 = vadd.f32 0.0, %v2193
        %2195 = vmatmul.f32.gmra.mxu0 %v2132
        %v2196 = vpop.f32.mrf.mxu0
        %v2197 = vadd.f32 0.0, %v2196
        %2198 = vmatmul.f32.gmra.mxu0 %v2135
        %v2199 = vpop.f32.mrf.mxu0
        %v2200 = vadd.f32 0.0, %v2199
        %2201 = vmatmul.f32.gmra.mxu0 %v2138
        %v2202 = vpop.f32.mrf.mxu0
        %v2203 = vadd.f32 0.0, %v2202
        %2204 = vmatmul.f32.gmra.mxu0 %v2141
        %v2205 = vpop.f32.mrf.mxu0
        %v2206 = vadd.f32 0.0, %v2205
        %2207 = vdwg.mxu0
        %v2208 = vadd.f32 %v2054, %v2161
        %v2209 = vadd.f32 %v2055, %v2164
        %v2210 = vadd.f32 %v2056, %v2167
        %v2211 = vadd.f32 %v2057, %v2170
        %v2212 = vadd.f32 %v2058, %v2173
        %v2213 = vadd.f32 %v2059, %v2176
        %v2214 = vadd.f32 %v2060, %v2179
        %v2215 = vadd.f32 %v2061, %v2182
        %v2216 = vadd.f32 %v2062, %v2185
        %v2217 = vadd.f32 %v2063, %v2188
        %v2218 = vadd.f32 %v2064, %v2191
        %v2219 = vadd.f32 %v2065, %v2194
        %v2220 = vadd.f32 %v2066, %v2197
        %v2221 = vadd.f32 %v2067, %v2200
        %v2222 = vadd.f32 %v2068, %v2203
        %v2223 = vadd.f32 %v2069, %v2206
        %s2224 = scalar_lea.vmem %s2, 448
        %v2225 = vld [vmem:[%s2224] sm:$0xff]
        %v2226 = vld [vmem:[%s2224 + $0x8] sm:$0xff]
        %v2227 = vld [vmem:[%s2224 + $0x10] sm:$0xff]
        %v2228 = vld [vmem:[%s2224 + $0x18] sm:$0xff]
        %v2229 = vld [vmem:[%s2224 + $0x20] sm:$0xff]
        %v2230 = vld [vmem:[%s2224 + $0x28] sm:$0xff]
        %v2231 = vld [vmem:[%s2224 + $0x30] sm:$0xff]
        %v2232 = vld [vmem:[%s2224 + $0x38] sm:$0xff]
        %2233 = vrot.lane.b32.xlu0 %v2070, 124
        %v2234 = vpop.permute.xlu0 %2233
        %2235 = vrot.lane.b32.xlu0 %v2071, 124
        %v2236 = vpop.permute.xlu0 %2235
        %2237 = vrot.lane.b32.xlu0 %v2072, 124
        %v2238 = vpop.permute.xlu0 %2237
        %2239 = vrot.lane.b32.xlu0 %v2073, 124
        %v2240 = vpop.permute.xlu0 %2239
        %2241 = vrot.lane.b32.xlu0 %v2074, 124
        %v2242 = vpop.permute.xlu0 %2241
        %2243 = vrot.lane.b32.xlu0 %v2075, 124
        %v2244 = vpop.permute.xlu0 %2243
        %2245 = vrot.lane.b32.xlu0 %v2076, 124
        %v2246 = vpop.permute.xlu0 %2245
        %2247 = vrot.lane.b32.xlu0 %v2077, 124
        %v2248 = vpop.permute.xlu0 %2247
        %2249 = vrot.lane.b32.xlu0 %v2078, 124
        %v2250 = vpop.permute.xlu0 %2249
        %2251 = vrot.lane.b32.xlu0 %v2079, 124
        %v2252 = vpop.permute.xlu0 %2251
        %2253 = vrot.lane.b32.xlu0 %v2080, 124
        %v2254 = vpop.permute.xlu0 %2253
        %2255 = vrot.lane.b32.xlu0 %v2081, 124
        %v2256 = vpop.permute.xlu0 %2255
        %2257 = vrot.lane.b32.xlu0 %v2082, 124
        %v2258 = vpop.permute.xlu0 %2257
        %2259 = vrot.lane.b32.xlu0 %v2083, 124
        %v2260 = vpop.permute.xlu0 %2259
        %2261 = vrot.lane.b32.xlu0 %v2084, 124
        %v2262 = vpop.permute.xlu0 %2261
        %2263 = vrot.lane.b32.xlu0 %v2085, 124
        %v2264 = vpop.permute.xlu0 %2263
        %v2265 = vsel %vm1259, %v2234, 0
        %v2267 = vsel %vm1259, %v2236, 0
        %v2269 = vsel %vm1259, %v2238, 0
        %v2271 = vsel %vm1259, %v2240, 0
        %v2273 = vsel %vm1259, %v2242, 0
        %v2275 = vsel %vm1259, %v2244, 0
        %v2277 = vsel %vm1259, %v2246, 0
        %v2279 = vsel %vm1259, %v2248, 0
        %v2281 = vsel %vm1259, %v2250, 0
        %v2283 = vsel %vm1259, %v2252, 0
        %v2285 = vsel %vm1259, %v2254, 0
        %v2287 = vsel %vm1259, %v2256, 0
        %v2289 = vsel %vm1259, %v2258, 0
        %v2291 = vsel %vm1259, %v2260, 0
        %v2293 = vsel %vm1259, %v2262, 0
        %v2295 = vsel %vm1259, %v2264, 0
        %2297 = vmatpush.msra.mxu0 0.0
        %2298 = vmatpush.msra.mxu0 0.0
        %2299 = vmatpush.msra.mxu0 0.0
        %2300 = vmatpush.msra.mxu0 0.0
        %2301 = vmatpush.msra.mxu0 0.0
        %2302 = vmatpush.msra.mxu0 0.0
        %2303 = vmatpush.msra.mxu0 0.0
        %2304 = vmatpush.msra.mxu0 0.0
        %2305 = vmatpush.msra.mxu0 %v2232
        %2306 = vmatpush.msra.mxu0 %v2231
        %2307 = vmatpush.msra.mxu0 %v2230
        %2308 = vmatpush.msra.mxu0 %v2229
        %2309 = vmatpush.msra.mxu0 %v2228
        %2310 = vmatpush.msra.mxu0 %v2227
        %2311 = vmatpush.msra.mxu0 %v2226
        %2312 = vmatpush.msra.mxu0 %v2225
        %2313 = vmatmul.f32.gmra.mxu0 %v2265
        %v2314 = vpop.f32.mrf.mxu0
        %v2315 = vadd.f32 0.0, %v2314
        %2316 = vmatmul.f32.gmra.mxu0 %v2267
        %v2317 = vpop.f32.mrf.mxu0
        %v2318 = vadd.f32 0.0, %v2317
        %2319 = vmatmul.f32.gmra.mxu0 %v2269
        %v2320 = vpop.f32.mrf.mxu0
        %v2321 = vadd.f32 0.0, %v2320
        %2322 = vmatmul.f32.gmra.mxu0 %v2271
        %v2323 = vpop.f32.mrf.mxu0
        %v2324 = vadd.f32 0.0, %v2323
        %2325 = vmatmul.f32.gmra.mxu0 %v2273
        %v2326 = vpop.f32.mrf.mxu0
        %v2327 = vadd.f32 0.0, %v2326
        %2328 = vmatmul.f32.gmra.mxu0 %v2275
        %v2329 = vpop.f32.mrf.mxu0
        %v2330 = vadd.f32 0.0, %v2329
        %2331 = vmatmul.f32.gmra.mxu0 %v2277
        %v2332 = vpop.f32.mrf.mxu0
        %v2333 = vadd.f32 0.0, %v2332
        %2334 = vmatmul.f32.gmra.mxu0 %v2279
        %v2335 = vpop.f32.mrf.mxu0
        %v2336 = vadd.f32 0.0, %v2335
        %2337 = vmatmul.f32.gmra.mxu0 %v2281
        %v2338 = vpop.f32.mrf.mxu0
        %v2339 = vadd.f32 0.0, %v2338
        %2340 = vmatmul.f32.gmra.mxu0 %v2283
        %v2341 = vpop.f32.mrf.mxu0
        %v2342 = vadd.f32 0.0, %v2341
        %2343 = vmatmul.f32.gmra.mxu0 %v2285
        %v2344 = vpop.f32.mrf.mxu0
        %v2345 = vadd.f32 0.0, %v2344
        %2346 = vmatmul.f32.gmra.mxu0 %v2287
        %v2347 = vpop.f32.mrf.mxu0
        %v2348 = vadd.f32 0.0, %v2347
        %2349 = vmatmul.f32.gmra.mxu0 %v2289
        %v2350 = vpop.f32.mrf.mxu0
        %v2351 = vadd.f32 0.0, %v2350
        %2352 = vmatmul.f32.gmra.mxu0 %v2291
        %v2353 = vpop.f32.mrf.mxu0
        %v2354 = vadd.f32 0.0, %v2353
        %2355 = vmatmul.f32.gmra.mxu0 %v2293
        %v2356 = vpop.f32.mrf.mxu0
        %v2357 = vadd.f32 0.0, %v2356
        %2358 = vmatmul.f32.gmra.mxu0 %v2295
        %v2359 = vpop.f32.mrf.mxu0
        %v2360 = vadd.f32 0.0, %v2359
        %2361 = vdwg.mxu0
        %v2362 = vadd.f32 %v2208, %v2315
        %v2363 = vadd.f32 %v2209, %v2318
        %v2364 = vadd.f32 %v2210, %v2321
        %v2365 = vadd.f32 %v2211, %v2324
        %v2366 = vadd.f32 %v2212, %v2327
        %v2367 = vadd.f32 %v2213, %v2330
        %v2368 = vadd.f32 %v2214, %v2333
        %v2369 = vadd.f32 %v2215, %v2336
        %v2370 = vadd.f32 %v2216, %v2339
        %v2371 = vadd.f32 %v2217, %v2342
        %v2372 = vadd.f32 %v2218, %v2345
        %v2373 = vadd.f32 %v2219, %v2348
        %v2374 = vadd.f32 %v2220, %v2351
        %v2375 = vadd.f32 %v2221, %v2354
        %v2376 = vadd.f32 %v2222, %v2357
        %v2377 = vadd.f32 %v2223, %v2360
        %s2378 = scalar_lea.vmem %s2, 512
        %v2379 = vld [vmem:[%s2378] sm:$0xff]
        %v2380 = vld [vmem:[%s2378 + $0x8] sm:$0xff]
        %v2381 = vld [vmem:[%s2378 + $0x10] sm:$0xff]
        %v2382 = vld [vmem:[%s2378 + $0x18] sm:$0xff]
        %v2383 = vld [vmem:[%s2378 + $0x20] sm:$0xff]
        %v2384 = vld [vmem:[%s2378 + $0x28] sm:$0xff]
        %v2385 = vld [vmem:[%s2378 + $0x30] sm:$0xff]
        %v2386 = vld [vmem:[%s2378 + $0x38] sm:$0xff]
        %2387 = vrot.lane.b32.xlu0 %v2070, 120
        %v2388 = vpop.permute.xlu0 %2387
        %2389 = vrot.lane.b32.xlu0 %v2071, 120
        %v2390 = vpop.permute.xlu0 %2389
        %2391 = vrot.lane.b32.xlu0 %v2072, 120
        %v2392 = vpop.permute.xlu0 %2391
        %2393 = vrot.lane.b32.xlu0 %v2073, 120
        %v2394 = vpop.permute.xlu0 %2393
        %2395 = vrot.lane.b32.xlu0 %v2074, 120
        %v2396 = vpop.permute.xlu0 %2395
        %2397 = vrot.lane.b32.xlu0 %v2075, 120
        %v2398 = vpop.permute.xlu0 %2397
        %2399 = vrot.lane.b32.xlu0 %v2076, 120
        %v2400 = vpop.permute.xlu0 %2399
        %2401 = vrot.lane.b32.xlu0 %v2077, 120
        %v2402 = vpop.permute.xlu0 %2401
        %2403 = vrot.lane.b32.xlu0 %v2078, 120
        %v2404 = vpop.permute.xlu0 %2403
        %2405 = vrot.lane.b32.xlu0 %v2079, 120
        %v2406 = vpop.permute.xlu0 %2405
        %2407 = vrot.lane.b32.xlu0 %v2080, 120
        %v2408 = vpop.permute.xlu0 %2407
        %2409 = vrot.lane.b32.xlu0 %v2081, 120
        %v2410 = vpop.permute.xlu0 %2409
        %2411 = vrot.lane.b32.xlu0 %v2082, 120
        %v2412 = vpop.permute.xlu0 %2411
        %2413 = vrot.lane.b32.xlu0 %v2083, 120
        %v2414 = vpop.permute.xlu0 %2413
        %2415 = vrot.lane.b32.xlu0 %v2084, 120
        %v2416 = vpop.permute.xlu0 %2415
        %2417 = vrot.lane.b32.xlu0 %v2085, 120
        %v2418 = vpop.permute.xlu0 %2417
        %v2419 = vsel %vm1259, %v2388, 0
        %v2421 = vsel %vm1259, %v2390, 0
        %v2423 = vsel %vm1259, %v2392, 0
        %v2425 = vsel %vm1259, %v2394, 0
        %v2427 = vsel %vm1259, %v2396, 0
        %v2429 = vsel %vm1259, %v2398, 0
        %v2431 = vsel %vm1259, %v2400, 0
        %v2433 = vsel %vm1259, %v2402, 0
        %v2435 = vsel %vm1259, %v2404, 0
        %v2437 = vsel %vm1259, %v2406, 0
        %v2439 = vsel %vm1259, %v2408, 0
        %v2441 = vsel %vm1259, %v2410, 0
        %v2443 = vsel %vm1259, %v2412, 0
        %v2445 = vsel %vm1259, %v2414, 0
        %v2447 = vsel %vm1259, %v2416, 0
        %v2449 = vsel %vm1259, %v2418, 0
        %2451 = vmatpush.msra.mxu0 0.0
        %2452 = vmatpush.msra.mxu0 0.0
        %2453 = vmatpush.msra.mxu0 0.0
        %2454 = vmatpush.msra.mxu0 0.0
        %2455 = vmatpush.msra.mxu0 0.0
        %2456 = vmatpush.msra.mxu0 0.0
        %2457 = vmatpush.msra.mxu0 0.0
        %2458 = vmatpush.msra.mxu0 0.0
        %2459 = vmatpush.msra.mxu0 %v2386
        %2460 = vmatpush.msra.mxu0 %v2385
        %2461 = vmatpush.msra.mxu0 %v2384
        %2462 = vmatpush.msra.mxu0 %v2383
        %2463 = vmatpush.msra.mxu0 %v2382
        %2464 = vmatpush.msra.mxu0 %v2381
        %2465 = vmatpush.msra.mxu0 %v2380
        %2466 = vmatpush.msra.mxu0 %v2379
        %2467 = vmatmul.f32.gmra.mxu0 %v2419
        %v2468 = vpop.f32.mrf.mxu0
        %v2469 = vadd.f32 0.0, %v2468
        %2470 = vmatmul.f32.gmra.mxu0 %v2421
        %v2471 = vpop.f32.mrf.mxu0
        %v2472 = vadd.f32 0.0, %v2471
        %2473 = vmatmul.f32.gmra.mxu0 %v2423
        %v2474 = vpop.f32.mrf.mxu0
        %v2475 = vadd.f32 0.0, %v2474
        %2476 = vmatmul.f32.gmra.mxu0 %v2425
        %v2477 = vpop.f32.mrf.mxu0
        %v2478 = vadd.f32 0.0, %v2477
        %2479 = vmatmul.f32.gmra.mxu0 %v2427
        %v2480 = vpop.f32.mrf.mxu0
        %v2481 = vadd.f32 0.0, %v2480
        %2482 = vmatmul.f32.gmra.mxu0 %v2429
        %v2483 = vpop.f32.mrf.mxu0
        %v2484 = vadd.f32 0.0, %v2483
        %2485 = vmatmul.f32.gmra.mxu0 %v2431
        %v2486 = vpop.f32.mrf.mxu0
        %v2487 = vadd.f32 0.0, %v2486
        %2488 = vmatmul.f32.gmra.mxu0 %v2433
        %v2489 = vpop.f32.mrf.mxu0
        %v2490 = vadd.f32 0.0, %v2489
        %2491 = vmatmul.f32.gmra.mxu0 %v2435
        %v2492 = vpop.f32.mrf.mxu0
        %v2493 = vadd.f32 0.0, %v2492
        %2494 = vmatmul.f32.gmra.mxu0 %v2437
        %v2495 = vpop.f32.mrf.mxu0
        %v2496 = vadd.f32 0.0, %v2495
        %2497 = vmatmul.f32.gmra.mxu0 %v2439
        %v2498 = vpop.f32.mrf.mxu0
        %v2499 = vadd.f32 0.0, %v2498
        %2500 = vmatmul.f32.gmra.mxu0 %v2441
        %v2501 = vpop.f32.mrf.mxu0
        %v2502 = vadd.f32 0.0, %v2501
        %2503 = vmatmul.f32.gmra.mxu0 %v2443
        %v2504 = vpop.f32.mrf.mxu0
        %v2505 = vadd.f32 0.0, %v2504
        %2506 = vmatmul.f32.gmra.mxu0 %v2445
        %v2507 = vpop.f32.mrf.mxu0
        %v2508 = vadd.f32 0.0, %v2507
        %2509 = vmatmul.f32.gmra.mxu0 %v2447
        %v2510 = vpop.f32.mrf.mxu0
        %v2511 = vadd.f32 0.0, %v2510
        %2512 = vmatmul.f32.gmra.mxu0 %v2449
        %v2513 = vpop.f32.mrf.mxu0
        %v2514 = vadd.f32 0.0, %v2513
        %2515 = vdwg.mxu0
        %v2516 = vadd.f32 %v2362, %v2469
        %v2517 = vadd.f32 %v2363, %v2472
        %v2518 = vadd.f32 %v2364, %v2475
        %v2519 = vadd.f32 %v2365, %v2478
        %v2520 = vadd.f32 %v2366, %v2481
        %v2521 = vadd.f32 %v2367, %v2484
        %v2522 = vadd.f32 %v2368, %v2487
        %v2523 = vadd.f32 %v2369, %v2490
        %v2524 = vadd.f32 %v2370, %v2493
        %v2525 = vadd.f32 %v2371, %v2496
        %v2526 = vadd.f32 %v2372, %v2499
        %v2527 = vadd.f32 %v2373, %v2502
        %v2528 = vadd.f32 %v2374, %v2505
        %v2529 = vadd.f32 %v2375, %v2508
        %v2530 = vadd.f32 %v2376, %v2511
        %v2531 = vadd.f32 %v2377, %v2514
        %v2532 = vld [vmem:[%s6] sm:$0x1]
        %v2534 = vperm.slane %v2532, 0
        %v2536 = vmul.f32 %v2516, %v2534
        %v2537 = vmul.f32 %v2517, %v2534
        %v2538 = vmul.f32 %v2518, %v2534
        %v2539 = vmul.f32 %v2519, %v2534
        %v2540 = vmul.f32 %v2520, %v2534
        %v2541 = vmul.f32 %v2521, %v2534
        %v2542 = vmul.f32 %v2522, %v2534
        %v2543 = vmul.f32 %v2523, %v2534
        %v2544 = vmul.f32 %v2524, %v2534
        %v2545 = vmul.f32 %v2525, %v2534
        %v2546 = vmul.f32 %v2526, %v2534
        %v2547 = vmul.f32 %v2527, %v2534
        %v2548 = vmul.f32 %v2528, %v2534
        %v2549 = vmul.f32 %v2529, %v2534
        %v2550 = vmul.f32 %v2530, %v2534
        %v2551 = vmul.f32 %v2531, %v2534
        %v2552 = vld [vmem:[%s7] sm:$0x1]
        %v2554 = vperm.slane %v2552, 0
        %v2556 = vadd.f32 %v2536, %v2554
        %v2557 = vadd.f32 %v2537, %v2554
        %v2558 = vadd.f32 %v2538, %v2554
        %v2559 = vadd.f32 %v2539, %v2554
        %v2560 = vadd.f32 %v2540, %v2554
        %v2561 = vadd.f32 %v2541, %v2554
        %v2562 = vadd.f32 %v2542, %v2554
        %v2563 = vadd.f32 %v2543, %v2554
        %v2564 = vadd.f32 %v2544, %v2554
        %v2565 = vadd.f32 %v2545, %v2554
        %v2566 = vadd.f32 %v2546, %v2554
        %v2567 = vadd.f32 %v2547, %v2554
        %v2568 = vadd.f32 %v2548, %v2554
        %v2569 = vadd.f32 %v2549, %v2554
        %v2570 = vadd.f32 %v2550, %v2554
        %v2571 = vadd.f32 %v2551, %v2554
        %v2572 = vmax.f32 %v2556, 0.0
        %v2573 = vmax.f32 %v2557, 0.0
        %v2574 = vmax.f32 %v2558, 0.0
        %v2575 = vmax.f32 %v2559, 0.0
        %v2576 = vmax.f32 %v2560, 0.0
        %v2577 = vmax.f32 %v2561, 0.0
        %v2578 = vmax.f32 %v2562, 0.0
        %v2579 = vmax.f32 %v2563, 0.0
        %v2580 = vmax.f32 %v2564, 0.0
        %v2581 = vmax.f32 %v2565, 0.0
        %v2582 = vmax.f32 %v2566, 0.0
        %v2583 = vmax.f32 %v2567, 0.0
        %v2584 = vmax.f32 %v2568, 0.0
        %v2585 = vmax.f32 %v2569, 0.0
        %v2586 = vmax.f32 %v2570, 0.0
        %v2587 = vmax.f32 %v2571, 0.0
        %v2588 = vld [vmem:[#allocation4] sm:$0xff]
        %v2589 = vld [vmem:[#allocation4 + $0x8] sm:$0xff]
        %v2590 = vld [vmem:[#allocation4 + $0x10] sm:$0xff]
        %v2591 = vld [vmem:[#allocation4 + $0x18] sm:$0xff]
        %v2592 = vld [vmem:[#allocation4 + $0x20] sm:$0xff]
        %v2593 = vld [vmem:[#allocation4 + $0x28] sm:$0xff]
        %v2594 = vld [vmem:[#allocation4 + $0x30] sm:$0xff]
        %v2595 = vld [vmem:[#allocation4 + $0x38] sm:$0xff]
        %v2596 = vld [vmem:[#allocation4 + $0x40] sm:$0xff]
        %v2597 = vld [vmem:[#allocation4 + $0x48] sm:$0xff]
        %v2598 = vld [vmem:[#allocation4 + $0x50] sm:$0xff]
        %v2599 = vld [vmem:[#allocation4 + $0x58] sm:$0xff]
        %v2600 = vld [vmem:[#allocation4 + $0x60] sm:$0xff]
        %v2601 = vld [vmem:[#allocation4 + $0x68] sm:$0xff]
        %v2602 = vld [vmem:[#allocation4 + $0x70] sm:$0xff]
        %v2603 = vld [vmem:[#allocation4 + $0x78] sm:$0xff]
        %v2605 = vsel %vm1259, %v2572, 0
        %v2608 = vsel %vm1259, %v2573, 0
        %v2611 = vsel %vm1259, %v2574, 0
        %v2614 = vsel %vm1259, %v2575, 0
        %v2617 = vsel %vm1259, %v2576, 0
        %v2620 = vsel %vm1259, %v2577, 0
        %v2623 = vsel %vm1259, %v2578, 0
        %v2626 = vsel %vm1259, %v2579, 0
        %v2629 = vsel %vm1259, %v2580, 0
        %v2632 = vsel %vm1259, %v2581, 0
        %v2635 = vsel %vm1259, %v2582, 0
        %v2638 = vsel %vm1259, %v2583, 0
        %v2641 = vsel %vm1259, %v2584, 0
        %v2644 = vsel %vm1259, %v2585, 0
        %v2647 = vsel %vm1259, %v2586, 0
        %v2650 = vsel %vm1259, %v2587, 0
        %2652 = vmatpush.msra.mxu0 0.0
        %2653 = vmatpush.msra.mxu0 0.0
        %2654 = vmatpush.msra.mxu0 0.0
        %2655 = vmatpush.msra.mxu0 0.0
        %2656 = vmatpush.msra.mxu0 0.0
        %2657 = vmatpush.msra.mxu0 0.0
        %2658 = vmatpush.msra.mxu0 0.0
        %2659 = vmatpush.msra.mxu0 0.0
        %2660 = vmatpush.msra.mxu0 %v2602
        %2661 = vmatpush.msra.mxu0 %v2600
        %2662 = vmatpush.msra.mxu0 %v2598
        %2663 = vmatpush.msra.mxu0 %v2596
        %2664 = vmatpush.msra.mxu0 %v2594
        %2665 = vmatpush.msra.mxu0 %v2592
        %2666 = vmatpush.msra.mxu0 %v2590
        %2667 = vmatpush.msra.mxu0 %v2588
        %2668 = vmatmul.f32.gmra.mxu0 %v2605
        %v2669 = vpop.f32.mrf.mxu0
        %v2670 = vadd.f32 0.0, %v2669
        %2671 = vmatmul.f32.gmra.mxu0 %v2608
        %v2672 = vpop.f32.mrf.mxu0
        %v2673 = vadd.f32 0.0, %v2672
        %2674 = vmatmul.f32.gmra.mxu0 %v2611
        %v2675 = vpop.f32.mrf.mxu0
        %v2676 = vadd.f32 0.0, %v2675
        %2677 = vmatmul.f32.gmra.mxu0 %v2614
        %v2678 = vpop.f32.mrf.mxu0
        %v2679 = vadd.f32 0.0, %v2678
        %2680 = vmatmul.f32.gmra.mxu0 %v2617
        %v2681 = vpop.f32.mrf.mxu0
        %v2682 = vadd.f32 0.0, %v2681
        %2683 = vmatmul.f32.gmra.mxu0 %v2620
        %v2684 = vpop.f32.mrf.mxu0
        %v2685 = vadd.f32 0.0, %v2684
        %2686 = vmatmul.f32.gmra.mxu0 %v2623
        %v2687 = vpop.f32.mrf.mxu0
        %v2688 = vadd.f32 0.0, %v2687
        %2689 = vmatmul.f32.gmra.mxu0 %v2626
        %v2690 = vpop.f32.mrf.mxu0
        %v2691 = vadd.f32 0.0, %v2690
        %2692 = vmatmul.f32.gmra.mxu0 %v2629
        %v2693 = vpop.f32.mrf.mxu0
        %v2694 = vadd.f32 0.0, %v2693
        %2695 = vmatmul.f32.gmra.mxu0 %v2632
        %v2696 = vpop.f32.mrf.mxu0
        %v2697 = vadd.f32 0.0, %v2696
        %2698 = vmatmul.f32.gmra.mxu0 %v2635
        %v2699 = vpop.f32.mrf.mxu0
        %v2700 = vadd.f32 0.0, %v2699
        %2701 = vmatmul.f32.gmra.mxu0 %v2638
        %v2702 = vpop.f32.mrf.mxu0
        %v2703 = vadd.f32 0.0, %v2702
        %2704 = vmatmul.f32.gmra.mxu0 %v2641
        %v2705 = vpop.f32.mrf.mxu0
        %v2706 = vadd.f32 0.0, %v2705
        %2707 = vmatmul.f32.gmra.mxu0 %v2644
        %v2708 = vpop.f32.mrf.mxu0
        %v2709 = vadd.f32 0.0, %v2708
        %2710 = vmatmul.f32.gmra.mxu0 %v2647
        %v2711 = vpop.f32.mrf.mxu0
        %v2712 = vadd.f32 0.0, %v2711
        %2713 = vmatmul.f32.gmra.mxu0 %v2650
        %v2714 = vpop.f32.mrf.mxu0
        %v2715 = vadd.f32 0.0, %v2714
        %2716 = vdwg.mxu0
        %2717 = vmatpush.msra.mxu0 0.0
        %2718 = vmatpush.msra.mxu0 0.0
        %2719 = vmatpush.msra.mxu0 0.0
        %2720 = vmatpush.msra.mxu0 0.0
        %2721 = vmatpush.msra.mxu0 0.0
        %2722 = vmatpush.msra.mxu0 0.0
        %2723 = vmatpush.msra.mxu0 0.0
        %2724 = vmatpush.msra.mxu0 0.0
        %2725 = vmatpush.msra.mxu0 %v2603
        %2726 = vmatpush.msra.mxu0 %v2601
        %2727 = vmatpush.msra.mxu0 %v2599
        %2728 = vmatpush.msra.mxu0 %v2597
        %2729 = vmatpush.msra.mxu0 %v2595
        %2730 = vmatpush.msra.mxu0 %v2593
        %2731 = vmatpush.msra.mxu0 %v2591
        %2732 = vmatpush.msra.mxu0 %v2589
        %2733 = vmatmul.f32.gmra.mxu0 %v2605
        %v2734 = vpop.f32.mrf.mxu0
        %v2735 = vadd.f32 0.0, %v2734
        %2736 = vmatmul.f32.gmra.mxu0 %v2608
        %v2737 = vpop.f32.mrf.mxu0
        %v2738 = vadd.f32 0.0, %v2737
        %2739 = vmatmul.f32.gmra.mxu0 %v2611
        %v2740 = vpop.f32.mrf.mxu0
        %v2741 = vadd.f32 0.0, %v2740
        %2742 = vmatmul.f32.gmra.mxu0 %v2614
        %v2743 = vpop.f32.mrf.mxu0
        %v2744 = vadd.f32 0.0, %v2743
        %2745 = vmatmul.f32.gmra.mxu0 %v2617
        %v2746 = vpop.f32.mrf.mxu0
        %v2747 = vadd.f32 0.0, %v2746
        %2748 = vmatmul.f32.gmra.mxu0 %v2620
        %v2749 = vpop.f32.mrf.mxu0
        %v2750 = vadd.f32 0.0, %v2749
        %2751 = vmatmul.f32.gmra.mxu0 %v2623
        %v2752 = vpop.f32.mrf.mxu0
        %v2753 = vadd.f32 0.0, %v2752
        %2754 = vmatmul.f32.gmra.mxu0 %v2626
        %v2755 = vpop.f32.mrf.mxu0
        %v2756 = vadd.f32 0.0, %v2755
        %2757 = vmatmul.f32.gmra.mxu0 %v2629
        %v2758 = vpop.f32.mrf.mxu0
        %v2759 = vadd.f32 0.0, %v2758
        %2760 = vmatmul.f32.gmra.mxu0 %v2632
        %v2761 = vpop.f32.mrf.mxu0
        %v2762 = vadd.f32 0.0, %v2761
        %2763 = vmatmul.f32.gmra.mxu0 %v2635
        %v2764 = vpop.f32.mrf.mxu0
        %v2765 = vadd.f32 0.0, %v2764
        %2766 = vmatmul.f32.gmra.mxu0 %v2638
        %v2767 = vpop.f32.mrf.mxu0
        %v2768 = vadd.f32 0.0, %v2767
        %2769 = vmatmul.f32.gmra.mxu0 %v2641
        %v2770 = vpop.f32.mrf.mxu0
        %v2771 = vadd.f32 0.0, %v2770
        %2772 = vmatmul.f32.gmra.mxu0 %v2644
        %v2773 = vpop.f32.mrf.mxu0
        %v2774 = vadd.f32 0.0, %v2773
        %2775 = vmatmul.f32.gmra.mxu0 %v2647
        %v2776 = vpop.f32.mrf.mxu0
        %v2777 = vadd.f32 0.0, %v2776
        %2778 = vmatmul.f32.gmra.mxu0 %v2650
        %v2779 = vpop.f32.mrf.mxu0
        %v2780 = vadd.f32 0.0, %v2779
        %2781 = vdwg.mxu0
        %v2782 = vld [vmem:[%s8] sm:$0x3]
        %v2784 = vperm.slane %v2782, 0
        %v2785 = vperm.slane %v2782, 1
        %v2788 = vmul.f32 %v2670, %v2784
        %v2789 = vmul.f32 %v2735, %v2785
        %v2790 = vmul.f32 %v2673, %v2784
        %v2791 = vmul.f32 %v2738, %v2785
        %v2792 = vmul.f32 %v2676, %v2784
        %v2793 = vmul.f32 %v2741, %v2785
        %v2794 = vmul.f32 %v2679, %v2784
        %v2795 = vmul.f32 %v2744, %v2785
        %v2796 = vmul.f32 %v2682, %v2784
        %v2797 = vmul.f32 %v2747, %v2785
        %v2798 = vmul.f32 %v2685, %v2784
        %v2799 = vmul.f32 %v2750, %v2785
        %v2800 = vmul.f32 %v2688, %v2784
        %v2801 = vmul.f32 %v2753, %v2785
        %v2802 = vmul.f32 %v2691, %v2784
        %v2803 = vmul.f32 %v2756, %v2785
        %v2804 = vmul.f32 %v2694, %v2784
        %v2805 = vmul.f32 %v2759, %v2785
        %v2806 = vmul.f32 %v2697, %v2784
        %v2807 = vmul.f32 %v2762, %v2785
        %v2808 = vmul.f32 %v2700, %v2784
        %v2809 = vmul.f32 %v2765, %v2785
        %v2810 = vmul.f32 %v2703, %v2784
        %v2811 = vmul.f32 %v2768, %v2785
        %v2812 = vmul.f32 %v2706, %v2784
        %v2813 = vmul.f32 %v2771, %v2785
        %v2814 = vmul.f32 %v2709, %v2784
        %v2815 = vmul.f32 %v2774, %v2785
        %v2816 = vmul.f32 %v2712, %v2784
        %v2817 = vmul.f32 %v2777, %v2785
        %v2818 = vmul.f32 %v2715, %v2784
        %v2819 = vmul.f32 %v2780, %v2785
        %v2820 = vld [vmem:[%s9] sm:$0x3]
        %v2822 = vperm.slane %v2820, 0
        %v2823 = vperm.slane %v2820, 1
        %v2826 = vadd.f32 %v2788, %v2822
        %v2827 = vadd.f32 %v2789, %v2823
        %v2828 = vadd.f32 %v2790, %v2822
        %v2829 = vadd.f32 %v2791, %v2823
        %v2830 = vadd.f32 %v2792, %v2822
        %v2831 = vadd.f32 %v2793, %v2823
        %v2832 = vadd.f32 %v2794, %v2822
        %v2833 = vadd.f32 %v2795, %v2823
        %v2834 = vadd.f32 %v2796, %v2822
        %v2835 = vadd.f32 %v2797, %v2823
        %v2836 = vadd.f32 %v2798, %v2822
        %v2837 = vadd.f32 %v2799, %v2823
        %v2838 = vadd.f32 %v2800, %v2822
        %v2839 = vadd.f32 %v2801, %v2823
        %v2840 = vadd.f32 %v2802, %v2822
        %v2841 = vadd.f32 %v2803, %v2823
        %v2842 = vadd.f32 %v2804, %v2822
        %v2843 = vadd.f32 %v2805, %v2823
        %v2844 = vadd.f32 %v2806, %v2822
        %v2845 = vadd.f32 %v2807, %v2823
        %v2846 = vadd.f32 %v2808, %v2822
        %v2847 = vadd.f32 %v2809, %v2823
        %v2848 = vadd.f32 %v2810, %v2822
        %v2849 = vadd.f32 %v2811, %v2823
        %v2850 = vadd.f32 %v2812, %v2822
        %v2851 = vadd.f32 %v2813, %v2823
        %v2852 = vadd.f32 %v2814, %v2822
        %v2853 = vadd.f32 %v2815, %v2823
        %v2854 = vadd.f32 %v2816, %v2822
        %v2855 = vadd.f32 %v2817, %v2823
        %v2856 = vadd.f32 %v2818, %v2822
        %v2857 = vadd.f32 %v2819, %v2823
        %v2858 = vld [vmem:[%s374] sm:$0xff]
        %v2859 = vld [vmem:[%s374 + $0x8] sm:$0xff]
        %v2860 = vld [vmem:[%s374 + $0x10] sm:$0xff]
        %v2861 = vld [vmem:[%s374 + $0x18] sm:$0xff]
        %v2862 = vld [vmem:[%s374 + $0x20] sm:$0xff]
        %v2863 = vld [vmem:[%s374 + $0x28] sm:$0xff]
        %v2864 = vld [vmem:[%s374 + $0x30] sm:$0xff]
        %v2865 = vld [vmem:[%s374 + $0x38] sm:$0xff]
        %v2866 = vld [vmem:[%s374 + $0x40] sm:$0xff]
        %v2867 = vld [vmem:[%s374 + $0x48] sm:$0xff]
        %v2868 = vld [vmem:[%s374 + $0x50] sm:$0xff]
        %v2869 = vld [vmem:[%s374 + $0x58] sm:$0xff]
        %v2870 = vld [vmem:[%s374 + $0x60] sm:$0xff]
        %v2871 = vld [vmem:[%s374 + $0x68] sm:$0xff]
        %v2872 = vld [vmem:[%s374 + $0x70] sm:$0xff]
        %v2873 = vld [vmem:[%s374 + $0x78] sm:$0xff]
        %v2874 = vld [vmem:[%s374 + $0x80] sm:$0xff]
        %v2875 = vld [vmem:[%s374 + $0x88] sm:$0xff]
        %v2876 = vld [vmem:[%s374 + $0x90] sm:$0xff]
        %v2877 = vld [vmem:[%s374 + $0x98] sm:$0xff]
        %v2878 = vld [vmem:[%s374 + $0xa0] sm:$0xff]
        %v2879 = vld [vmem:[%s374 + $0xa8] sm:$0xff]
        %v2880 = vld [vmem:[%s374 + $0xb0] sm:$0xff]
        %v2881 = vld [vmem:[%s374 + $0xb8] sm:$0xff]
        %v2882 = vld [vmem:[%s374 + $0xc0] sm:$0xff]
        %v2883 = vld [vmem:[%s374 + $0xc8] sm:$0xff]
        %v2884 = vld [vmem:[%s374 + $0xd0] sm:$0xff]
        %v2885 = vld [vmem:[%s374 + $0xd8] sm:$0xff]
        %v2886 = vld [vmem:[%s374 + $0xe0] sm:$0xff]
        %v2887 = vld [vmem:[%s374 + $0xe8] sm:$0xff]
        %v2888 = vld [vmem:[%s374 + $0xf0] sm:$0xff]
        %v2889 = vld [vmem:[%s374 + $0xf8] sm:$0xff]
        %v2890 = vadd.f32 %v2826, %v2858
        %v2891 = vadd.f32 %v2827, %v2859
        %v2892 = vadd.f32 %v2828, %v2860
        %v2893 = vadd.f32 %v2829, %v2861
        %v2894 = vadd.f32 %v2830, %v2862
        %v2895 = vadd.f32 %v2831, %v2863
        %v2896 = vadd.f32 %v2832, %v2864
        %v2897 = vadd.f32 %v2833, %v2865
        %v2898 = vadd.f32 %v2834, %v2866
        %v2899 = vadd.f32 %v2835, %v2867
        %v2900 = vadd.f32 %v2836, %v2868
        %v2901 = vadd.f32 %v2837, %v2869
        %v2902 = vadd.f32 %v2838, %v2870
        %v2903 = vadd.f32 %v2839, %v2871
        %v2904 = vadd.f32 %v2840, %v2872
        %v2905 = vadd.f32 %v2841, %v2873
        %v2906 = vadd.f32 %v2842, %v2874
        %v2907 = vadd.f32 %v2843, %v2875
        %v2908 = vadd.f32 %v2844, %v2876
        %v2909 = vadd.f32 %v2845, %v2877
        %v2910 = vadd.f32 %v2846, %v2878
        %v2911 = vadd.f32 %v2847, %v2879
        %v2912 = vadd.f32 %v2848, %v2880
        %v2913 = vadd.f32 %v2849, %v2881
        %v2914 = vadd.f32 %v2850, %v2882
        %v2915 = vadd.f32 %v2851, %v2883
        %v2916 = vadd.f32 %v2852, %v2884
        %v2917 = vadd.f32 %v2853, %v2885
        %v2918 = vadd.f32 %v2854, %v2886
        %v2919 = vadd.f32 %v2855, %v2887
        %v2920 = vadd.f32 %v2856, %v2888
        %v2921 = vadd.f32 %v2857, %v2889
        %v2922 = vmax.f32 %v2890, 0.0
        %v2923 = vmax.f32 %v2891, 0.0
        %v2924 = vmax.f32 %v2892, 0.0
        %v2925 = vmax.f32 %v2893, 0.0
        %v2926 = vmax.f32 %v2894, 0.0
        %v2927 = vmax.f32 %v2895, 0.0
        %v2928 = vmax.f32 %v2896, 0.0
        %v2929 = vmax.f32 %v2897, 0.0
        %v2930 = vmax.f32 %v2898, 0.0
        %v2931 = vmax.f32 %v2899, 0.0
        %v2932 = vmax.f32 %v2900, 0.0
        %v2933 = vmax.f32 %v2901, 0.0
        %v2934 = vmax.f32 %v2902, 0.0
        %v2935 = vmax.f32 %v2903, 0.0
        %v2936 = vmax.f32 %v2904, 0.0
        %v2937 = vmax.f32 %v2905, 0.0
        %v2938 = vmax.f32 %v2906, 0.0
        %v2939 = vmax.f32 %v2907, 0.0
        %v2940 = vmax.f32 %v2908, 0.0
        %v2941 = vmax.f32 %v2909, 0.0
        %v2942 = vmax.f32 %v2910, 0.0
        %v2943 = vmax.f32 %v2911, 0.0
        %v2944 = vmax.f32 %v2912, 0.0
        %v2945 = vmax.f32 %v2913, 0.0
        %v2946 = vmax.f32 %v2914, 0.0
        %v2947 = vmax.f32 %v2915, 0.0
        %v2948 = vmax.f32 %v2916, 0.0
        %v2949 = vmax.f32 %v2917, 0.0
        %v2950 = vmax.f32 %v2918, 0.0
        %v2951 = vmax.f32 %v2919, 0.0
        %v2952 = vmax.f32 %v2920, 0.0
        %v2953 = vmax.f32 %v2921, 0.0
        %2954 = vst [vmem:[%s369] sm:$0xff] %v2922
        %2955 = vst [vmem:[%s369 + $0x8] sm:$0xff] %v2923
        %2956 = vst [vmem:[%s369 + $0x10] sm:$0xff] %v2924
        %2957 = vst [vmem:[%s369 + $0x18] sm:$0xff] %v2925
        %2958 = vst [vmem:[%s369 + $0x20] sm:$0xff] %v2926
        %2959 = vst [vmem:[%s369 + $0x28] sm:$0xff] %v2927
        %2960 = vst [vmem:[%s369 + $0x30] sm:$0xff] %v2928
        %2961 = vst [vmem:[%s369 + $0x38] sm:$0xff] %v2929
        %2962 = vst [vmem:[%s369 + $0x40] sm:$0xff] %v2930
        %2963 = vst [vmem:[%s369 + $0x48] sm:$0xff] %v2931
        %2964 = vst [vmem:[%s369 + $0x50] sm:$0xff] %v2932
        %2965 = vst [vmem:[%s369 + $0x58] sm:$0xff] %v2933
        %2966 = vst [vmem:[%s369 + $0x60] sm:$0xff] %v2934
        %2967 = vst [vmem:[%s369 + $0x68] sm:$0xff] %v2935
        %2968 = vst [vmem:[%s369 + $0x70] sm:$0xff] %v2936
        %2969 = vst [vmem:[%s369 + $0x78] sm:$0xff] %v2937
        %2970 = vst [vmem:[%s369 + $0x80] sm:$0xff] %v2938
        %2971 = vst [vmem:[%s369 + $0x88] sm:$0xff] %v2939
        %2972 = vst [vmem:[%s369 + $0x90] sm:$0xff] %v2940
        %2973 = vst [vmem:[%s369 + $0x98] sm:$0xff] %v2941
        %2974 = vst [vmem:[%s369 + $0xa0] sm:$0xff] %v2942
        %2975 = vst [vmem:[%s369 + $0xa8] sm:$0xff] %v2943
        %2976 = vst [vmem:[%s369 + $0xb0] sm:$0xff] %v2944
        %2977 = vst [vmem:[%s369 + $0xb8] sm:$0xff] %v2945
        %2978 = vst [vmem:[%s369 + $0xc0] sm:$0xff] %v2946
        %2979 = vst [vmem:[%s369 + $0xc8] sm:$0xff] %v2947
        %2980 = vst [vmem:[%s369 + $0xd0] sm:$0xff] %v2948
        %2981 = vst [vmem:[%s369 + $0xd8] sm:$0xff] %v2949
        %2982 = vst [vmem:[%s369 + $0xe0] sm:$0xff] %v2950
        %2983 = vst [vmem:[%s369 + $0xe8] sm:$0xff] %v2951
        %2984 = vst [vmem:[%s369 + $0xf0] sm:$0xff] %v2952
        %2985 = vst [vmem:[%s369 + $0xf8] sm:$0xff] %v2953
        %s2986 = sand.u32 %s248, 1
        %s2987 = scalar_lea.sflag [#allocation6], %s2986
        %s2988 = sand.u32 %s248, 1
        %s2989 = smul.addr %s2988, 256
        %s2990 = scalar_lea.vmem [#allocation7], %s2989
        // Predicated region
        $region65: #{tpu_custom_call.1} parent=59 // pred_check
          %p2991 = pneg %p258
        $region66: #{tpu_custom_call.1} parent=59 // pred_check_branch
          %2993 = sbr.rel (%p2991) target = $region68
        $region67: #{tpu_custom_call.1} parent=59 // pred_region
          %2995 = vsyncadd %s2987, 0
          %s2996 = smul.addr %s25, 32
          %s2997 = smul.addr %s2996, 8
          %s2998 = scalar_lea.hbm %s10, %s2997
          %s2999 = sshll.u32 %s2990, 4
          %s3000 = int_to_ptr.vmem [resolvable:$true] %s2999
          %s3001 = sshll.u32 %s2998, 4
          %s3002 = int_to_ptr.hbm [resolvable:$true] %s3001
          %3007 = dma.vmem_to_hbm [thread:$0]  %s3000, 4096, %s3002, %s2987, 256, 256, 16
        $region68: #{tpu_custom_call.1} parent=59 // pred_fallthru
          _
      $region60: #{tpu_custom_call.1} parent=5 // pred_fallthru
        _
      %p3008 = scmp.le.s32.totalorder 2, %s20
      // Predicated region
      $region69: #{tpu_custom_call.1} parent=5 // pred_check
        %p3009 = pneg %p3008
      $region70: #{tpu_custom_call.1} parent=5 // pred_check_branch
        %3011 = sbr.rel (%p3009) target = $region72
      $region71: #{tpu_custom_call.1} parent=5 // pred_region
        %s3012 = ssub.s32 %s20, 2
        // Predicated region
        $region73: #{tpu_custom_call.1} parent=71 // pred_check
          %p3013 = pneg %p264
        $region74: #{tpu_custom_call.1} parent=71 // pred_check_branch
          %3015 = sbr.rel (%p3013) target = $region76
        $region75: #{tpu_custom_call.1} parent=71 // pred_region
          %s3016 = sand.u32 %s249, 1
          %s3017 = scalar_lea.sflag [#allocation6], %s3016
          %s3018 = sand.u32 %s249, 1
          %s3019 = smul.addr %s3018, 256
          %s3020 = scalar_lea.vmem [#allocation7], %s3019
          %3022 = dma.done %s3017, 4096
        $region76: #{tpu_custom_call.1} parent=71 // pred_fallthru
          _
      $region72: #{tpu_custom_call.1} parent=5 // pred_fallthru
        _
    $region6: #{tpu_custom_call.1} parent=1 // loop_footer
      %s24 = sadd.s32 1, %s20
    $region7: #{tpu_custom_call.1} parent=1 // loop_footer_branch
      %19 = sbr.rel target = $region3
    $region8: #{tpu_custom_call.1} parent=1 // loop_exit
      _
    %3023 = vsyncpa [#allocation5], 1
    %s3024 = scalar_lea.sflag [#allocation5], 1
    %3025 = vsyncpa %s3024, 1
    %3026 = vsyncpa [#allocation6], 1
    %s3027 = scalar_lea.sflag [#allocation6], 1
    %3028 = vsyncpa %s3027, 1

</llo_original>
